<compile_context>
chip_gen: v7x
topology: tpu7x:2x2x1
jax: 0.10.0
libtpu: 0.0.40
codegen_flags: <defaults>
</compile_context>

<pallas_src>
import math

import jax
import jax.numpy as jnp
import numpy as np
from jax.experimental import pallas as pl
from jax.experimental.pallas import tpu as pltpu

# ----------------------------- config ---------------------------------------
B, S = 2, 8          # batch, sequence
H = 32               # hidden size
NUM_HEADS = 2
HEAD_DIM = H // NUM_HEADS
INTER = 64           # FFN intermediate size
NUM_LAYERS = 2
VOCAB = 128
MAX_POS = 16
LN_EPS = 1e-12
MASK_NEG = -1e9
BS = B * S


# --------------------------- in-kernel helpers -------------------------------
def _layernorm(x, gamma, beta):
    mu = jnp.mean(x, axis=-1, keepdims=True)
    var = jnp.mean(jnp.square(x - mu), axis=-1, keepdims=True)
    return (x - mu) * jax.lax.rsqrt(var + LN_EPS) * gamma + beta


def _gelu(x):
    # tanh-approx GELU (HF BERT default is erf-GELU; tanh variant maps to the
    # EUP and is numerically very close).
    c = math.sqrt(2.0 / math.pi)
    return 0.5 * x * (1.0 + jnp.tanh(c * (x + 0.044715 * x * x * x)))


# ------------------------------- fused kernel --------------------------------
def _fused_encoder_kernel(we_ref, pe_ref, te_ref, eg_ref, eb_ref, mask_ref,
                          wqkv_ref, bqkv_ref, wo_ref, bo_ref, ag_ref, ab_ref,
                          w1_ref, b1_ref, w2_ref, b2_ref, fg_ref, fb_ref,
                          pw_ref, pb_ref, o_ref):
    # ---- embeddings + LayerNorm, batch flattened to (B*S, H) ----
    xe = we_ref[...] + pe_ref[...][None] + te_ref[...][None]        # (B,S,H)
    x = _layernorm(xe.reshape(BS, H), eg_ref[...], eb_ref[...])      # (BS,H)
    addmask = mask_ref[...]                                          # (B,1,S)
    scale = 1.0 / math.sqrt(HEAD_DIM)

    for li in range(NUM_LAYERS):                                     # static unroll
        # fused Q/K/V projection on the whole batch slab: (BS,H)x(H,3H)
        qkv = jnp.dot(x, wqkv_ref[li],
                      preferred_element_type=jnp.float32) + bqkv_ref[li]
        qkv3 = qkv.reshape(B, S, 3 * H)                              # (B,S,3H)
        wo = wo_ref[li]                                              # (H,H)

        # attention output accumulated directly into the W_o projection
        # (no ctx scratch, no lane-concat of heads).
        attn = bo_ref[li]                                            # (1,H)
        for h in range(NUM_HEADS):                                   # static unroll
            lo = h * HEAD_DIM
            qh = qkv3[..., lo:lo + HEAD_DIM]                         # (B,S,Dh)
            kh = qkv3[..., H + lo:H + lo + HEAD_DIM]
            vh = qkv3[..., 2 * H + lo:2 * H + lo + HEAD_DIM]
            s = jnp.einsum('bqd,bkd->bqk', qh, kh,
                           preferred_element_type=jnp.float32)       # (B,S,S)
            s = s * scale + addmask
            s = s - jnp.max(s, axis=-1, keepdims=True)
            p = jnp.exp(s)
            p = p * pl.reciprocal(jnp.sum(p, axis=-1, keepdims=True),
                                  approx=True)
            ctx_h = jnp.einsum('bqk,bkd->bqd', p, vh,
                               preferred_element_type=jnp.float32)   # (B,S,Dh)
            attn = attn + jnp.dot(ctx_h.reshape(BS, HEAD_DIM),
                                  wo[lo:lo + HEAD_DIM, :],
                                  preferred_element_type=jnp.float32)
        x = _layernorm(attn + x, ag_ref[li], ab_ref[li])             # (BS,H)

        # feed-forward + residual LayerNorm
        hmid = _gelu(jnp.dot(x, w1_ref[li],
                             preferred_element_type=jnp.float32) + b1_ref[li])
        y = jnp.dot(hmid, w2_ref[li],
                    preferred_element_type=jnp.float32) + b2_ref[li]
        x = _layernorm(y + x, fg_ref[li], fb_ref[li])

    # ---- pooler: tanh(W @ CLS + b), only HBM write of the whole kernel ----
    cls = x.reshape(B, S, H)[:, 0, :]                                # (B,H)
    o_ref[...] = jnp.tanh(
        jnp.dot(cls, pw_ref[...], preferred_element_type=jnp.float32)
        + pb_ref[...])


# ------------------------------ forward pass ----------------------------------
@jax.jit
def address_encoder_forward(params, input_ids, attention_mask):
    # TODO(synk): HF tokenizer (string -> input_ids) has no Pallas equivalent;
    # forward consumes pre-tokenized input_ids / attention_mask.
    we = params["word_emb"][input_ids]                 # (B,S,H) gather (XLA glue)
    pe = params["pos_emb"][:input_ids.shape[1]]        # (S,H)
    te = params["type_emb"][0:1]                       # (1,H) (token_type_ids=0)
    addmask = ((1.0 - attention_mask.astype(jnp.float32)) * MASK_NEG)[:, None, :]

    # One-time weight prep (XLA glue): fuse QKV and stack the per-layer params
    # so the fused kernel can index them with a static layer index.
    L = params["layers"]
    wqkv = jnp.stack([jnp.concatenate([lp["wq"], lp["wk"], lp["wv"]], 1) for lp in L])
    bqkv = jnp.stack([jnp.concatenate([lp["bq"], lp["bk"], lp["bv"]], 1) for lp in L])
    wo = jnp.stack([lp["wo"] for lp in L])
    bo = jnp.stack([lp["bo"] for lp in L])
    ag = jnp.stack([lp["attn_ln_g"] for lp in L])
    ab = jnp.stack([lp["attn_ln_b"] for lp in L])
    w1 = jnp.stack([lp["w1"] for lp in L])
    b1 = jnp.stack([lp["b1"] for lp in L])
    w2 = jnp.stack([lp["w2"] for lp in L])
    b2 = jnp.stack([lp["b2"] for lp in L])
    fg = jnp.stack([lp["ffn_ln_g"] for lp in L])
    fb = jnp.stack([lp["ffn_ln_b"] for lp in L])

    vmem = pl.BlockSpec(memory_space=pltpu.MemorySpace.VMEM)
    return pl.pallas_call(
        _fused_encoder_kernel,
        out_shape=jax.ShapeDtypeStruct((input_ids.shape[0], H), jnp.float32),
        in_specs=[vmem] * 20,
        out_specs=vmem,
    )(we, pe, te, params["emb_ln_g"], params["emb_ln_b"], addmask,
      wqkv, bqkv, wo, bo, ag, ab, w1, b1, w2, b2, fg, fb,
      params["pool_w"], params["pool_b"])


# ------------------------------ parameters ------------------------------------
def init_params(key):
    ks = jax.random.split(key, 4 + NUM_LAYERS)
    scale = 0.02

    def n(k, shape):
        return scale * jax.random.normal(k, shape, jnp.float32)

    params = {
        "word_emb": n(ks[0], (VOCAB, H)),
        "pos_emb": n(ks[1], (MAX_POS, H)),
        "type_emb": n(ks[2], (2, H)),
        "emb_ln_g": jnp.ones((1, H), jnp.float32),
        "emb_ln_b": jnp.zeros((1, H), jnp.float32),
        "pool_w": n(ks[3], (H, H)),
        "pool_b": jnp.zeros((1, H), jnp.float32),
        "layers": [],
    }
    for li in range(NUM_LAYERS):
        lk = jax.random.split(ks[4 + li], 6)
        params["layers"].append({
            "wq": n(lk[0], (H, H)), "bq": jnp.zeros((1, H), jnp.float32),
            "wk": n(lk[1], (H, H)), "bk": jnp.zeros((1, H), jnp.float32),
            "wv": n(lk[2], (H, H)), "bv": jnp.zeros((1, H), jnp.float32),
            "wo": n(lk[3], (H, H)), "bo": jnp.zeros((1, H), jnp.float32),
            "attn_ln_g": jnp.ones((1, H), jnp.float32),
            "attn_ln_b": jnp.zeros((1, H), jnp.float32),
            "w1": n(lk[4], (H, INTER)), "b1": jnp.zeros((1, INTER), jnp.float32),
            "w2": n(lk[5], (INTER, H)), "b2": jnp.zeros((1, H), jnp.float32),
            "ffn_ln_g": jnp.ones((1, H), jnp.float32),
            "ffn_ln_b": jnp.zeros((1, H), jnp.float32),
        })
    return params


# --------------------------- pure-JAX reference --------------------------------
def reference_forward(params, input_ids, attention_mask):
    we = params["word_emb"][input_ids]
    pe = params["pos_emb"][:input_ids.shape[1]]
    te = params["type_emb"][0:1]
    x = we + pe[None] + te[None]
    x = _layernorm(x, params["emb_ln_g"], params["emb_ln_b"])
    addmask = ((1.0 - attention_mask.astype(jnp.float32)) * MASK_NEG)[:, None, :]
    for lp in params["layers"]:
        q = x @ lp["wq"] + lp["bq"]
        k = x @ lp["wk"] + lp["bk"]
        v = x @ lp["wv"] + lp["bv"]
        ctx = []
        for h in range(NUM_HEADS):
            sl = slice(h * HEAD_DIM, (h + 1) * HEAD_DIM)
            s = jnp.einsum("bqd,bkd->bqk", q[..., sl], k[..., sl]) / math.sqrt(HEAD_DIM)
            s = s + addmask
            p = jax.nn.softmax(s, axis=-1)
            ctx.append(jnp.einsum("bqk,bkd->bqd", p, v[..., sl]))
        ctx = jnp.concatenate(ctx, axis=-1)
        x = _layernorm(ctx @ lp["wo"] + lp["bo"] + x, lp["attn_ln_g"], lp["attn_ln_b"])
        hmid = _gelu(x @ lp["w1"] + lp["b1"])
        x = _layernorm(hmid @ lp["w2"] + lp["b2"] + x, lp["ffn_ln_g"], lp["ffn_ln_b"])
    return jnp.tanh(x[:, 0, :] @ params["pool_w"] + params["pool_b"])


# ---------------------------------- main ---------------------------------------
if __name__ == "__main__":
    key = jax.random.PRNGKey(0)
    params = init_params(key)

    input_ids = jax.random.randint(jax.random.PRNGKey(1), (B, S), 0, VOCAB,
                                   dtype=jnp.int32)
    # second sequence is padded ("longest" padding semantics)
    attention_mask = jnp.array([[1] * S, [1] * 5 + [0] * (S - 5)], dtype=jnp.float32)

    pooled = jax.block_until_ready(
        address_encoder_forward(params, input_ids, attention_mask))
    ref = jax.block_until_ready(
        reference_forward(params, input_ids, attention_mask))

    assert pooled.shape == (B, H) and pooled.dtype == jnp.float32
    # slightly looser than before to accommodate the EUP approx-reciprocal in softmax
    np.testing.assert_allclose(np.asarray(pooled), np.asarray(ref),
                               rtol=5e-3, atol=1e-3)
    print("KERNEL_OK")
</pallas_src>

<mosaic_0001>
module attributes {stable_mosaic.version = 11 : i64} {
  func.func @_fused_encoder_kernel(%arg0: memref<2x8x32xf32, #tpu.memory_space<vmem>>, %arg1: memref<8x32xf32, #tpu.memory_space<vmem>>, %arg2: memref<1x32xf32, #tpu.memory_space<vmem>>, %arg3: memref<1x32xf32, #tpu.memory_space<vmem>>, %arg4: memref<1x32xf32, #tpu.memory_space<vmem>>, %arg5: memref<2x1x8xf32, #tpu.memory_space<vmem>>, %arg6: memref<2x32x96xf32, #tpu.memory_space<vmem>>, %arg7: memref<2x1x96xf32, #tpu.memory_space<vmem>>, %arg8: memref<2x32x32xf32, #tpu.memory_space<vmem>>, %arg9: memref<2x1x32xf32, #tpu.memory_space<vmem>>, %arg10: memref<2x1x32xf32, #tpu.memory_space<vmem>>, %arg11: memref<2x1x32xf32, #tpu.memory_space<vmem>>, %arg12: memref<2x32x64xf32, #tpu.memory_space<vmem>>, %arg13: memref<2x1x64xf32, #tpu.memory_space<vmem>>, %arg14: memref<2x64x32xf32, #tpu.memory_space<vmem>>, %arg15: memref<2x1x32xf32, #tpu.memory_space<vmem>>, %arg16: memref<2x1x32xf32, #tpu.memory_space<vmem>>, %arg17: memref<2x1x32xf32, #tpu.memory_space<vmem>>, %arg18: memref<32x32xf32, #tpu.memory_space<vmem>>, %arg19: memref<1x32xf32, #tpu.memory_space<vmem>>, %arg20: memref<2x32xf32, #tpu.memory_space<vmem>>) attributes {dimension_semantics = [], scalar_prefetch = 0 : i64, scratch_operands = 0 : i64, tpu.core_type = #tpu.core_type<tc>} {
    %c0 = arith.constant 0 : index
    %c0_0 = arith.constant 0 : index
    %c0_1 = arith.constant 0 : index
    %0 = vector.load %arg0[%c0, %c0_0, %c0_1] : memref<2x8x32xf32, #tpu.memory_space<vmem>>, vector<2x8x32xf32>
    %c0_2 = arith.constant 0 : index
    %c0_3 = arith.constant 0 : index
    %1 = vector.load %arg1[%c0_2, %c0_3] : memref<8x32xf32, #tpu.memory_space<vmem>>, vector<8x32xf32>
    %2 = vector.shape_cast %1 : vector<8x32xf32> to vector<1x8x32xf32>
    %3 = vector.broadcast %2 : vector<1x8x32xf32> to vector<2x8x32xf32>
    %4 = arith.addf %0, %3 : vector<2x8x32xf32>
    %c0_4 = arith.constant 0 : index
    %c0_5 = arith.constant 0 : index
    %5 = vector.load %arg2[%c0_4, %c0_5] : memref<1x32xf32, #tpu.memory_space<vmem>>, vector<1x32xf32>
    %6 = vector.shape_cast %5 : vector<1x32xf32> to vector<1x1x32xf32>
    %7 = vector.broadcast %6 : vector<1x1x32xf32> to vector<2x8x32xf32>
    %8 = arith.addf %4, %7 : vector<2x8x32xf32>
    %9 = vector.shape_cast %8 : vector<2x8x32xf32> to vector<16x32xf32>
    %c0_6 = arith.constant 0 : index
    %c0_7 = arith.constant 0 : index
    %10 = vector.load %arg3[%c0_6, %c0_7] : memref<1x32xf32, #tpu.memory_space<vmem>>, vector<1x32xf32>
    %c0_8 = arith.constant 0 : index
    %c0_9 = arith.constant 0 : index
    %11 = vector.load %arg4[%c0_8, %c0_9] : memref<1x32xf32, #tpu.memory_space<vmem>>, vector<1x32xf32>
    %cst = arith.constant dense<0.000000e+00> : vector<16xf32>
    %12 = vector.multi_reduction <add>, %9, %cst [1] : vector<16x32xf32> to vector<16xf32>
    %13 = vector.shape_cast %12 : vector<16xf32> to vector<16x1xf32>
    %cst_10 = arith.constant 3.200000e+01 : f32
    %14 = vector.broadcast %cst_10 : f32 to vector<16x1xf32>
    %15 = arith.divf %13, %14 : vector<16x1xf32>
    %16 = vector.broadcast %15 : vector<16x1xf32> to vector<16x32xf32>
    %17 = arith.subf %9, %16 : vector<16x32xf32>
    %18 = arith.mulf %17, %17 : vector<16x32xf32>
    %cst_11 = arith.constant dense<0.000000e+00> : vector<16xf32>
    %19 = vector.multi_reduction <add>, %18, %cst_11 [1] : vector<16x32xf32> to vector<16xf32>
    %20 = vector.shape_cast %19 : vector<16xf32> to vector<16x1xf32>
    %cst_12 = arith.constant 3.200000e+01 : f32
    %21 = vector.broadcast %cst_12 : f32 to vector<16x1xf32>
    %22 = arith.divf %20, %21 : vector<16x1xf32>
    %23 = vector.broadcast %15 : vector<16x1xf32> to vector<16x32xf32>
    %24 = arith.subf %9, %23 : vector<16x32xf32>
    %cst_13 = arith.constant 9.99999996E-13 : f32
    %25 = vector.broadcast %cst_13 : f32 to vector<16x1xf32>
    %26 = arith.addf %22, %25 : vector<16x1xf32>
    %27 = math.rsqrt %26 : vector<16x1xf32>
    %28 = vector.broadcast %27 : vector<16x1xf32> to vector<16x32xf32>
    %29 = arith.mulf %24, %28 : vector<16x32xf32>
    %30 = vector.broadcast %10 : vector<1x32xf32> to vector<16x32xf32>
    %31 = arith.mulf %29, %30 : vector<16x32xf32>
    %32 = vector.broadcast %11 : vector<1x32xf32> to vector<16x32xf32>
    %33 = arith.addf %31, %32 : vector<16x32xf32>
    %c0_14 = arith.constant 0 : index
    %c0_15 = arith.constant 0 : index
    %c0_16 = arith.constant 0 : index
    %34 = vector.load %arg5[%c0_14, %c0_15, %c0_16] : memref<2x1x8xf32, #tpu.memory_space<vmem>>, vector<2x1x8xf32>
    %c0_17 = arith.constant 0 : index
    %c0_18 = arith.constant 0 : index
    %c0_19 = arith.constant 0 : index
    %35 = vector.load %arg6[%c0_17, %c0_18, %c0_19] : memref<2x32x96xf32, #tpu.memory_space<vmem>>, vector<1x32x96xf32>
    %36 = vector.shape_cast %35 : vector<1x32x96xf32> to vector<32x96xf32>
    %cst_20 = arith.constant dense<0.000000e+00> : vector<16x96xf32>
    %37 = tpu.matmul %33, %36, %cst_20 {dimension_numbers = #tpu.dot_dimension_numbers<[1], [0], [0], [1], [0, 0, 1, 1], [], []>} : vector<16x32xf32>, vector<32x96xf32>, vector<16x96xf32> -> vector<16x96xf32>
    %c0_21 = arith.constant 0 : index
    %c0_22 = arith.constant 0 : index
    %c0_23 = arith.constant 0 : index
    %38 = vector.load %arg7[%c0_21, %c0_22, %c0_23] : memref<2x1x96xf32, #tpu.memory_space<vmem>>, vector<1x1x96xf32>
    %39 = vector.shape_cast %38 : vector<1x1x96xf32> to vector<1x96xf32>
    %40 = vector.broadcast %39 : vector<1x96xf32> to vector<16x96xf32>
    %41 = arith.addf %37, %40 : vector<16x96xf32>
    %42 = vector.shape_cast %41 : vector<16x96xf32> to vector<2x8x96xf32>
    %c0_24 = arith.constant 0 : index
    %c0_25 = arith.constant 0 : index
    %c0_26 = arith.constant 0 : index
    %43 = vector.load %arg8[%c0_24, %c0_25, %c0_26] : memref<2x32x32xf32, #tpu.memory_space<vmem>>, vector<1x32x32xf32>
    %44 = vector.shape_cast %43 : vector<1x32x32xf32> to vector<32x32xf32>
    %c0_27 = arith.constant 0 : index
    %c0_28 = arith.constant 0 : index
    %c0_29 = arith.constant 0 : index
    %45 = vector.load %arg9[%c0_27, %c0_28, %c0_29] : memref<2x1x32xf32, #tpu.memory_space<vmem>>, vector<1x1x32xf32>
    %46 = vector.shape_cast %45 : vector<1x1x32xf32> to vector<1x32xf32>
    %47 = vector.extract_strided_slice %42 {offsets = [0, 0, 0], sizes = [2, 8, 16], strides = [1, 1, 1]} : vector<2x8x96xf32> to vector<2x8x16xf32>
    %48 = vector.extract_strided_slice %42 {offsets = [0, 0, 32], sizes = [2, 8, 16], strides = [1, 1, 1]} : vector<2x8x96xf32> to vector<2x8x16xf32>
    %49 = vector.extract_strided_slice %42 {offsets = [0, 0, 64], sizes = [2, 8, 16], strides = [1, 1, 1]} : vector<2x8x96xf32> to vector<2x8x16xf32>
    "tpu.trace_start"() <{level = 10 : i32, message = "bqd,bkd->bqk"}> : () -> ()
    %cst_30 = arith.constant dense<0.000000e+00> : vector<2x8x8xf32>
    %50 = tpu.matmul %47, %48, %cst_30 {dimension_numbers = #tpu.dot_dimension_numbers<[2], [2], [1], [1], [0, 0, 0, 1, 1, 1], [0], [0]>} : vector<2x8x16xf32>, vector<2x8x16xf32>, vector<2x8x8xf32> -> vector<2x8x8xf32>
    "tpu.trace_stop"() : () -> ()
    %cst_31 = arith.constant 2.500000e-01 : f32
    %51 = vector.broadcast %cst_31 : f32 to vector<2x8x8xf32>
    %52 = arith.mulf %50, %51 : vector<2x8x8xf32>
    %53 = vector.broadcast %34 : vector<2x1x8xf32> to vector<2x8x8xf32>
    %54 = arith.addf %52, %53 : vector<2x8x8xf32>
    %cst_32 = arith.constant dense<0xFF800000> : vector<2x8xf32>
    %55 = vector.multi_reduction <maximumf>, %54, %cst_32 [2] : vector<2x8x8xf32> to vector<2x8xf32>
    %56 = vector.shape_cast %55 : vector<2x8xf32> to vector<2x8x1xf32>
    %57 = vector.broadcast %56 : vector<2x8x1xf32> to vector<2x8x8xf32>
    %58 = arith.subf %54, %57 : vector<2x8x8xf32>
    %59 = math.exp %58 : vector<2x8x8xf32>
    %cst_33 = arith.constant dense<0.000000e+00> : vector<2x8xf32>
    %60 = vector.multi_reduction <add>, %59, %cst_33 [2] : vector<2x8x8xf32> to vector<2x8xf32>
    %61 = vector.shape_cast %60 : vector<2x8xf32> to vector<2x8x1xf32>
    %62 = tpu.reciprocal %61 {approx = true} : vector<2x8x1xf32> -> vector<2x8x1xf32>
    %63 = vector.broadcast %62 : vector<2x8x1xf32> to vector<2x8x8xf32>
    %64 = arith.mulf %59, %63 : vector<2x8x8xf32>
    "tpu.trace_start"() <{level = 10 : i32, message = "bqk,bkd->bqd"}> : () -> ()
    %cst_34 = arith.constant dense<0.000000e+00> : vector<2x8x16xf32>
    %65 = tpu.matmul %64, %49, %cst_34 {dimension_numbers = #tpu.dot_dimension_numbers<[2], [1], [1], [2], [0, 0, 0, 1, 1, 2], [0], [0]>} : vector<2x8x8xf32>, vector<2x8x16xf32>, vector<2x8x16xf32> -> vector<2x8x16xf32>
    "tpu.trace_stop"() : () -> ()
    %66 = vector.shape_cast %65 : vector<2x8x16xf32> to vector<16x16xf32>
    %67 = vector.extract_strided_slice %44 {offsets = [0, 0], sizes = [16, 32], strides = [1, 1]} : vector<32x32xf32> to vector<16x32xf32>
    %cst_35 = arith.constant dense<0.000000e+00> : vector<16x32xf32>
    %68 = tpu.matmul %66, %67, %cst_35 {dimension_numbers = #tpu.dot_dimension_numbers<[1], [0], [0], [1], [0, 0, 1, 1], [], []>} : vector<16x16xf32>, vector<16x32xf32>, vector<16x32xf32> -> vector<16x32xf32>
    %69 = vector.broadcast %46 : vector<1x32xf32> to vector<16x32xf32>
    %70 = arith.addf %69, %68 : vector<16x32xf32>
    %71 = vector.extract_strided_slice %42 {offsets = [0, 0, 16], sizes = [2, 8, 16], strides = [1, 1, 1]} : vector<2x8x96xf32> to vector<2x8x16xf32>
    %72 = vector.extract_strided_slice %42 {offsets = [0, 0, 48], sizes = [2, 8, 16], strides = [1, 1, 1]} : vector<2x8x96xf32> to vector<2x8x16xf32>
    %73 = vector.extract_strided_slice %42 {offsets = [0, 0, 80], sizes = [2, 8, 16], strides = [1, 1, 1]} : vector<2x8x96xf32> to vector<2x8x16xf32>
    "tpu.trace_start"() <{level = 10 : i32, message = "bqd,bkd->bqk"}> : () -> ()
    %cst_36 = arith.constant dense<0.000000e+00> : vector<2x8x8xf32>
    %74 = tpu.matmul %71, %72, %cst_36 {dimension_numbers = #tpu.dot_dimension_numbers<[2], [2], [1], [1], [0, 0, 0, 1, 1, 1], [0], [0]>} : vector<2x8x16xf32>, vector<2x8x16xf32>, vector<2x8x8xf32> -> vector<2x8x8xf32>
    "tpu.trace_stop"() : () -> ()
    %cst_37 = arith.constant 2.500000e-01 : f32
    %75 = vector.broadcast %cst_37 : f32 to vector<2x8x8xf32>
    %76 = arith.mulf %74, %75 : vector<2x8x8xf32>
    %77 = vector.broadcast %34 : vector<2x1x8xf32> to vector<2x8x8xf32>
    %78 = arith.addf %76, %77 : vector<2x8x8xf32>
    %cst_38 = arith.constant dense<0xFF800000> : vector<2x8xf32>
    %79 = vector.multi_reduction <maximumf>, %78, %cst_38 [2] : vector<2x8x8xf32> to vector<2x8xf32>
    %80 = vector.shape_cast %79 : vector<2x8xf32> to vector<2x8x1xf32>
    %81 = vector.broadcast %80 : vector<2x8x1xf32> to vector<2x8x8xf32>
    %82 = arith.subf %78, %81 : vector<2x8x8xf32>
    %83 = math.exp %82 : vector<2x8x8xf32>
    %cst_39 = arith.constant dense<0.000000e+00> : vector<2x8xf32>
    %84 = vector.multi_reduction <add>, %83, %cst_39 [2] : vector<2x8x8xf32> to vector<2x8xf32>
    %85 = vector.shape_cast %84 : vector<2x8xf32> to vector<2x8x1xf32>
    %86 = tpu.reciprocal %85 {approx = true} : vector<2x8x1xf32> -> vector<2x8x1xf32>
    %87 = vector.broadcast %86 : vector<2x8x1xf32> to vector<2x8x8xf32>
    %88 = arith.mulf %83, %87 : vector<2x8x8xf32>
    "tpu.trace_start"() <{level = 10 : i32, message = "bqk,bkd->bqd"}> : () -> ()
    %cst_40 = arith.constant dense<0.000000e+00> : vector<2x8x16xf32>
    %89 = tpu.matmul %88, %73, %cst_40 {dimension_numbers = #tpu.dot_dimension_numbers<[2], [1], [1], [2], [0, 0, 0, 1, 1, 2], [0], [0]>} : vector<2x8x8xf32>, vector<2x8x16xf32>, vector<2x8x16xf32> -> vector<2x8x16xf32>
    "tpu.trace_stop"() : () -> ()
    %90 = vector.shape_cast %89 : vector<2x8x16xf32> to vector<16x16xf32>
    %91 = vector.extract_strided_slice %44 {offsets = [16, 0], sizes = [16, 32], strides = [1, 1]} : vector<32x32xf32> to vector<16x32xf32>
    %cst_41 = arith.constant dense<0.000000e+00> : vector<16x32xf32>
    %92 = tpu.matmul %90, %91, %cst_41 {dimension_numbers = #tpu.dot_dimension_numbers<[1], [0], [0], [1], [0, 0, 1, 1], [], []>} : vector<16x16xf32>, vector<16x32xf32>, vector<16x32xf32> -> vector<16x32xf32>
    %93 = arith.addf %70, %92 : vector<16x32xf32>
    %94 = arith.addf %93, %33 : vector<16x32xf32>
    %c0_42 = arith.constant 0 : index
    %c0_43 = arith.constant 0 : index
    %c0_44 = arith.constant 0 : index
    %95 = vector.load %arg10[%c0_42, %c0_43, %c0_44] : memref<2x1x32xf32, #tpu.memory_space<vmem>>, vector<1x1x32xf32>
    %96 = vector.shape_cast %95 : vector<1x1x32xf32> to vector<1x32xf32>
    %c0_45 = arith.constant 0 : index
    %c0_46 = arith.constant 0 : index
    %c0_47 = arith.constant 0 : index
    %97 = vector.load %arg11[%c0_45, %c0_46, %c0_47] : memref<2x1x32xf32, #tpu.memory_space<vmem>>, vector<1x1x32xf32>
    %98 = vector.shape_cast %97 : vector<1x1x32xf32> to vector<1x32xf32>
    %cst_48 = arith.constant dense<0.000000e+00> : vector<16xf32>
    %99 = vector.multi_reduction <add>, %94, %cst_48 [1] : vector<16x32xf32> to vector<16xf32>
    %100 = vector.shape_cast %99 : vector<16xf32> to vector<16x1xf32>
    %cst_49 = arith.constant 3.200000e+01 : f32
    %101 = vector.broadcast %cst_49 : f32 to vector<16x1xf32>
    %102 = arith.divf %100, %101 : vector<16x1xf32>
    %103 = vector.broadcast %102 : vector<16x1xf32> to vector<16x32xf32>
    %104 = arith.subf %94, %103 : vector<16x32xf32>
    %105 = arith.mulf %104, %104 : vector<16x32xf32>
    %cst_50 = arith.constant dense<0.000000e+00> : vector<16xf32>
    %106 = vector.multi_reduction <add>, %105, %cst_50 [1] : vector<16x32xf32> to vector<16xf32>
    %107 = vector.shape_cast %106 : vector<16xf32> to vector<16x1xf32>
    %cst_51 = arith.constant 3.200000e+01 : f32
    %108 = vector.broadcast %cst_51 : f32 to vector<16x1xf32>
    %109 = arith.divf %107, %108 : vector<16x1xf32>
    %110 = vector.broadcast %102 : vector<16x1xf32> to vector<16x32xf32>
    %111 = arith.subf %94, %110 : vector<16x32xf32>
    %cst_52 = arith.constant 9.99999996E-13 : f32
    %112 = vector.broadcast %cst_52 : f32 to vector<16x1xf32>
    %113 = arith.addf %109, %112 : vector<16x1xf32>
    %114 = math.rsqrt %113 : vector<16x1xf32>
    %115 = vector.broadcast %114 : vector<16x1xf32> to vector<16x32xf32>
    %116 = arith.mulf %111, %115 : vector<16x32xf32>
    %117 = vector.broadcast %96 : vector<1x32xf32> to vector<16x32xf32>
    %118 = arith.mulf %116, %117 : vector<16x32xf32>
    %119 = vector.broadcast %98 : vector<1x32xf32> to vector<16x32xf32>
    %120 = arith.addf %118, %119 : vector<16x32xf32>
    %c0_53 = arith.constant 0 : index
    %c0_54 = arith.constant 0 : index
    %c0_55 = arith.constant 0 : index
    %121 = vector.load %arg12[%c0_53, %c0_54, %c0_55] : memref<2x32x64xf32, #tpu.memory_space<vmem>>, vector<1x32x64xf32>
    %122 = vector.shape_cast %121 : vector<1x32x64xf32> to vector<32x64xf32>
    %cst_56 = arith.constant dense<0.000000e+00> : vector<16x64xf32>
    %123 = tpu.matmul %120, %122, %cst_56 {dimension_numbers = #tpu.dot_dimension_numbers<[1], [0], [0], [1], [0, 0, 1, 1], [], []>} : vector<16x32xf32>, vector<32x64xf32>, vector<16x64xf32> -> vector<16x64xf32>
    %c0_57 = arith.constant 0 : index
    %c0_58 = arith.constant 0 : index
    %c0_59 = arith.constant 0 : index
    %124 = vector.load %arg13[%c0_57, %c0_58, %c0_59] : memref<2x1x64xf32, #tpu.memory_space<vmem>>, vector<1x1x64xf32>
    %125 = vector.shape_cast %124 : vector<1x1x64xf32> to vector<1x64xf32>
    %126 = vector.broadcast %125 : vector<1x64xf32> to vector<16x64xf32>
    %127 = arith.addf %123, %126 : vector<16x64xf32>
    %cst_60 = arith.constant 5.000000e-01 : f32
    %128 = vector.broadcast %cst_60 : f32 to vector<16x64xf32>
    %129 = arith.mulf %128, %127 : vector<16x64xf32>
    %cst_61 = arith.constant 4.471500e-02 : f32
    %130 = vector.broadcast %cst_61 : f32 to vector<16x64xf32>
    %131 = arith.mulf %130, %127 : vector<16x64xf32>
    %132 = arith.mulf %131, %127 : vector<16x64xf32>
    %133 = arith.mulf %132, %127 : vector<16x64xf32>
    %134 = arith.addf %127, %133 : vector<16x64xf32>
    %cst_62 = arith.constant 0.797884583 : f32
    %135 = vector.broadcast %cst_62 : f32 to vector<16x64xf32>
    %136 = arith.mulf %135, %134 : vector<16x64xf32>
    %137 = math.tanh %136 : vector<16x64xf32>
    %cst_63 = arith.constant 1.000000e+00 : f32
    %138 = vector.broadcast %cst_63 : f32 to vector<16x64xf32>
    %139 = arith.addf %138, %137 : vector<16x64xf32>
    %140 = arith.mulf %129, %139 : vector<16x64xf32>
    %c0_64 = arith.constant 0 : index
    %c0_65 = arith.constant 0 : index
    %c0_66 = arith.constant 0 : index
    %141 = vector.load %arg14[%c0_64, %c0_65, %c0_66] : memref<2x64x32xf32, #tpu.memory_space<vmem>>, vector<1x64x32xf32>
    %142 = vector.shape_cast %141 : vector<1x64x32xf32> to vector<64x32xf32>
    %cst_67 = arith.constant dense<0.000000e+00> : vector<16x32xf32>
    %143 = tpu.matmul %140, %142, %cst_67 {dimension_numbers = #tpu.dot_dimension_numbers<[1], [0], [0], [1], [0, 0, 1, 1], [], []>} : vector<16x64xf32>, vector<64x32xf32>, vector<16x32xf32> -> vector<16x32xf32>
    %c0_68 = arith.constant 0 : index
    %c0_69 = arith.constant 0 : index
    %c0_70 = arith.constant 0 : index
    %144 = vector.load %arg15[%c0_68, %c0_69, %c0_70] : memref<2x1x32xf32, #tpu.memory_space<vmem>>, vector<1x1x32xf32>
    %145 = vector.shape_cast %144 : vector<1x1x32xf32> to vector<1x32xf32>
    %146 = vector.broadcast %145 : vector<1x32xf32> to vector<16x32xf32>
    %147 = arith.addf %143, %146 : vector<16x32xf32>
    %148 = arith.addf %147, %120 : vector<16x32xf32>
    %c0_71 = arith.constant 0 : index
    %c0_72 = arith.constant 0 : index
    %c0_73 = arith.constant 0 : index
    %149 = vector.load %arg16[%c0_71, %c0_72, %c0_73] : memref<2x1x32xf32, #tpu.memory_space<vmem>>, vector<1x1x32xf32>
    %150 = vector.shape_cast %149 : vector<1x1x32xf32> to vector<1x32xf32>
    %c0_74 = arith.constant 0 : index
    %c0_75 = arith.constant 0 : index
    %c0_76 = arith.constant 0 : index
    %151 = vector.load %arg17[%c0_74, %c0_75, %c0_76] : memref<2x1x32xf32, #tpu.memory_space<vmem>>, vector<1x1x32xf32>
    %152 = vector.shape_cast %151 : vector<1x1x32xf32> to vector<1x32xf32>
    %cst_77 = arith.constant dense<0.000000e+00> : vector<16xf32>
    %153 = vector.multi_reduction <add>, %148, %cst_77 [1] : vector<16x32xf32> to vector<16xf32>
    %154 = vector.shape_cast %153 : vector<16xf32> to vector<16x1xf32>
    %cst_78 = arith.constant 3.200000e+01 : f32
    %155 = vector.broadcast %cst_78 : f32 to vector<16x1xf32>
    %156 = arith.divf %154, %155 : vector<16x1xf32>
    %157 = vector.broadcast %156 : vector<16x1xf32> to vector<16x32xf32>
    %158 = arith.subf %148, %157 : vector<16x32xf32>
    %159 = arith.mulf %158, %158 : vector<16x32xf32>
    %cst_79 = arith.constant dense<0.000000e+00> : vector<16xf32>
    %160 = vector.multi_reduction <add>, %159, %cst_79 [1] : vector<16x32xf32> to vector<16xf32>
    %161 = vector.shape_cast %160 : vector<16xf32> to vector<16x1xf32>
    %cst_80 = arith.constant 3.200000e+01 : f32
    %162 = vector.broadcast %cst_80 : f32 to vector<16x1xf32>
    %163 = arith.divf %161, %162 : vector<16x1xf32>
    %164 = vector.broadcast %156 : vector<16x1xf32> to vector<16x32xf32>
    %165 = arith.subf %148, %164 : vector<16x32xf32>
    %cst_81 = arith.constant 9.99999996E-13 : f32
    %166 = vector.broadcast %cst_81 : f32 to vector<16x1xf32>
    %167 = arith.addf %163, %166 : vector<16x1xf32>
    %168 = math.rsqrt %167 : vector<16x1xf32>
    %169 = vector.broadcast %168 : vector<16x1xf32> to vector<16x32xf32>
    %170 = arith.mulf %165, %169 : vector<16x32xf32>
    %171 = vector.broadcast %150 : vector<1x32xf32> to vector<16x32xf32>
    %172 = arith.mulf %170, %171 : vector<16x32xf32>
    %173 = vector.broadcast %152 : vector<1x32xf32> to vector<16x32xf32>
    %174 = arith.addf %172, %173 : vector<16x32xf32>
    %c1 = arith.constant 1 : index
    %c0_82 = arith.constant 0 : index
    %c0_83 = arith.constant 0 : index
    %175 = vector.load %arg6[%c1, %c0_82, %c0_83] : memref<2x32x96xf32, #tpu.memory_space<vmem>>, vector<1x32x96xf32>
    %176 = vector.shape_cast %175 : vector<1x32x96xf32> to vector<32x96xf32>
    %cst_84 = arith.constant dense<0.000000e+00> : vector<16x96xf32>
    %177 = tpu.matmul %174, %176, %cst_84 {dimension_numbers = #tpu.dot_dimension_numbers<[1], [0], [0], [1], [0, 0, 1, 1], [], []>} : vector<16x32xf32>, vector<32x96xf32>, vector<16x96xf32> -> vector<16x96xf32>
    %c1_85 = arith.constant 1 : index
    %c0_86 = arith.constant 0 : index
    %c0_87 = arith.constant 0 : index
    %178 = vector.load %arg7[%c1_85, %c0_86, %c0_87] : memref<2x1x96xf32, #tpu.memory_space<vmem>>, vector<1x1x96xf32>
    %179 = vector.shape_cast %178 : vector<1x1x96xf32> to vector<1x96xf32>
    %180 = vector.broadcast %179 : vector<1x96xf32> to vector<16x96xf32>
    %181 = arith.addf %177, %180 : vector<16x96xf32>
    %182 = vector.shape_cast %181 : vector<16x96xf32> to vector<2x8x96xf32>
    %c1_88 = arith.constant 1 : index
    %c0_89 = arith.constant 0 : index
    %c0_90 = arith.constant 0 : index
    %183 = vector.load %arg8[%c1_88, %c0_89, %c0_90] : memref<2x32x32xf32, #tpu.memory_space<vmem>>, vector<1x32x32xf32>
    %184 = vector.shape_cast %183 : vector<1x32x32xf32> to vector<32x32xf32>
    %c1_91 = arith.constant 1 : index
    %c0_92 = arith.constant 0 : index
    %c0_93 = arith.constant 0 : index
    %185 = vector.load %arg9[%c1_91, %c0_92, %c0_93] : memref<2x1x32xf32, #tpu.memory_space<vmem>>, vector<1x1x32xf32>
    %186 = vector.shape_cast %185 : vector<1x1x32xf32> to vector<1x32xf32>
    %187 = vector.extract_strided_slice %182 {offsets = [0, 0, 0], sizes = [2, 8, 16], strides = [1, 1, 1]} : vector<2x8x96xf32> to vector<2x8x16xf32>
    %188 = vector.extract_strided_slice %182 {offsets = [0, 0, 32], sizes = [2, 8, 16], strides = [1, 1, 1]} : vector<2x8x96xf32> to vector<2x8x16xf32>
    %189 = vector.extract_strided_slice %182 {offsets = [0, 0, 64], sizes = [2, 8, 16], strides = [1, 1, 1]} : vector<2x8x96xf32> to vector<2x8x16xf32>
    "tpu.trace_start"() <{level = 10 : i32, message = "bqd,bkd->bqk"}> : () -> ()
    %cst_94 = arith.constant dense<0.000000e+00> : vector<2x8x8xf32>
    %190 = tpu.matmul %187, %188, %cst_94 {dimension_numbers = #tpu.dot_dimension_numbers<[2], [2], [1], [1], [0, 0, 0, 1, 1, 1], [0], [0]>} : vector<2x8x16xf32>, vector<2x8x16xf32>, vector<2x8x8xf32> -> vector<2x8x8xf32>
    "tpu.trace_stop"() : () -> ()
    %cst_95 = arith.constant 2.500000e-01 : f32
    %191 = vector.broadcast %cst_95 : f32 to vector<2x8x8xf32>
    %192 = arith.mulf %190, %191 : vector<2x8x8xf32>
    %193 = vector.broadcast %34 : vector<2x1x8xf32> to vector<2x8x8xf32>
    %194 = arith.addf %192, %193 : vector<2x8x8xf32>
    %cst_96 = arith.constant dense<0xFF800000> : vector<2x8xf32>
    %195 = vector.multi_reduction <maximumf>, %194, %cst_96 [2] : vector<2x8x8xf32> to vector<2x8xf32>
    %196 = vector.shape_cast %195 : vector<2x8xf32> to vector<2x8x1xf32>
    %197 = vector.broadcast %196 : vector<2x8x1xf32> to vector<2x8x8xf32>
    %198 = arith.subf %194, %197 : vector<2x8x8xf32>
    %199 = math.exp %198 : vector<2x8x8xf32>
    %cst_97 = arith.constant dense<0.000000e+00> : vector<2x8xf32>
    %200 = vector.multi_reduction <add>, %199, %cst_97 [2] : vector<2x8x8xf32> to vector<2x8xf32>
    %201 = vector.shape_cast %200 : vector<2x8xf32> to vector<2x8x1xf32>
    %202 = tpu.reciprocal %201 {approx = true} : vector<2x8x1xf32> -> vector<2x8x1xf32>
    %203 = vector.broadcast %202 : vector<2x8x1xf32> to vector<2x8x8xf32>
    %204 = arith.mulf %199, %203 : vector<2x8x8xf32>
    "tpu.trace_start"() <{level = 10 : i32, message = "bqk,bkd->bqd"}> : () -> ()
    %cst_98 = arith.constant dense<0.000000e+00> : vector<2x8x16xf32>
    %205 = tpu.matmul %204, %189, %cst_98 {dimension_numbers = #tpu.dot_dimension_numbers<[2], [1], [1], [2], [0, 0, 0, 1, 1, 2], [0], [0]>} : vector<2x8x8xf32>, vector<2x8x16xf32>, vector<2x8x16xf32> -> vector<2x8x16xf32>
    "tpu.trace_stop"() : () -> ()
    %206 = vector.shape_cast %205 : vector<2x8x16xf32> to vector<16x16xf32>
    %207 = vector.extract_strided_slice %184 {offsets = [0, 0], sizes = [16, 32], strides = [1, 1]} : vector<32x32xf32> to vector<16x32xf32>
    %cst_99 = arith.constant dense<0.000000e+00> : vector<16x32xf32>
    %208 = tpu.matmul %206, %207, %cst_99 {dimension_numbers = #tpu.dot_dimension_numbers<[1], [0], [0], [1], [0, 0, 1, 1], [], []>} : vector<16x16xf32>, vector<16x32xf32>, vector<16x32xf32> -> vector<16x32xf32>
    %209 = vector.broadcast %186 : vector<1x32xf32> to vector<16x32xf32>
    %210 = arith.addf %209, %208 : vector<16x32xf32>
    %211 = vector.extract_strided_slice %182 {offsets = [0, 0, 16], sizes = [2, 8, 16], strides = [1, 1, 1]} : vector<2x8x96xf32> to vector<2x8x16xf32>
    %212 = vector.extract_strided_slice %182 {offsets = [0, 0, 48], sizes = [2, 8, 16], strides = [1, 1, 1]} : vector<2x8x96xf32> to vector<2x8x16xf32>
    %213 = vector.extract_strided_slice %182 {offsets = [0, 0, 80], sizes = [2, 8, 16], strides = [1, 1, 1]} : vector<2x8x96xf32> to vector<2x8x16xf32>
    "tpu.trace_start"() <{level = 10 : i32, message = "bqd,bkd->bqk"}> : () -> ()
    %cst_100 = arith.constant dense<0.000000e+00> : vector<2x8x8xf32>
    %214 = tpu.matmul %211, %212, %cst_100 {dimension_numbers = #tpu.dot_dimension_numbers<[2], [2], [1], [1], [0, 0, 0, 1, 1, 1], [0], [0]>} : vector<2x8x16xf32>, vector<2x8x16xf32>, vector<2x8x8xf32> -> vector<2x8x8xf32>
    "tpu.trace_stop"() : () -> ()
    %cst_101 = arith.constant 2.500000e-01 : f32
    %215 = vector.broadcast %cst_101 : f32 to vector<2x8x8xf32>
    %216 = arith.mulf %214, %215 : vector<2x8x8xf32>
    %217 = vector.broadcast %34 : vector<2x1x8xf32> to vector<2x8x8xf32>
    %218 = arith.addf %216, %217 : vector<2x8x8xf32>
    %cst_102 = arith.constant dense<0xFF800000> : vector<2x8xf32>
    %219 = vector.multi_reduction <maximumf>, %218, %cst_102 [2] : vector<2x8x8xf32> to vector<2x8xf32>
    %220 = vector.shape_cast %219 : vector<2x8xf32> to vector<2x8x1xf32>
    %221 = vector.broadcast %220 : vector<2x8x1xf32> to vector<2x8x8xf32>
    %222 = arith.subf %218, %221 : vector<2x8x8xf32>
    %223 = math.exp %222 : vector<2x8x8xf32>
    %cst_103 = arith.constant dense<0.000000e+00> : vector<2x8xf32>
    %224 = vector.multi_reduction <add>, %223, %cst_103 [2] : vector<2x8x8xf32> to vector<2x8xf32>
    %225 = vector.shape_cast %224 : vector<2x8xf32> to vector<2x8x1xf32>
    %226 = tpu.reciprocal %225 {approx = true} : vector<2x8x1xf32> -> vector<2x8x1xf32>
    %227 = vector.broadcast %226 : vector<2x8x1xf32> to vector<2x8x8xf32>
    %228 = arith.mulf %223, %227 : vector<2x8x8xf32>
    "tpu.trace_start"() <{level = 10 : i32, message = "bqk,bkd->bqd"}> : () -> ()
    %cst_104 = arith.constant dense<0.000000e+00> : vector<2x8x16xf32>
    %229 = tpu.matmul %228, %213, %cst_104 {dimension_numbers = #tpu.dot_dimension_numbers<[2], [1], [1], [2], [0, 0, 0, 1, 1, 2], [0], [0]>} : vector<2x8x8xf32>, vector<2x8x16xf32>, vector<2x8x16xf32> -> vector<2x8x16xf32>
    "tpu.trace_stop"() : () -> ()
    %230 = vector.shape_cast %229 : vector<2x8x16xf32> to vector<16x16xf32>
    %231 = vector.extract_strided_slice %184 {offsets = [16, 0], sizes = [16, 32], strides = [1, 1]} : vector<32x32xf32> to vector<16x32xf32>
    %cst_105 = arith.constant dense<0.000000e+00> : vector<16x32xf32>
    %232 = tpu.matmul %230, %231, %cst_105 {dimension_numbers = #tpu.dot_dimension_numbers<[1], [0], [0], [1], [0, 0, 1, 1], [], []>} : vector<16x16xf32>, vector<16x32xf32>, vector<16x32xf32> -> vector<16x32xf32>
    %233 = arith.addf %210, %232 : vector<16x32xf32>
    %234 = arith.addf %233, %174 : vector<16x32xf32>
    %c1_106 = arith.constant 1 : index
    %c0_107 = arith.constant 0 : index
    %c0_108 = arith.constant 0 : index
    %235 = vector.load %arg10[%c1_106, %c0_107, %c0_108] : memref<2x1x32xf32, #tpu.memory_space<vmem>>, vector<1x1x32xf32>
    %236 = vector.shape_cast %235 : vector<1x1x32xf32> to vector<1x32xf32>
    %c1_109 = arith.constant 1 : index
    %c0_110 = arith.constant 0 : index
    %c0_111 = arith.constant 0 : index
    %237 = vector.load %arg11[%c1_109, %c0_110, %c0_111] : memref<2x1x32xf32, #tpu.memory_space<vmem>>, vector<1x1x32xf32>
    %238 = vector.shape_cast %237 : vector<1x1x32xf32> to vector<1x32xf32>
    %cst_112 = arith.constant dense<0.000000e+00> : vector<16xf32>
    %239 = vector.multi_reduction <add>, %234, %cst_112 [1] : vector<16x32xf32> to vector<16xf32>
    %240 = vector.shape_cast %239 : vector<16xf32> to vector<16x1xf32>
    %cst_113 = arith.constant 3.200000e+01 : f32
    %241 = vector.broadcast %cst_113 : f32 to vector<16x1xf32>
    %242 = arith.divf %240, %241 : vector<16x1xf32>
    %243 = vector.broadcast %242 : vector<16x1xf32> to vector<16x32xf32>
    %244 = arith.subf %234, %243 : vector<16x32xf32>
    %245 = arith.mulf %244, %244 : vector<16x32xf32>
    %cst_114 = arith.constant dense<0.000000e+00> : vector<16xf32>
    %246 = vector.multi_reduction <add>, %245, %cst_114 [1] : vector<16x32xf32> to vector<16xf32>
    %247 = vector.shape_cast %246 : vector<16xf32> to vector<16x1xf32>
    %cst_115 = arith.constant 3.200000e+01 : f32
    %248 = vector.broadcast %cst_115 : f32 to vector<16x1xf32>
    %249 = arith.divf %247, %248 : vector<16x1xf32>
    %250 = vector.broadcast %242 : vector<16x1xf32> to vector<16x32xf32>
    %251 = arith.subf %234, %250 : vector<16x32xf32>
    %cst_116 = arith.constant 9.99999996E-13 : f32
    %252 = vector.broadcast %cst_116 : f32 to vector<16x1xf32>
    %253 = arith.addf %249, %252 : vector<16x1xf32>
    %254 = math.rsqrt %253 : vector<16x1xf32>
    %255 = vector.broadcast %254 : vector<16x1xf32> to vector<16x32xf32>
    %256 = arith.mulf %251, %255 : vector<16x32xf32>
    %257 = vector.broadcast %236 : vector<1x32xf32> to vector<16x32xf32>
    %258 = arith.mulf %256, %257 : vector<16x32xf32>
    %259 = vector.broadcast %238 : vector<1x32xf32> to vector<16x32xf32>
    %260 = arith.addf %258, %259 : vector<16x32xf32>
    %c1_117 = arith.constant 1 : index
    %c0_118 = arith.constant 0 : index
    %c0_119 = arith.constant 0 : index
    %261 = vector.load %arg12[%c1_117, %c0_118, %c0_119] : memref<2x32x64xf32, #tpu.memory_space<vmem>>, vector<1x32x64xf32>
    %262 = vector.shape_cast %261 : vector<1x32x64xf32> to vector<32x64xf32>
    %cst_120 = arith.constant dense<0.000000e+00> : vector<16x64xf32>
    %263 = tpu.matmul %260, %262, %cst_120 {dimension_numbers = #tpu.dot_dimension_numbers<[1], [0], [0], [1], [0, 0, 1, 1], [], []>} : vector<16x32xf32>, vector<32x64xf32>, vector<16x64xf32> -> vector<16x64xf32>
    %c1_121 = arith.constant 1 : index
    %c0_122 = arith.constant 0 : index
    %c0_123 = arith.constant 0 : index
    %264 = vector.load %arg13[%c1_121, %c0_122, %c0_123] : memref<2x1x64xf32, #tpu.memory_space<vmem>>, vector<1x1x64xf32>
    %265 = vector.shape_cast %264 : vector<1x1x64xf32> to vector<1x64xf32>
    %266 = vector.broadcast %265 : vector<1x64xf32> to vector<16x64xf32>
    %267 = arith.addf %263, %266 : vector<16x64xf32>
    %cst_124 = arith.constant 5.000000e-01 : f32
    %268 = vector.broadcast %cst_124 : f32 to vector<16x64xf32>
    %269 = arith.mulf %268, %267 : vector<16x64xf32>
    %cst_125 = arith.constant 4.471500e-02 : f32
    %270 = vector.broadcast %cst_125 : f32 to vector<16x64xf32>
    %271 = arith.mulf %270, %267 : vector<16x64xf32>
    %272 = arith.mulf %271, %267 : vector<16x64xf32>
    %273 = arith.mulf %272, %267 : vector<16x64xf32>
    %274 = arith.addf %267, %273 : vector<16x64xf32>
    %cst_126 = arith.constant 0.797884583 : f32
    %275 = vector.broadcast %cst_126 : f32 to vector<16x64xf32>
    %276 = arith.mulf %275, %274 : vector<16x64xf32>
    %277 = math.tanh %276 : vector<16x64xf32>
    %cst_127 = arith.constant 1.000000e+00 : f32
    %278 = vector.broadcast %cst_127 : f32 to vector<16x64xf32>
    %279 = arith.addf %278, %277 : vector<16x64xf32>
    %280 = arith.mulf %269, %279 : vector<16x64xf32>
    %c1_128 = arith.constant 1 : index
    %c0_129 = arith.constant 0 : index
    %c0_130 = arith.constant 0 : index
    %281 = vector.load %arg14[%c1_128, %c0_129, %c0_130] : memref<2x64x32xf32, #tpu.memory_space<vmem>>, vector<1x64x32xf32>
    %282 = vector.shape_cast %281 : vector<1x64x32xf32> to vector<64x32xf32>
    %cst_131 = arith.constant dense<0.000000e+00> : vector<16x32xf32>
    %283 = tpu.matmul %280, %282, %cst_131 {dimension_numbers = #tpu.dot_dimension_numbers<[1], [0], [0], [1], [0, 0, 1, 1], [], []>} : vector<16x64xf32>, vector<64x32xf32>, vector<16x32xf32> -> vector<16x32xf32>
    %c1_132 = arith.constant 1 : index
    %c0_133 = arith.constant 0 : index
    %c0_134 = arith.constant 0 : index
    %284 = vector.load %arg15[%c1_132, %c0_133, %c0_134] : memref<2x1x32xf32, #tpu.memory_space<vmem>>, vector<1x1x32xf32>
    %285 = vector.shape_cast %284 : vector<1x1x32xf32> to vector<1x32xf32>
    %286 = vector.broadcast %285 : vector<1x32xf32> to vector<16x32xf32>
    %287 = arith.addf %283, %286 : vector<16x32xf32>
    %288 = arith.addf %287, %260 : vector<16x32xf32>
    %c1_135 = arith.constant 1 : index
    %c0_136 = arith.constant 0 : index
    %c0_137 = arith.constant 0 : index
    %289 = vector.load %arg16[%c1_135, %c0_136, %c0_137] : memref<2x1x32xf32, #tpu.memory_space<vmem>>, vector<1x1x32xf32>
    %290 = vector.shape_cast %289 : vector<1x1x32xf32> to vector<1x32xf32>
    %c1_138 = arith.constant 1 : index
    %c0_139 = arith.constant 0 : index
    %c0_140 = arith.constant 0 : index
    %291 = vector.load %arg17[%c1_138, %c0_139, %c0_140] : memref<2x1x32xf32, #tpu.memory_space<vmem>>, vector<1x1x32xf32>
    %292 = vector.shape_cast %291 : vector<1x1x32xf32> to vector<1x32xf32>
    %cst_141 = arith.constant dense<0.000000e+00> : vector<16xf32>
    %293 = vector.multi_reduction <add>, %288, %cst_141 [1] : vector<16x32xf32> to vector<16xf32>
    %294 = vector.shape_cast %293 : vector<16xf32> to vector<16x1xf32>
    %cst_142 = arith.constant 3.200000e+01 : f32
    %295 = vector.broadcast %cst_142 : f32 to vector<16x1xf32>
    %296 = arith.divf %294, %295 : vector<16x1xf32>
    %297 = vector.broadcast %296 : vector<16x1xf32> to vector<16x32xf32>
    %298 = arith.subf %288, %297 : vector<16x32xf32>
    %299 = arith.mulf %298, %298 : vector<16x32xf32>
    %cst_143 = arith.constant dense<0.000000e+00> : vector<16xf32>
    %300 = vector.multi_reduction <add>, %299, %cst_143 [1] : vector<16x32xf32> to vector<16xf32>
    %301 = vector.shape_cast %300 : vector<16xf32> to vector<16x1xf32>
    %cst_144 = arith.constant 3.200000e+01 : f32
    %302 = vector.broadcast %cst_144 : f32 to vector<16x1xf32>
    %303 = arith.divf %301, %302 : vector<16x1xf32>
    %304 = vector.broadcast %296 : vector<16x1xf32> to vector<16x32xf32>
    %305 = arith.subf %288, %304 : vector<16x32xf32>
    %cst_145 = arith.constant 9.99999996E-13 : f32
    %306 = vector.broadcast %cst_145 : f32 to vector<16x1xf32>
    %307 = arith.addf %303, %306 : vector<16x1xf32>
    %308 = math.rsqrt %307 : vector<16x1xf32>
    %309 = vector.broadcast %308 : vector<16x1xf32> to vector<16x32xf32>
    %310 = arith.mulf %305, %309 : vector<16x32xf32>
    %311 = vector.broadcast %290 : vector<1x32xf32> to vector<16x32xf32>
    %312 = arith.mulf %310, %311 : vector<16x32xf32>
    %313 = vector.broadcast %292 : vector<1x32xf32> to vector<16x32xf32>
    %314 = arith.addf %312, %313 : vector<16x32xf32>
    %315 = vector.shape_cast %314 : vector<16x32xf32> to vector<2x8x32xf32>
    %316 = vector.extract_strided_slice %315 {offsets = [0, 0, 0], sizes = [2, 1, 32], strides = [1, 1, 1]} : vector<2x8x32xf32> to vector<2x1x32xf32>
    %317 = vector.shape_cast %316 : vector<2x1x32xf32> to vector<2x32xf32>
    %c0_146 = arith.constant 0 : index
    %c0_147 = arith.constant 0 : index
    %318 = vector.load %arg18[%c0_146, %c0_147] : memref<32x32xf32, #tpu.memory_space<vmem>>, vector<32x32xf32>
    %cst_148 = arith.constant dense<0.000000e+00> : vector<2x32xf32>
    %319 = tpu.matmul %317, %318, %cst_148 {dimension_numbers = #tpu.dot_dimension_numbers<[1], [0], [0], [1], [0, 0, 1, 1], [], []>} : vector<2x32xf32>, vector<32x32xf32>, vector<2x32xf32> -> vector<2x32xf32>
    %c0_149 = arith.constant 0 : index
    %c0_150 = arith.constant 0 : index
    %320 = vector.load %arg19[%c0_149, %c0_150] : memref<1x32xf32, #tpu.memory_space<vmem>>, vector<1x32xf32>
    %321 = vector.broadcast %320 : vector<1x32xf32> to vector<2x32xf32>
    %322 = arith.addf %319, %321 : vector<2x32xf32>
    %323 = math.tanh %322 : vector<2x32xf32>
    %c0_151 = arith.constant 0 : index
    %c0_152 = arith.constant 0 : index
    %324 = vector.load %arg20[%c0_151, %c0_152] : memref<2x32xf32, #tpu.memory_space<vmem>>, vector<2x32xf32>
    tpu.vector_store %arg20[%c0_151, %c0_152], %323 {strides = array<i32>} : memref<2x32xf32, #tpu.memory_space<vmem>>, vector<2x32xf32>,
    return
  }
}

</mosaic_0001>

<llo_original>
// kernel: address_encoder_forward.1
$region0: #{address_encoder_forward.1}
  #allocation0 [shape = 'u32[]', space=smem, size = 0x4, offset = 0x4, fixed_abs, tag = 'smem constant byte address 0x4 - core index']
  #allocation1 [shape = 'u32[144,128]{1,0:T(1,128)}', space=vmem, size = 0x12000, scoped, tag = 'internal scratch']
  %s0 = inlined_call_operand.vmem [shape: f32[2,8,32], index: 0, kind: input, shape index: {}]
  %s1 = inlined_call_operand.vmem [shape: f32[8,32], index: 1, kind: input, shape index: {}]
  %s2 = inlined_call_operand.vmem [shape: f32[1,32], index: 2, kind: input, shape index: {}]
  %s3 = inlined_call_operand.vmem [shape: f32[1,32], index: 3, kind: input, shape index: {}]
  %s4 = inlined_call_operand.vmem [shape: f32[1,32], index: 4, kind: input, shape index: {}]
  %s5 = inlined_call_operand.vmem [shape: f32[2,1,8], index: 5, kind: input, shape index: {}]
  %s6 = inlined_call_operand.vmem [shape: f32[2,32,96], index: 6, kind: input, shape index: {}]
  %s7 = inlined_call_operand.vmem [shape: f32[2,1,96], index: 7, kind: input, shape index: {}]
  %s8 = inlined_call_operand.vmem [shape: f32[2,32,32], index: 8, kind: input, shape index: {}]
  %s9 = inlined_call_operand.vmem [shape: f32[2,1,32], index: 9, kind: input, shape index: {}]
  %s10 = inlined_call_operand.vmem [shape: f32[2,1,32], index: 10, kind: input, shape index: {}]
  %s11 = inlined_call_operand.vmem [shape: f32[2,1,32], index: 11, kind: input, shape index: {}]
  %s12 = inlined_call_operand.vmem [shape: f32[2,32,64], index: 12, kind: input, shape index: {}]
  %s13 = inlined_call_operand.vmem [shape: f32[2,1,64], index: 13, kind: input, shape index: {}]
  %s14 = inlined_call_operand.vmem [shape: f32[2,64,32], index: 14, kind: input, shape index: {}]
  %s15 = inlined_call_operand.vmem [shape: f32[2,1,32], index: 15, kind: input, shape index: {}]
  %s16 = inlined_call_operand.vmem [shape: f32[2,1,32], index: 16, kind: input, shape index: {}]
  %s17 = inlined_call_operand.vmem [shape: f32[2,1,32], index: 17, kind: input, shape index: {}]
  %s18 = inlined_call_operand.vmem [shape: f32[32,32], index: 18, kind: input, shape index: {}]
  %s19 = inlined_call_operand.vmem [shape: f32[1,32], index: 19, kind: input, shape index: {}]
  %s20 = inlined_call_operand.hbm [shape: f32[2,32], index: 20, kind: output, shape index: {}]
  %s21 = sld [smem:[#allocation0]]
  $region90: #{address_encoder_forward.1} parent=0
    _
  %s23 = ssub.s32 1, %s21
  %s24 = scalar_select 0, %s23, %s21
  $region1: #{address_encoder_forward.1} parent=0
    #allocation2 [shape = 'u8[1024]{0}', space=vmem, size = 0x400, scoped, tag = 'output window, operand 0, single buffered']
    #allocation3 [shape = 's32[1]{0}', space=sflag, size = 0x4, scoped, tag = 'scoped memory for address_encoder_forward.1']
    %25 = vsyncpa [#allocation3], 0
    // Predicated region
    $region2: #{address_encoder_forward.1} parent=1 // pred_check
      _
    $region3: #{address_encoder_forward.1} parent=1 // pred_check_branch
      %27 = sbr.rel (0) target = $region5
    $region4: #{address_encoder_forward.1} parent=1 // pred_region
      _
    $region5: #{address_encoder_forward.1} parent=1 // pred_fallthru
      _
    // Predicated region
    $region6: #{address_encoder_forward.1} parent=1 // pred_check
      _
    $region7: #{address_encoder_forward.1} parent=1 // pred_check_branch
      %29 = sbr.rel (0) target = $region9
    $region8: #{address_encoder_forward.1} parent=1 // pred_region
      _
    $region9: #{address_encoder_forward.1} parent=1 // pred_fallthru
      _
    // Predicated region
    $region10: #{address_encoder_forward.1} parent=1 // pred_check
      _
    $region11: #{address_encoder_forward.1} parent=1 // pred_check_branch
      %31 = sbr.rel (0) target = $region13
    $region12: #{address_encoder_forward.1} parent=1 // pred_region
      _
    $region13: #{address_encoder_forward.1} parent=1 // pred_fallthru
      _
    // Predicated region
    $region14: #{address_encoder_forward.1} parent=1 // pred_check
      _
    $region15: #{address_encoder_forward.1} parent=1 // pred_check_branch
      %33 = sbr.rel (0) target = $region17
    $region16: #{address_encoder_forward.1} parent=1 // pred_region
      _
    $region17: #{address_encoder_forward.1} parent=1 // pred_fallthru
      _
    // Predicated region
    $region18: #{address_encoder_forward.1} parent=1 // pred_check
      _
    $region19: #{address_encoder_forward.1} parent=1 // pred_check_branch
      %35 = sbr.rel (0) target = $region21
    $region20: #{address_encoder_forward.1} parent=1 // pred_region
      _
    $region21: #{address_encoder_forward.1} parent=1 // pred_fallthru
      _
    // Predicated region
    $region22: #{address_encoder_forward.1} parent=1 // pred_check
      _
    $region23: #{address_encoder_forward.1} parent=1 // pred_check_branch
      %37 = sbr.rel (0) target = $region25
    $region24: #{address_encoder_forward.1} parent=1 // pred_region
      _
    $region25: #{address_encoder_forward.1} parent=1 // pred_fallthru
      _
    // Predicated region
    $region26: #{address_encoder_forward.1} parent=1 // pred_check
      _
    $region27: #{address_encoder_forward.1} parent=1 // pred_check_branch
      %39 = sbr.rel (0) target = $region29
    $region28: #{address_encoder_forward.1} parent=1 // pred_region
      _
    $region29: #{address_encoder_forward.1} parent=1 // pred_fallthru
      _
    // Predicated region
    $region30: #{address_encoder_forward.1} parent=1 // pred_check
      _
    $region31: #{address_encoder_forward.1} parent=1 // pred_check_branch
      %41 = sbr.rel (0) target = $region33
    $region32: #{address_encoder_forward.1} parent=1 // pred_region
      _
    $region33: #{address_encoder_forward.1} parent=1 // pred_fallthru
      _
    // Predicated region
    $region34: #{address_encoder_forward.1} parent=1 // pred_check
      _
    $region35: #{address_encoder_forward.1} parent=1 // pred_check_branch
      %43 = sbr.rel (0) target = $region37
    $region36: #{address_encoder_forward.1} parent=1 // pred_region
      _
    $region37: #{address_encoder_forward.1} parent=1 // pred_fallthru
      _
    // Predicated region
    $region38: #{address_encoder_forward.1} parent=1 // pred_check
      _
    $region39: #{address_encoder_forward.1} parent=1 // pred_check_branch
      %45 = sbr.rel (0) target = $region41
    $region40: #{address_encoder_forward.1} parent=1 // pred_region
      _
    $region41: #{address_encoder_forward.1} parent=1 // pred_fallthru
      _
    // Predicated region
    $region42: #{address_encoder_forward.1} parent=1 // pred_check
      _
    $region43: #{address_encoder_forward.1} parent=1 // pred_check_branch
      %47 = sbr.rel (0) target = $region45
    $region44: #{address_encoder_forward.1} parent=1 // pred_region
      _
    $region45: #{address_encoder_forward.1} parent=1 // pred_fallthru
      _
    // Predicated region
    $region46: #{address_encoder_forward.1} parent=1 // pred_check
      _
    $region47: #{address_encoder_forward.1} parent=1 // pred_check_branch
      %49 = sbr.rel (0) target = $region49
    $region48: #{address_encoder_forward.1} parent=1 // pred_region
      _
    $region49: #{address_encoder_forward.1} parent=1 // pred_fallthru
      _
    // Predicated region
    $region50: #{address_encoder_forward.1} parent=1 // pred_check
      _
    $region51: #{address_encoder_forward.1} parent=1 // pred_check_branch
      %51 = sbr.rel (0) target = $region53
    $region52: #{address_encoder_forward.1} parent=1 // pred_region
      _
    $region53: #{address_encoder_forward.1} parent=1 // pred_fallthru
      _
    // Predicated region
    $region54: #{address_encoder_forward.1} parent=1 // pred_check
      _
    $region55: #{address_encoder_forward.1} parent=1 // pred_check_branch
      %53 = sbr.rel (0) target = $region57
    $region56: #{address_encoder_forward.1} parent=1 // pred_region
      _
    $region57: #{address_encoder_forward.1} parent=1 // pred_fallthru
      _
    // Predicated region
    $region58: #{address_encoder_forward.1} parent=1 // pred_check
      _
    $region59: #{address_encoder_forward.1} parent=1 // pred_check_branch
      %55 = sbr.rel (0) target = $region61
    $region60: #{address_encoder_forward.1} parent=1 // pred_region
      _
    $region61: #{address_encoder_forward.1} parent=1 // pred_fallthru
      _
    // Predicated region
    $region62: #{address_encoder_forward.1} parent=1 // pred_check
      _
    $region63: #{address_encoder_forward.1} parent=1 // pred_check_branch
      %57 = sbr.rel (0) target = $region65
    $region64: #{address_encoder_forward.1} parent=1 // pred_region
      _
    $region65: #{address_encoder_forward.1} parent=1 // pred_fallthru
      _
    // Predicated region
    $region66: #{address_encoder_forward.1} parent=1 // pred_check
      _
    $region67: #{address_encoder_forward.1} parent=1 // pred_check_branch
      %59 = sbr.rel (0) target = $region69
    $region68: #{address_encoder_forward.1} parent=1 // pred_region
      _
    $region69: #{address_encoder_forward.1} parent=1 // pred_fallthru
      _
    // Predicated region
    $region70: #{address_encoder_forward.1} parent=1 // pred_check
      _
    $region71: #{address_encoder_forward.1} parent=1 // pred_check_branch
      %61 = sbr.rel (0) target = $region73
    $region72: #{address_encoder_forward.1} parent=1 // pred_region
      _
    $region73: #{address_encoder_forward.1} parent=1 // pred_fallthru
      _
    // Predicated region
    $region74: #{address_encoder_forward.1} parent=1 // pred_check
      _
    $region75: #{address_encoder_forward.1} parent=1 // pred_check_branch
      %63 = sbr.rel (0) target = $region77
    $region76: #{address_encoder_forward.1} parent=1 // pred_region
      _
    $region77: #{address_encoder_forward.1} parent=1 // pred_fallthru
      _
    // Predicated region
    $region78: #{address_encoder_forward.1} parent=1 // pred_check
      _
    $region79: #{address_encoder_forward.1} parent=1 // pred_check_branch
      %65 = sbr.rel (0) target = $region81
    $region80: #{address_encoder_forward.1} parent=1 // pred_region
      _
    $region81: #{address_encoder_forward.1} parent=1 // pred_fallthru
      _
    %v66 = vld [vmem:[%s0] sm:$0xff]
    %v67 = vld [vmem:[%s0 + $0x8] sm:$0xff]
    %v68 = vld [vmem:[%s1] sm:$0xff]
    %v69 = vadd.f32 %v66, %v68
    %v70 = vadd.f32 %v67, %v68
    %v71 = vld [vmem:[%s2] sm:$0x1]
    %v73 = vlaneseq
    %v74 = vshrl.u32 %v73, 7
    %v75 = vsub.s32 0, %v74
    %v76 = vrot.slane %v71, %v75
    %v78 = vadd.f32 %v69, %v76
    %v79 = vadd.f32 %v70, %v76
    %v80 = vld [vmem:[%s3] sm:$0x1]
    %v81 = vld [vmem:[%s4] sm:$0x1]
    %vm82 = vcmask 261120
    %v83 = vsel %vm82, %v78, 0.0
    %84 = vadd.xlane.f32.xlu0 %v83
    %v85 = vpop.xlane.xlu0 %84
    %v86 = vsel %vm82, %v79, 0.0
    %87 = vadd.xlane.f32.xlu0 %v86
    %v88 = vpop.xlane.xlu0 %87
    %v89 = vrcp.pop 32.0
    %v90 = vmul.f32 %v85, %v89
    %v91 = vmul.f32 %v88, %v89
    %v92 = vsub.f32 %v78, %v90
    %v93 = vsub.f32 %v79, %v91
    %v94 = vmul.f32 %v92, %v92
    %v95 = vmul.f32 %v93, %v93
    %v96 = vsel %vm82, %v94, 0.0
    %97 = vadd.xlane.f32.xlu0 %v96
    %v98 = vpop.xlane.xlu0 %97
    %v99 = vsel %vm82, %v95, 0.0
    %100 = vadd.xlane.f32.xlu0 %v99
    %v101 = vpop.xlane.xlu0 %100
    %v102 = vmul.f32 %v98, %v89
    %v103 = vmul.f32 %v101, %v89
    %v104 = vadd.f32 %v102, 1e-12
    %v105 = vadd.f32 %v103, 1e-12
    %v106 = vrsqrt.pop %v104
    %v107 = vrsqrt.pop %v105
    %v108 = vmul.f32 %v92, %v106
    %v109 = vmul.f32 %v93, %v107
    %v111 = vlaneseq
    %v112 = vshrl.u32 %v111, 7
    %v113 = vsub.s32 0, %v112
    %v114 = vrot.slane %v80, %v113
    %v116 = vmul.f32 %v108, %v114
    %v117 = vmul.f32 %v109, %v114
    %v119 = vlaneseq
    %v120 = vshrl.u32 %v119, 7
    %v121 = vsub.s32 0, %v120
    %v122 = vrot.slane %v81, %v121
    %v124 = vadd.f32 %v116, %v122
    %v125 = vadd.f32 %v117, %v122
    %v126 = vld [vmem:[%s5] sm:$0x1]
    %v127 = vld [vmem:[%s5 + $0x1] sm:$0x1]
    %v128 = vld [vmem:[%s6] sm:$0xff]
    %v129 = vld [vmem:[%s6 + $0x8] sm:$0xff]
    %v130 = vld [vmem:[%s6 + $0x10] sm:$0xff]
    %v131 = vld [vmem:[%s6 + $0x18] sm:$0xff]
    %v132 = vld [vmem:[%s7] sm:$0x1]
    %v134 = vlaneseq
    %v135 = vshrl.u32 %v134, 7
    %v136 = vsub.s32 0, %v135
    %v137 = vrot.slane %v132, %v136
    %v140 = vsel %vm82, %v124, 0
    %v143 = vsel %vm82, %v125, 0
    %145 = vmatprep.subr.mxu0 0.0
    %146 = vmatpush1.msra.mxu0 %v128
    %147 = vmatprep.subr.mxu0 0.0
    %148 = vmatpush1.msra.mxu0 %v129
    %149 = vmatprep.subr.mxu0 0.0
    %150 = vmatpush1.msra.mxu0 %v130
    %151 = vmatprep.subr.mxu0 0.0
    %152 = vmatpush1.msra.mxu0 %v131
    %153 = vmatprep.subr.mxu0 0.0
    %154 = vmatpush1.msra.mxu0 0.0
    %155 = vmatprep.subr.mxu0 0.0
    %156 = vmatpush1.msra.mxu0 0.0
    %157 = vmatprep.subr.mxu0 0.0
    %158 = vmatpush1.msra.mxu0 0.0
    %159 = vmatprep.subr.mxu0 0.0
    %160 = vmatpush1.msra.mxu0 0.0
    %161 = vmatprep.subr.mxu0 0.0
    %162 = vmatpush1.msra.mxu0 0.0
    %163 = vmatprep.subr.mxu0 0.0
    %164 = vmatpush1.msra.mxu0 0.0
    %165 = vmatprep.subr.mxu0 0.0
    %166 = vmatpush1.msra.mxu0 0.0
    %167 = vmatprep.subr.mxu0 0.0
    %168 = vmatpush1.msra.mxu0 0.0
    %169 = vmatprep.subr.mxu0 0.0
    %170 = vmatpush1.msra.mxu0 0.0
    %171 = vmatprep.subr.mxu0 0.0
    %172 = vmatpush1.msra.mxu0 0.0
    %173 = vmatprep.subr.mxu0 0.0
    %174 = vmatpush1.msra.mxu0 0.0
    %175 = vmatprep.subr.mxu0 0.0
    %176 = vmatpush1.msra.mxu0 0.0
    %177 = vmatprep.subr.mxu0 0.0
    %178 = vmatpush1.msra.mxu0 0.0
    %179 = vmatprep.subr.mxu0 0.0
    %180 = vmatpush1.msra.mxu0 0.0
    %181 = vmatprep.subr.mxu0 0.0
    %182 = vmatpush1.msra.mxu0 0.0
    %183 = vmatprep.subr.mxu0 0.0
    %184 = vmatpush1.msra.mxu0 0.0
    %185 = vmatprep.subr.mxu0 0.0
    %186 = vmatpush1.msra.mxu0 0.0
    %187 = vmatprep.subr.mxu0 0.0
    %188 = vmatpush1.msra.mxu0 0.0
    %189 = vmatprep.subr.mxu0 0.0
    %190 = vmatpush1.msra.mxu0 0.0
    %191 = vmatprep.subr.mxu0 0.0
    %192 = vmatpush1.msra.mxu0 0.0
    %193 = vmatprep.subr.mxu0 0.0
    %194 = vmatpush1.msra.mxu0 0.0
    %195 = vmatprep.subr.mxu0 0.0
    %196 = vmatpush1.msra.mxu0 0.0
    %197 = vmatprep.subr.mxu0 0.0
    %198 = vmatpush1.msra.mxu0 0.0
    %199 = vmatprep.subr.mxu0 0.0
    %200 = vmatpush1.msra.mxu0 0.0
    %201 = vmatprep.subr.mxu0 0.0
    %202 = vmatpush1.msra.mxu0 0.0
    %203 = vmatprep.subr.mxu0 0.0
    %204 = vmatpush1.msra.mxu0 0.0
    %205 = vmatprep.subr.mxu0 0.0
    %206 = vmatpush1.msra.mxu0 0.0
    %207 = vmatprep.subr.mxu0 0.0
    %208 = vmatpush1.msra.mxu0 0.0
    %209 = vmatprep.mubr.f32.mxu0 0.0
    %210 = vmatmul.mubr.f32.gmra.mrb[0].mxu0 %v140
    %v211 = vpop.f32.mrb[0].mxu0
    %v212 = vadd.f32 %v137, %v211
    %v213 = vpop.f32.mrb[0].mxu0
    %214 = vmatprep.mubr.f32.mxu0 0.0
    %215 = vmatmul.mubr.f32.gmra.mrb[0].mxu0 %v143
    %v216 = vpop.f32.mrb[0].mxu0
    %v217 = vadd.f32 %v137, %v216
    %v218 = vpop.f32.mrb[0].mxu0
    %219 = vdwg.mxu0
    %v220 = vld [vmem:[%s8] sm:$0xff]
    %v221 = vld [vmem:[%s8 + $0x8] sm:$0xff]
    %v222 = vld [vmem:[%s8 + $0x10] sm:$0xff]
    %v223 = vld [vmem:[%s8 + $0x18] sm:$0xff]
    %v224 = vld [vmem:[%s9] sm:$0x1]
    %226 = vrot.lane.b32.xlu0 %v212, 96
    %v227 = vpop.permute.xlu0 %226
    %vm228 = vcmask 130048
    %v229 = vsel %vm228, %v212, 0
    %v231 = vsel %vm228, %v227, 0
    %233 = vmatprep.subr.mxu0 0.0
    %234 = vmatpush1.xpose.msra.mxu0 %v231
    %235 = vmatprep.subr.mxu0 0.0
    %236 = vmatpush1.xpose.msra.mxu0 0.0
    %237 = vmatprep.subr.mxu0 0.0
    %238 = vmatpush1.xpose.msra.mxu0 0.0
    %239 = vmatprep.subr.mxu0 0.0
    %240 = vmatpush1.xpose.msra.mxu0 0.0
    %241 = vmatprep.subr.mxu0 0.0
    %242 = vmatpush1.xpose.msra.mxu0 0.0
    %243 = vmatprep.subr.mxu0 0.0
    %244 = vmatpush1.xpose.msra.mxu0 0.0
    %245 = vmatprep.subr.mxu0 0.0
    %246 = vmatpush1.xpose.msra.mxu0 0.0
    %247 = vmatprep.subr.mxu0 0.0
    %248 = vmatpush1.xpose.msra.mxu0 0.0
    %249 = vmatprep.subr.mxu0 0.0
    %250 = vmatpush1.xpose.msra.mxu0 0.0
    %251 = vmatprep.subr.mxu0 0.0
    %252 = vmatpush1.xpose.msra.mxu0 0.0
    %253 = vmatprep.subr.mxu0 0.0
    %254 = vmatpush1.xpose.msra.mxu0 0.0
    %255 = vmatprep.subr.mxu0 0.0
    %256 = vmatpush1.xpose.msra.mxu0 0.0
    %257 = vmatprep.subr.mxu0 0.0
    %258 = vmatpush1.xpose.msra.mxu0 0.0
    %259 = vmatprep.subr.mxu0 0.0
    %260 = vmatpush1.xpose.msra.mxu0 0.0
    %261 = vmatprep.subr.mxu0 0.0
    %262 = vmatpush1.xpose.msra.mxu0 0.0
    %263 = vmatprep.subr.mxu0 0.0
    %264 = vmatpush1.xpose.msra.mxu0 0.0
    %265 = vmatprep.subr.mxu0 0.0
    %266 = vmatpush1.xpose.msra.mxu0 0.0
    %267 = vmatprep.subr.mxu0 0.0
    %268 = vmatpush1.xpose.msra.mxu0 0.0
    %269 = vmatprep.subr.mxu0 0.0
    %270 = vmatpush1.xpose.msra.mxu0 0.0
    %271 = vmatprep.subr.mxu0 0.0
    %272 = vmatpush1.xpose.msra.mxu0 0.0
    %273 = vmatprep.subr.mxu0 0.0
    %274 = vmatpush1.xpose.msra.mxu0 0.0
    %275 = vmatprep.subr.mxu0 0.0
    %276 = vmatpush1.xpose.msra.mxu0 0.0
    %277 = vmatprep.subr.mxu0 0.0
    %278 = vmatpush1.xpose.msra.mxu0 0.0
    %279 = vmatprep.subr.mxu0 0.0
    %280 = vmatpush1.xpose.msra.mxu0 0.0
    %281 = vmatprep.subr.mxu0 0.0
    %282 = vmatpush1.xpose.msra.mxu0 0.0
    %283 = vmatprep.subr.mxu0 0.0
    %284 = vmatpush1.xpose.msra.mxu0 0.0
    %285 = vmatprep.subr.mxu0 0.0
    %286 = vmatpush1.xpose.msra.mxu0 0.0
    %287 = vmatprep.subr.mxu0 0.0
    %288 = vmatpush1.xpose.msra.mxu0 0.0
    %289 = vmatprep.subr.mxu0 0.0
    %290 = vmatpush1.xpose.msra.mxu0 0.0
    %291 = vmatprep.subr.mxu0 0.0
    %292 = vmatpush1.xpose.msra.mxu0 0.0
    %293 = vmatprep.subr.mxu0 0.0
    %294 = vmatpush1.xpose.msra.mxu0 0.0
    %295 = vmatprep.subr.mxu0 0.0
    %296 = vmatpush1.xpose.msra.mxu0 0.0
    %297 = vmatprep.mubr.f32.mxu0 0.0
    %298 = vmatmul.mubr.f32.gmra.mrb[0].mxu0 %v229
    %v299 = vpop.f32.mrb[0].mxu0
    %v300 = vadd.f32 0.0, %v299
    %v301 = vpop.f32.mrb[0].mxu0
    %302 = vdwg.mxu0
    %304 = vrot.lane.b32.xlu0 %v217, 96
    %v305 = vpop.permute.xlu0 %304
    %v306 = vsel %vm228, %v217, 0
    %v308 = vsel %vm228, %v305, 0
    %310 = vmatprep.subr.mxu0 0.0
    %311 = vmatpush1.xpose.msra.mxu0 %v308
    %312 = vmatprep.subr.mxu0 0.0
    %313 = vmatpush1.xpose.msra.mxu0 0.0
    %314 = vmatprep.subr.mxu0 0.0
    %315 = vmatpush1.xpose.msra.mxu0 0.0
    %316 = vmatprep.subr.mxu0 0.0
    %317 = vmatpush1.xpose.msra.mxu0 0.0
    %318 = vmatprep.subr.mxu0 0.0
    %319 = vmatpush1.xpose.msra.mxu0 0.0
    %320 = vmatprep.subr.mxu0 0.0
    %321 = vmatpush1.xpose.msra.mxu0 0.0
    %322 = vmatprep.subr.mxu0 0.0
    %323 = vmatpush1.xpose.msra.mxu0 0.0
    %324 = vmatprep.subr.mxu0 0.0
    %325 = vmatpush1.xpose.msra.mxu0 0.0
    %326 = vmatprep.subr.mxu0 0.0
    %327 = vmatpush1.xpose.msra.mxu0 0.0
    %328 = vmatprep.subr.mxu0 0.0
    %329 = vmatpush1.xpose.msra.mxu0 0.0
    %330 = vmatprep.subr.mxu0 0.0
    %331 = vmatpush1.xpose.msra.mxu0 0.0
    %332 = vmatprep.subr.mxu0 0.0
    %333 = vmatpush1.xpose.msra.mxu0 0.0
    %334 = vmatprep.subr.mxu0 0.0
    %335 = vmatpush1.xpose.msra.mxu0 0.0
    %336 = vmatprep.subr.mxu0 0.0
    %337 = vmatpush1.xpose.msra.mxu0 0.0
    %338 = vmatprep.subr.mxu0 0.0
    %339 = vmatpush1.xpose.msra.mxu0 0.0
    %340 = vmatprep.subr.mxu0 0.0
    %341 = vmatpush1.xpose.msra.mxu0 0.0
    %342 = vmatprep.subr.mxu0 0.0
    %343 = vmatpush1.xpose.msra.mxu0 0.0
    %344 = vmatprep.subr.mxu0 0.0
    %345 = vmatpush1.xpose.msra.mxu0 0.0
    %346 = vmatprep.subr.mxu0 0.0
    %347 = vmatpush1.xpose.msra.mxu0 0.0
    %348 = vmatprep.subr.mxu0 0.0
    %349 = vmatpush1.xpose.msra.mxu0 0.0
    %350 = vmatprep.subr.mxu0 0.0
    %351 = vmatpush1.xpose.msra.mxu0 0.0
    %352 = vmatprep.subr.mxu0 0.0
    %353 = vmatpush1.xpose.msra.mxu0 0.0
    %354 = vmatprep.subr.mxu0 0.0
    %355 = vmatpush1.xpose.msra.mxu0 0.0
    %356 = vmatprep.subr.mxu0 0.0
    %357 = vmatpush1.xpose.msra.mxu0 0.0
    %358 = vmatprep.subr.mxu0 0.0
    %359 = vmatpush1.xpose.msra.mxu0 0.0
    %360 = vmatprep.subr.mxu0 0.0
    %361 = vmatpush1.xpose.msra.mxu0 0.0
    %362 = vmatprep.subr.mxu0 0.0
    %363 = vmatpush1.xpose.msra.mxu0 0.0
    %364 = vmatprep.subr.mxu0 0.0
    %365 = vmatpush1.xpose.msra.mxu0 0.0
    %366 = vmatprep.subr.mxu0 0.0
    %367 = vmatpush1.xpose.msra.mxu0 0.0
    %368 = vmatprep.subr.mxu0 0.0
    %369 = vmatpush1.xpose.msra.mxu0 0.0
    %370 = vmatprep.subr.mxu0 0.0
    %371 = vmatpush1.xpose.msra.mxu0 0.0
    %372 = vmatprep.subr.mxu0 0.0
    %373 = vmatpush1.xpose.msra.mxu0 0.0
    %374 = vmatprep.mubr.f32.mxu0 0.0
    %375 = vmatmul.mubr.f32.gmra.mrb[0].mxu0 %v306
    %v376 = vpop.f32.mrb[0].mxu0
    %v377 = vadd.f32 0.0, %v376
    %v378 = vpop.f32.mrb[0].mxu0
    %379 = vdwg.mxu0
    %v380 = vmul.f32 %v300, 0.25
    %v381 = vmul.f32 %v377, 0.25
    %v384 = vlaneseq
    %v385 = vshrl.u32 %v384, 7
    %v386 = vsub.s32 0, %v385
    %v387 = vrot.slane %v126, %v386
    %v388 = vlaneseq
    %v389 = vshrl.u32 %v388, 7
    %v390 = vsub.s32 0, %v389
    %v391 = vrot.slane %v127, %v390
    %v394 = vadd.f32 %v380, %v387
    %v395 = vadd.f32 %v381, %v391
    %vm396 = vcmask 64512
    %v397 = vsel %vm396, %v394, -inf
    %398 = vmax.xlane.f32.xlu0 %v397
    %v399 = vpop.xlane.xlu0 %398
    %v400 = vsel %vm396, %v395, -inf
    %401 = vmax.xlane.f32.xlu0 %v400
    %v402 = vpop.xlane.xlu0 %401
    %v403 = vsub.f32 %v394, %v399
    %v404 = vsub.f32 %v395, %v402
    %v405 = vmul.f32 %v403, 1.442695
    %v406 = vpow.pop %v405
    %v407 = vmul.f32 %v404, 1.442695
    %v408 = vpow.pop %v407
    %v409 = vsel %vm396, %v406, 0.0
    %410 = vadd.xlane.f32.xlu0 %v409
    %v411 = vpop.xlane.xlu0 %410
    %v412 = vsel %vm396, %v408, 0.0
    %413 = vadd.xlane.f32.xlu0 %v412
    %v414 = vpop.xlane.xlu0 %413
    %v415 = vrcp.pop %v411
    %v416 = vrcp.pop %v414
    %v417 = vmul.f32 %v406, %v415
    %v418 = vmul.f32 %v408, %v416
    %419 = vrot.lane.b32.xlu0 %v212, 64
    %v420 = vpop.permute.xlu0 %419
    %v423 = vsel %vm396, %v417, 0
    %425 = vmatprep.subr.mxu0 0.0
    %426 = vmatpush1.msra.mxu0 %v420
    %427 = vmatprep.subr.mxu0 0.0
    %428 = vmatpush1.msra.mxu0 0.0
    %429 = vmatprep.subr.mxu0 0.0
    %430 = vmatpush1.msra.mxu0 0.0
    %431 = vmatprep.subr.mxu0 0.0
    %432 = vmatpush1.msra.mxu0 0.0
    %433 = vmatprep.subr.mxu0 0.0
    %434 = vmatpush1.msra.mxu0 0.0
    %435 = vmatprep.subr.mxu0 0.0
    %436 = vmatpush1.msra.mxu0 0.0
    %437 = vmatprep.subr.mxu0 0.0
    %438 = vmatpush1.msra.mxu0 0.0
    %439 = vmatprep.subr.mxu0 0.0
    %440 = vmatpush1.msra.mxu0 0.0
    %441 = vmatprep.subr.mxu0 0.0
    %442 = vmatpush1.msra.mxu0 0.0
    %443 = vmatprep.subr.mxu0 0.0
    %444 = vmatpush1.msra.mxu0 0.0
    %445 = vmatprep.subr.mxu0 0.0
    %446 = vmatpush1.msra.mxu0 0.0
    %447 = vmatprep.subr.mxu0 0.0
    %448 = vmatpush1.msra.mxu0 0.0
    %449 = vmatprep.subr.mxu0 0.0
    %450 = vmatpush1.msra.mxu0 0.0
    %451 = vmatprep.subr.mxu0 0.0
    %452 = vmatpush1.msra.mxu0 0.0
    %453 = vmatprep.subr.mxu0 0.0
    %454 = vmatpush1.msra.mxu0 0.0
    %455 = vmatprep.subr.mxu0 0.0
    %456 = vmatpush1.msra.mxu0 0.0
    %457 = vmatprep.subr.mxu0 0.0
    %458 = vmatpush1.msra.mxu0 0.0
    %459 = vmatprep.subr.mxu0 0.0
    %460 = vmatpush1.msra.mxu0 0.0
    %461 = vmatprep.subr.mxu0 0.0
    %462 = vmatpush1.msra.mxu0 0.0
    %463 = vmatprep.subr.mxu0 0.0
    %464 = vmatpush1.msra.mxu0 0.0
    %465 = vmatprep.subr.mxu0 0.0
    %466 = vmatpush1.msra.mxu0 0.0
    %467 = vmatprep.subr.mxu0 0.0
    %468 = vmatpush1.msra.mxu0 0.0
    %469 = vmatprep.subr.mxu0 0.0
    %470 = vmatpush1.msra.mxu0 0.0
    %471 = vmatprep.subr.mxu0 0.0
    %472 = vmatpush1.msra.mxu0 0.0
    %473 = vmatprep.subr.mxu0 0.0
    %474 = vmatpush1.msra.mxu0 0.0
    %475 = vmatprep.subr.mxu0 0.0
    %476 = vmatpush1.msra.mxu0 0.0
    %477 = vmatprep.subr.mxu0 0.0
    %478 = vmatpush1.msra.mxu0 0.0
    %479 = vmatprep.subr.mxu0 0.0
    %480 = vmatpush1.msra.mxu0 0.0
    %481 = vmatprep.subr.mxu0 0.0
    %482 = vmatpush1.msra.mxu0 0.0
    %483 = vmatprep.subr.mxu0 0.0
    %484 = vmatpush1.msra.mxu0 0.0
    %485 = vmatprep.subr.mxu0 0.0
    %486 = vmatpush1.msra.mxu0 0.0
    %487 = vmatprep.subr.mxu0 0.0
    %488 = vmatpush1.msra.mxu0 0.0
    %489 = vmatprep.mubr.f32.mxu0 0.0
    %490 = vmatmul.mubr.f32.gmra.mrb[0].mxu0 %v423
    %v491 = vpop.f32.mrb[0].mxu0
    %v492 = vadd.f32 0.0, %v491
    %v493 = vpop.f32.mrb[0].mxu0
    %494 = vdwg.mxu0
    %495 = vrot.lane.b32.xlu0 %v217, 64
    %v496 = vpop.permute.xlu0 %495
    %v499 = vsel %vm396, %v418, 0
    %501 = vmatprep.subr.mxu0 0.0
    %502 = vmatpush1.msra.mxu0 %v496
    %503 = vmatprep.subr.mxu0 0.0
    %504 = vmatpush1.msra.mxu0 0.0
    %505 = vmatprep.subr.mxu0 0.0
    %506 = vmatpush1.msra.mxu0 0.0
    %507 = vmatprep.subr.mxu0 0.0
    %508 = vmatpush1.msra.mxu0 0.0
    %509 = vmatprep.subr.mxu0 0.0
    %510 = vmatpush1.msra.mxu0 0.0
    %511 = vmatprep.subr.mxu0 0.0
    %512 = vmatpush1.msra.mxu0 0.0
    %513 = vmatprep.subr.mxu0 0.0
    %514 = vmatpush1.msra.mxu0 0.0
    %515 = vmatprep.subr.mxu0 0.0
    %516 = vmatpush1.msra.mxu0 0.0
    %517 = vmatprep.subr.mxu0 0.0
    %518 = vmatpush1.msra.mxu0 0.0
    %519 = vmatprep.subr.mxu0 0.0
    %520 = vmatpush1.msra.mxu0 0.0
    %521 = vmatprep.subr.mxu0 0.0
    %522 = vmatpush1.msra.mxu0 0.0
    %523 = vmatprep.subr.mxu0 0.0
    %524 = vmatpush1.msra.mxu0 0.0
    %525 = vmatprep.subr.mxu0 0.0
    %526 = vmatpush1.msra.mxu0 0.0
    %527 = vmatprep.subr.mxu0 0.0
    %528 = vmatpush1.msra.mxu0 0.0
    %529 = vmatprep.subr.mxu0 0.0
    %530 = vmatpush1.msra.mxu0 0.0
    %531 = vmatprep.subr.mxu0 0.0
    %532 = vmatpush1.msra.mxu0 0.0
    %533 = vmatprep.subr.mxu0 0.0
    %534 = vmatpush1.msra.mxu0 0.0
    %535 = vmatprep.subr.mxu0 0.0
    %536 = vmatpush1.msra.mxu0 0.0
    %537 = vmatprep.subr.mxu0 0.0
    %538 = vmatpush1.msra.mxu0 0.0
    %539 = vmatprep.subr.mxu0 0.0
    %540 = vmatpush1.msra.mxu0 0.0
    %541 = vmatprep.subr.mxu0 0.0
    %542 = vmatpush1.msra.mxu0 0.0
    %543 = vmatprep.subr.mxu0 0.0
    %544 = vmatpush1.msra.mxu0 0.0
    %545 = vmatprep.subr.mxu0 0.0
    %546 = vmatpush1.msra.mxu0 0.0
    %547 = vmatprep.subr.mxu0 0.0
    %548 = vmatpush1.msra.mxu0 0.0
    %549 = vmatprep.subr.mxu0 0.0
    %550 = vmatpush1.msra.mxu0 0.0
    %551 = vmatprep.subr.mxu0 0.0
    %552 = vmatpush1.msra.mxu0 0.0
    %553 = vmatprep.subr.mxu0 0.0
    %554 = vmatpush1.msra.mxu0 0.0
    %555 = vmatprep.subr.mxu0 0.0
    %556 = vmatpush1.msra.mxu0 0.0
    %557 = vmatprep.subr.mxu0 0.0
    %558 = vmatpush1.msra.mxu0 0.0
    %559 = vmatprep.subr.mxu0 0.0
    %560 = vmatpush1.msra.mxu0 0.0
    %561 = vmatprep.subr.mxu0 0.0
    %562 = vmatpush1.msra.mxu0 0.0
    %563 = vmatprep.subr.mxu0 0.0
    %564 = vmatpush1.msra.mxu0 0.0
    %565 = vmatprep.mubr.f32.mxu0 0.0
    %566 = vmatmul.mubr.f32.gmra.mrb[0].mxu0 %v499
    %v567 = vpop.f32.mrb[0].mxu0
    %v568 = vadd.f32 0.0, %v567
    %v569 = vpop.f32.mrb[0].mxu0
    %570 = vdwg.mxu0
    %v572 = vsel %vm228, %v492, 0
    %v575 = vsel %vm228, %v568, 0
    %577 = vmatprep.subr.mxu0 0.0
    %578 = vmatpush1.msra.mxu0 %v220
    %579 = vmatprep.subr.mxu0 0.0
    %580 = vmatpush1.msra.mxu0 %v221
    %581 = vmatprep.subr.mxu0 0.0
    %582 = vmatpush1.msra.mxu0 0.0
    %583 = vmatprep.subr.mxu0 0.0
    %584 = vmatpush1.msra.mxu0 0.0
    %585 = vmatprep.subr.mxu0 0.0
    %586 = vmatpush1.msra.mxu0 0.0
    %587 = vmatprep.subr.mxu0 0.0
    %588 = vmatpush1.msra.mxu0 0.0
    %589 = vmatprep.subr.mxu0 0.0
    %590 = vmatpush1.msra.mxu0 0.0
    %591 = vmatprep.subr.mxu0 0.0
    %592 = vmatpush1.msra.mxu0 0.0
    %593 = vmatprep.subr.mxu0 0.0
    %594 = vmatpush1.msra.mxu0 0.0
    %595 = vmatprep.subr.mxu0 0.0
    %596 = vmatpush1.msra.mxu0 0.0
    %597 = vmatprep.subr.mxu0 0.0
    %598 = vmatpush1.msra.mxu0 0.0
    %599 = vmatprep.subr.mxu0 0.0
    %600 = vmatpush1.msra.mxu0 0.0
    %601 = vmatprep.subr.mxu0 0.0
    %602 = vmatpush1.msra.mxu0 0.0
    %603 = vmatprep.subr.mxu0 0.0
    %604 = vmatpush1.msra.mxu0 0.0
    %605 = vmatprep.subr.mxu0 0.0
    %606 = vmatpush1.msra.mxu0 0.0
    %607 = vmatprep.subr.mxu0 0.0
    %608 = vmatpush1.msra.mxu0 0.0
    %609 = vmatprep.subr.mxu0 0.0
    %610 = vmatpush1.msra.mxu0 0.0
    %611 = vmatprep.subr.mxu0 0.0
    %612 = vmatpush1.msra.mxu0 0.0
    %613 = vmatprep.subr.mxu0 0.0
    %614 = vmatpush1.msra.mxu0 0.0
    %615 = vmatprep.subr.mxu0 0.0
    %616 = vmatpush1.msra.mxu0 0.0
    %617 = vmatprep.subr.mxu0 0.0
    %618 = vmatpush1.msra.mxu0 0.0
    %619 = vmatprep.subr.mxu0 0.0
    %620 = vmatpush1.msra.mxu0 0.0
    %621 = vmatprep.subr.mxu0 0.0
    %622 = vmatpush1.msra.mxu0 0.0
    %623 = vmatprep.subr.mxu0 0.0
    %624 = vmatpush1.msra.mxu0 0.0
    %625 = vmatprep.subr.mxu0 0.0
    %626 = vmatpush1.msra.mxu0 0.0
    %627 = vmatprep.subr.mxu0 0.0
    %628 = vmatpush1.msra.mxu0 0.0
    %629 = vmatprep.subr.mxu0 0.0
    %630 = vmatpush1.msra.mxu0 0.0
    %631 = vmatprep.subr.mxu0 0.0
    %632 = vmatpush1.msra.mxu0 0.0
    %633 = vmatprep.subr.mxu0 0.0
    %634 = vmatpush1.msra.mxu0 0.0
    %635 = vmatprep.subr.mxu0 0.0
    %636 = vmatpush1.msra.mxu0 0.0
    %637 = vmatprep.subr.mxu0 0.0
    %638 = vmatpush1.msra.mxu0 0.0
    %639 = vmatprep.subr.mxu0 0.0
    %640 = vmatpush1.msra.mxu0 0.0
    %641 = vmatprep.mubr.f32.mxu0 0.0
    %642 = vmatmul.mubr.f32.gmra.mrb[0].mxu0 %v572
    %v643 = vpop.f32.mrb[0].mxu0
    %v644 = vadd.f32 0.0, %v643
    %v645 = vpop.f32.mrb[0].mxu0
    %646 = vmatprep.mubr.f32.mxu0 0.0
    %647 = vmatmul.mubr.f32.gmra.mrb[0].mxu0 %v575
    %v648 = vpop.f32.mrb[0].mxu0
    %v649 = vadd.f32 0.0, %v648
    %v650 = vpop.f32.mrb[0].mxu0
    %651 = vdwg.mxu0
    %v653 = vlaneseq
    %v654 = vshrl.u32 %v653, 7
    %v655 = vsub.s32 0, %v654
    %v656 = vrot.slane %v224, %v655
    %v658 = vadd.f32 %v656, %v644
    %v659 = vadd.f32 %v656, %v649
    %660 = vrot.lane.b32.xlu0 %v212, 112
    %v661 = vpop.permute.xlu0 %660
    %662 = vrot.lane.b32.xlu0 %v212, 80
    %v663 = vpop.permute.xlu0 %662
    %v664 = vsel %vm228, %v661, 0
    %v666 = vsel %vm228, %v663, 0
    %668 = vmatprep.subr.mxu0 0.0
    %669 = vmatpush1.xpose.msra.mxu0 %v666
    %670 = vmatprep.subr.mxu0 0.0
    %671 = vmatpush1.xpose.msra.mxu0 0.0
    %672 = vmatprep.subr.mxu0 0.0
    %673 = vmatpush1.xpose.msra.mxu0 0.0
    %674 = vmatprep.subr.mxu0 0.0
    %675 = vmatpush1.xpose.msra.mxu0 0.0
    %676 = vmatprep.subr.mxu0 0.0
    %677 = vmatpush1.xpose.msra.mxu0 0.0
    %678 = vmatprep.subr.mxu0 0.0
    %679 = vmatpush1.xpose.msra.mxu0 0.0
    %680 = vmatprep.subr.mxu0 0.0
    %681 = vmatpush1.xpose.msra.mxu0 0.0
    %682 = vmatprep.subr.mxu0 0.0
    %683 = vmatpush1.xpose.msra.mxu0 0.0
    %684 = vmatprep.subr.mxu0 0.0
    %685 = vmatpush1.xpose.msra.mxu0 0.0
    %686 = vmatprep.subr.mxu0 0.0
    %687 = vmatpush1.xpose.msra.mxu0 0.0
    %688 = vmatprep.subr.mxu0 0.0
    %689 = vmatpush1.xpose.msra.mxu0 0.0
    %690 = vmatprep.subr.mxu0 0.0
    %691 = vmatpush1.xpose.msra.mxu0 0.0
    %692 = vmatprep.subr.mxu0 0.0
    %693 = vmatpush1.xpose.msra.mxu0 0.0
    %694 = vmatprep.subr.mxu0 0.0
    %695 = vmatpush1.xpose.msra.mxu0 0.0
    %696 = vmatprep.subr.mxu0 0.0
    %697 = vmatpush1.xpose.msra.mxu0 0.0
    %698 = vmatprep.subr.mxu0 0.0
    %699 = vmatpush1.xpose.msra.mxu0 0.0
    %700 = vmatprep.subr.mxu0 0.0
    %701 = vmatpush1.xpose.msra.mxu0 0.0
    %702 = vmatprep.subr.mxu0 0.0
    %703 = vmatpush1.xpose.msra.mxu0 0.0
    %704 = vmatprep.subr.mxu0 0.0
    %705 = vmatpush1.xpose.msra.mxu0 0.0
    %706 = vmatprep.subr.mxu0 0.0
    %707 = vmatpush1.xpose.msra.mxu0 0.0
    %708 = vmatprep.subr.mxu0 0.0
    %709 = vmatpush1.xpose.msra.mxu0 0.0
    %710 = vmatprep.subr.mxu0 0.0
    %711 = vmatpush1.xpose.msra.mxu0 0.0
    %712 = vmatprep.subr.mxu0 0.0
    %713 = vmatpush1.xpose.msra.mxu0 0.0
    %714 = vmatprep.subr.mxu0 0.0
    %715 = vmatpush1.xpose.msra.mxu0 0.0
    %716 = vmatprep.subr.mxu0 0.0
    %717 = vmatpush1.xpose.msra.mxu0 0.0
    %718 = vmatprep.subr.mxu0 0.0
    %719 = vmatpush1.xpose.msra.mxu0 0.0
    %720 = vmatprep.subr.mxu0 0.0
    %721 = vmatpush1.xpose.msra.mxu0 0.0
    %722 = vmatprep.subr.mxu0 0.0
    %723 = vmatpush1.xpose.msra.mxu0 0.0
    %724 = vmatprep.subr.mxu0 0.0
    %725 = vmatpush1.xpose.msra.mxu0 0.0
    %726 = vmatprep.subr.mxu0 0.0
    %727 = vmatpush1.xpose.msra.mxu0 0.0
    %728 = vmatprep.subr.mxu0 0.0
    %729 = vmatpush1.xpose.msra.mxu0 0.0
    %730 = vmatprep.subr.mxu0 0.0
    %731 = vmatpush1.xpose.msra.mxu0 0.0
    %732 = vmatprep.mubr.f32.mxu0 0.0
    %733 = vmatmul.mubr.f32.gmra.mrb[0].mxu0 %v664
    %v734 = vpop.f32.mrb[0].mxu0
    %v735 = vadd.f32 0.0, %v734
    %v736 = vpop.f32.mrb[0].mxu0
    %737 = vdwg.mxu0
    %738 = vrot.lane.b32.xlu0 %v217, 112
    %v739 = vpop.permute.xlu0 %738
    %740 = vrot.lane.b32.xlu0 %v217, 80
    %v741 = vpop.permute.xlu0 %740
    %v742 = vsel %vm228, %v739, 0
    %v744 = vsel %vm228, %v741, 0
    %746 = vmatprep.subr.mxu0 0.0
    %747 = vmatpush1.xpose.msra.mxu0 %v744
    %748 = vmatprep.subr.mxu0 0.0
    %749 = vmatpush1.xpose.msra.mxu0 0.0
    %750 = vmatprep.subr.mxu0 0.0
    %751 = vmatpush1.xpose.msra.mxu0 0.0
    %752 = vmatprep.subr.mxu0 0.0
    %753 = vmatpush1.xpose.msra.mxu0 0.0
    %754 = vmatprep.subr.mxu0 0.0
    %755 = vmatpush1.xpose.msra.mxu0 0.0
    %756 = vmatprep.subr.mxu0 0.0
    %757 = vmatpush1.xpose.msra.mxu0 0.0
    %758 = vmatprep.subr.mxu0 0.0
    %759 = vmatpush1.xpose.msra.mxu0 0.0
    %760 = vmatprep.subr.mxu0 0.0
    %761 = vmatpush1.xpose.msra.mxu0 0.0
    %762 = vmatprep.subr.mxu0 0.0
    %763 = vmatpush1.xpose.msra.mxu0 0.0
    %764 = vmatprep.subr.mxu0 0.0
    %765 = vmatpush1.xpose.msra.mxu0 0.0
    %766 = vmatprep.subr.mxu0 0.0
    %767 = vmatpush1.xpose.msra.mxu0 0.0
    %768 = vmatprep.subr.mxu0 0.0
    %769 = vmatpush1.xpose.msra.mxu0 0.0
    %770 = vmatprep.subr.mxu0 0.0
    %771 = vmatpush1.xpose.msra.mxu0 0.0
    %772 = vmatprep.subr.mxu0 0.0
    %773 = vmatpush1.xpose.msra.mxu0 0.0
    %774 = vmatprep.subr.mxu0 0.0
    %775 = vmatpush1.xpose.msra.mxu0 0.0
    %776 = vmatprep.subr.mxu0 0.0
    %777 = vmatpush1.xpose.msra.mxu0 0.0
    %778 = vmatprep.subr.mxu0 0.0
    %779 = vmatpush1.xpose.msra.mxu0 0.0
    %780 = vmatprep.subr.mxu0 0.0
    %781 = vmatpush1.xpose.msra.mxu0 0.0
    %782 = vmatprep.subr.mxu0 0.0
    %783 = vmatpush1.xpose.msra.mxu0 0.0
    %784 = vmatprep.subr.mxu0 0.0
    %785 = vmatpush1.xpose.msra.mxu0 0.0
    %786 = vmatprep.subr.mxu0 0.0
    %787 = vmatpush1.xpose.msra.mxu0 0.0
    %788 = vmatprep.subr.mxu0 0.0
    %789 = vmatpush1.xpose.msra.mxu0 0.0
    %790 = vmatprep.subr.mxu0 0.0
    %791 = vmatpush1.xpose.msra.mxu0 0.0
    %792 = vmatprep.subr.mxu0 0.0
    %793 = vmatpush1.xpose.msra.mxu0 0.0
    %794 = vmatprep.subr.mxu0 0.0
    %795 = vmatpush1.xpose.msra.mxu0 0.0
    %796 = vmatprep.subr.mxu0 0.0
    %797 = vmatpush1.xpose.msra.mxu0 0.0
    %798 = vmatprep.subr.mxu0 0.0
    %799 = vmatpush1.xpose.msra.mxu0 0.0
    %800 = vmatprep.subr.mxu0 0.0
    %801 = vmatpush1.xpose.msra.mxu0 0.0
    %802 = vmatprep.subr.mxu0 0.0
    %803 = vmatpush1.xpose.msra.mxu0 0.0
    %804 = vmatprep.subr.mxu0 0.0
    %805 = vmatpush1.xpose.msra.mxu0 0.0
    %806 = vmatprep.subr.mxu0 0.0
    %807 = vmatpush1.xpose.msra.mxu0 0.0
    %808 = vmatprep.subr.mxu0 0.0
    %809 = vmatpush1.xpose.msra.mxu0 0.0
    %810 = vmatprep.mubr.f32.mxu0 0.0
    %811 = vmatmul.mubr.f32.gmra.mrb[0].mxu0 %v742
    %v812 = vpop.f32.mrb[0].mxu0
    %v813 = vadd.f32 0.0, %v812
    %v814 = vpop.f32.mrb[0].mxu0
    %815 = vdwg.mxu0
    %v816 = vmul.f32 %v735, 0.25
    %v817 = vmul.f32 %v813, 0.25
    %v818 = vadd.f32 %v816, %v387
    %v819 = vadd.f32 %v817, %v391
    %v820 = vsel %vm396, %v818, -inf
    %821 = vmax.xlane.f32.xlu0 %v820
    %v822 = vpop.xlane.xlu0 %821
    %v823 = vsel %vm396, %v819, -inf
    %824 = vmax.xlane.f32.xlu0 %v823
    %v825 = vpop.xlane.xlu0 %824
    %v826 = vsub.f32 %v818, %v822
    %v827 = vsub.f32 %v819, %v825
    %v828 = vmul.f32 %v826, 1.442695
    %v829 = vpow.pop %v828
    %v830 = vmul.f32 %v827, 1.442695
    %v831 = vpow.pop %v830
    %v832 = vsel %vm396, %v829, 0.0
    %833 = vadd.xlane.f32.xlu0 %v832
    %v834 = vpop.xlane.xlu0 %833
    %v835 = vsel %vm396, %v831, 0.0
    %836 = vadd.xlane.f32.xlu0 %v835
    %v837 = vpop.xlane.xlu0 %836
    %v838 = vrcp.pop %v834
    %v839 = vrcp.pop %v837
    %v840 = vmul.f32 %v829, %v838
    %v841 = vmul.f32 %v831, %v839
    %842 = vrot.lane.b32.xlu0 %v212, 48
    %v843 = vpop.permute.xlu0 %842
    %v846 = vsel %vm396, %v840, 0
    %848 = vmatprep.subr.mxu0 0.0
    %849 = vmatpush1.msra.mxu0 %v843
    %850 = vmatprep.subr.mxu0 0.0
    %851 = vmatpush1.msra.mxu0 0.0
    %852 = vmatprep.subr.mxu0 0.0
    %853 = vmatpush1.msra.mxu0 0.0
    %854 = vmatprep.subr.mxu0 0.0
    %855 = vmatpush1.msra.mxu0 0.0
    %856 = vmatprep.subr.mxu0 0.0
    %857 = vmatpush1.msra.mxu0 0.0
    %858 = vmatprep.subr.mxu0 0.0
    %859 = vmatpush1.msra.mxu0 0.0
    %860 = vmatprep.subr.mxu0 0.0
    %861 = vmatpush1.msra.mxu0 0.0
    %862 = vmatprep.subr.mxu0 0.0
    %863 = vmatpush1.msra.mxu0 0.0
    %864 = vmatprep.subr.mxu0 0.0
    %865 = vmatpush1.msra.mxu0 0.0
    %866 = vmatprep.subr.mxu0 0.0
    %867 = vmatpush1.msra.mxu0 0.0
    %868 = vmatprep.subr.mxu0 0.0
    %869 = vmatpush1.msra.mxu0 0.0
    %870 = vmatprep.subr.mxu0 0.0
    %871 = vmatpush1.msra.mxu0 0.0
    %872 = vmatprep.subr.mxu0 0.0
    %873 = vmatpush1.msra.mxu0 0.0
    %874 = vmatprep.subr.mxu0 0.0
    %875 = vmatpush1.msra.mxu0 0.0
    %876 = vmatprep.subr.mxu0 0.0
    %877 = vmatpush1.msra.mxu0 0.0
    %878 = vmatprep.subr.mxu0 0.0
    %879 = vmatpush1.msra.mxu0 0.0
    %880 = vmatprep.subr.mxu0 0.0
    %881 = vmatpush1.msra.mxu0 0.0
    %882 = vmatprep.subr.mxu0 0.0
    %883 = vmatpush1.msra.mxu0 0.0
    %884 = vmatprep.subr.mxu0 0.0
    %885 = vmatpush1.msra.mxu0 0.0
    %886 = vmatprep.subr.mxu0 0.0
    %887 = vmatpush1.msra.mxu0 0.0
    %888 = vmatprep.subr.mxu0 0.0
    %889 = vmatpush1.msra.mxu0 0.0
    %890 = vmatprep.subr.mxu0 0.0
    %891 = vmatpush1.msra.mxu0 0.0
    %892 = vmatprep.subr.mxu0 0.0
    %893 = vmatpush1.msra.mxu0 0.0
    %894 = vmatprep.subr.mxu0 0.0
    %895 = vmatpush1.msra.mxu0 0.0
    %896 = vmatprep.subr.mxu0 0.0
    %897 = vmatpush1.msra.mxu0 0.0
    %898 = vmatprep.subr.mxu0 0.0
    %899 = vmatpush1.msra.mxu0 0.0
    %900 = vmatprep.subr.mxu0 0.0
    %901 = vmatpush1.msra.mxu0 0.0
    %902 = vmatprep.subr.mxu0 0.0
    %903 = vmatpush1.msra.mxu0 0.0
    %904 = vmatprep.subr.mxu0 0.0
    %905 = vmatpush1.msra.mxu0 0.0
    %906 = vmatprep.subr.mxu0 0.0
    %907 = vmatpush1.msra.mxu0 0.0
    %908 = vmatprep.subr.mxu0 0.0
    %909 = vmatpush1.msra.mxu0 0.0
    %910 = vmatprep.subr.mxu0 0.0
    %911 = vmatpush1.msra.mxu0 0.0
    %912 = vmatprep.mubr.f32.mxu0 0.0
    %913 = vmatmul.mubr.f32.gmra.mrb[0].mxu0 %v846
    %v914 = vpop.f32.mrb[0].mxu0
    %v915 = vadd.f32 0.0, %v914
    %v916 = vpop.f32.mrb[0].mxu0
    %917 = vdwg.mxu0
    %918 = vrot.lane.b32.xlu0 %v217, 48
    %v919 = vpop.permute.xlu0 %918
    %v922 = vsel %vm396, %v841, 0
    %924 = vmatprep.subr.mxu0 0.0
    %925 = vmatpush1.msra.mxu0 %v919
    %926 = vmatprep.subr.mxu0 0.0
    %927 = vmatpush1.msra.mxu0 0.0
    %928 = vmatprep.subr.mxu0 0.0
    %929 = vmatpush1.msra.mxu0 0.0
    %930 = vmatprep.subr.mxu0 0.0
    %931 = vmatpush1.msra.mxu0 0.0
    %932 = vmatprep.subr.mxu0 0.0
    %933 = vmatpush1.msra.mxu0 0.0
    %934 = vmatprep.subr.mxu0 0.0
    %935 = vmatpush1.msra.mxu0 0.0
    %936 = vmatprep.subr.mxu0 0.0
    %937 = vmatpush1.msra.mxu0 0.0
    %938 = vmatprep.subr.mxu0 0.0
    %939 = vmatpush1.msra.mxu0 0.0
    %940 = vmatprep.subr.mxu0 0.0
    %941 = vmatpush1.msra.mxu0 0.0
    %942 = vmatprep.subr.mxu0 0.0
    %943 = vmatpush1.msra.mxu0 0.0
    %944 = vmatprep.subr.mxu0 0.0
    %945 = vmatpush1.msra.mxu0 0.0
    %946 = vmatprep.subr.mxu0 0.0
    %947 = vmatpush1.msra.mxu0 0.0
    %948 = vmatprep.subr.mxu0 0.0
    %949 = vmatpush1.msra.mxu0 0.0
    %950 = vmatprep.subr.mxu0 0.0
    %951 = vmatpush1.msra.mxu0 0.0
    %952 = vmatprep.subr.mxu0 0.0
    %953 = vmatpush1.msra.mxu0 0.0
    %954 = vmatprep.subr.mxu0 0.0
    %955 = vmatpush1.msra.mxu0 0.0
    %956 = vmatprep.subr.mxu0 0.0
    %957 = vmatpush1.msra.mxu0 0.0
    %958 = vmatprep.subr.mxu0 0.0
    %959 = vmatpush1.msra.mxu0 0.0
    %960 = vmatprep.subr.mxu0 0.0
    %961 = vmatpush1.msra.mxu0 0.0
    %962 = vmatprep.subr.mxu0 0.0
    %963 = vmatpush1.msra.mxu0 0.0
    %964 = vmatprep.subr.mxu0 0.0
    %965 = vmatpush1.msra.mxu0 0.0
    %966 = vmatprep.subr.mxu0 0.0
    %967 = vmatpush1.msra.mxu0 0.0
    %968 = vmatprep.subr.mxu0 0.0
    %969 = vmatpush1.msra.mxu0 0.0
    %970 = vmatprep.subr.mxu0 0.0
    %971 = vmatpush1.msra.mxu0 0.0
    %972 = vmatprep.subr.mxu0 0.0
    %973 = vmatpush1.msra.mxu0 0.0
    %974 = vmatprep.subr.mxu0 0.0
    %975 = vmatpush1.msra.mxu0 0.0
    %976 = vmatprep.subr.mxu0 0.0
    %977 = vmatpush1.msra.mxu0 0.0
    %978 = vmatprep.subr.mxu0 0.0
    %979 = vmatpush1.msra.mxu0 0.0
    %980 = vmatprep.subr.mxu0 0.0
    %981 = vmatpush1.msra.mxu0 0.0
    %982 = vmatprep.subr.mxu0 0.0
    %983 = vmatpush1.msra.mxu0 0.0
    %984 = vmatprep.subr.mxu0 0.0
    %985 = vmatpush1.msra.mxu0 0.0
    %986 = vmatprep.subr.mxu0 0.0
    %987 = vmatpush1.msra.mxu0 0.0
    %988 = vmatprep.mubr.f32.mxu0 0.0
    %989 = vmatmul.mubr.f32.gmra.mrb[0].mxu0 %v922
    %v990 = vpop.f32.mrb[0].mxu0
    %v991 = vadd.f32 0.0, %v990
    %v992 = vpop.f32.mrb[0].mxu0
    %993 = vdwg.mxu0
    %v995 = vsel %vm228, %v915, 0
    %v998 = vsel %vm228, %v991, 0
    %1000 = vmatprep.subr.mxu0 0.0
    %1001 = vmatpush1.msra.mxu0 %v222
    %1002 = vmatprep.subr.mxu0 0.0
    %1003 = vmatpush1.msra.mxu0 %v223
    %1004 = vmatprep.subr.mxu0 0.0
    %1005 = vmatpush1.msra.mxu0 0.0
    %1006 = vmatprep.subr.mxu0 0.0
    %1007 = vmatpush1.msra.mxu0 0.0
    %1008 = vmatprep.subr.mxu0 0.0
    %1009 = vmatpush1.msra.mxu0 0.0
    %1010 = vmatprep.subr.mxu0 0.0
    %1011 = vmatpush1.msra.mxu0 0.0
    %1012 = vmatprep.subr.mxu0 0.0
    %1013 = vmatpush1.msra.mxu0 0.0
    %1014 = vmatprep.subr.mxu0 0.0
    %1015 = vmatpush1.msra.mxu0 0.0
    %1016 = vmatprep.subr.mxu0 0.0
    %1017 = vmatpush1.msra.mxu0 0.0
    %1018 = vmatprep.subr.mxu0 0.0
    %1019 = vmatpush1.msra.mxu0 0.0
    %1020 = vmatprep.subr.mxu0 0.0
    %1021 = vmatpush1.msra.mxu0 0.0
    %1022 = vmatprep.subr.mxu0 0.0
    %1023 = vmatpush1.msra.mxu0 0.0
    %1024 = vmatprep.subr.mxu0 0.0
    %1025 = vmatpush1.msra.mxu0 0.0
    %1026 = vmatprep.subr.mxu0 0.0
    %1027 = vmatpush1.msra.mxu0 0.0
    %1028 = vmatprep.subr.mxu0 0.0
    %1029 = vmatpush1.msra.mxu0 0.0
    %1030 = vmatprep.subr.mxu0 0.0
    %1031 = vmatpush1.msra.mxu0 0.0
    %1032 = vmatprep.subr.mxu0 0.0
    %1033 = vmatpush1.msra.mxu0 0.0
    %1034 = vmatprep.subr.mxu0 0.0
    %1035 = vmatpush1.msra.mxu0 0.0
    %1036 = vmatprep.subr.mxu0 0.0
    %1037 = vmatpush1.msra.mxu0 0.0
    %1038 = vmatprep.subr.mxu0 0.0
    %1039 = vmatpush1.msra.mxu0 0.0
    %1040 = vmatprep.subr.mxu0 0.0
    %1041 = vmatpush1.msra.mxu0 0.0
    %1042 = vmatprep.subr.mxu0 0.0
    %1043 = vmatpush1.msra.mxu0 0.0
    %1044 = vmatprep.subr.mxu0 0.0
    %1045 = vmatpush1.msra.mxu0 0.0
    %1046 = vmatprep.subr.mxu0 0.0
    %1047 = vmatpush1.msra.mxu0 0.0
    %1048 = vmatprep.subr.mxu0 0.0
    %1049 = vmatpush1.msra.mxu0 0.0
    %1050 = vmatprep.subr.mxu0 0.0
    %1051 = vmatpush1.msra.mxu0 0.0
    %1052 = vmatprep.subr.mxu0 0.0
    %1053 = vmatpush1.msra.mxu0 0.0
    %1054 = vmatprep.subr.mxu0 0.0
    %1055 = vmatpush1.msra.mxu0 0.0
    %1056 = vmatprep.subr.mxu0 0.0
    %1057 = vmatpush1.msra.mxu0 0.0
    %1058 = vmatprep.subr.mxu0 0.0
    %1059 = vmatpush1.msra.mxu0 0.0
    %1060 = vmatprep.subr.mxu0 0.0
    %1061 = vmatpush1.msra.mxu0 0.0
    %1062 = vmatprep.subr.mxu0 0.0
    %1063 = vmatpush1.msra.mxu0 0.0
    %1064 = vmatprep.mubr.f32.mxu0 0.0
    %1065 = vmatmul.mubr.f32.gmra.mrb[0].mxu0 %v995
    %v1066 = vpop.f32.mrb[0].mxu0
    %v1067 = vadd.f32 0.0, %v1066
    %v1068 = vpop.f32.mrb[0].mxu0
    %1069 = vmatprep.mubr.f32.mxu0 0.0
    %1070 = vmatmul.mubr.f32.gmra.mrb[0].mxu0 %v998
    %v1071 = vpop.f32.mrb[0].mxu0
    %v1072 = vadd.f32 0.0, %v1071
    %v1073 = vpop.f32.mrb[0].mxu0
    %1074 = vdwg.mxu0
    %v1075 = vadd.f32 %v658, %v1067
    %v1076 = vadd.f32 %v659, %v1072
    %v1077 = vadd.f32 %v1075, %v124
    %v1078 = vadd.f32 %v1076, %v125
    %v1079 = vld [vmem:[%s10] sm:$0x1]
    %v1080 = vld [vmem:[%s11] sm:$0x1]
    %v1081 = vsel %vm82, %v1077, 0.0
    %1082 = vadd.xlane.f32.xlu0 %v1081
    %v1083 = vpop.xlane.xlu0 %1082
    %v1084 = vsel %vm82, %v1078, 0.0
    %1085 = vadd.xlane.f32.xlu0 %v1084
    %v1086 = vpop.xlane.xlu0 %1085
    %v1087 = vmul.f32 %v1083, %v89
    %v1088 = vmul.f32 %v1086, %v89
    %v1089 = vsub.f32 %v1077, %v1087
    %v1090 = vsub.f32 %v1078, %v1088
    %v1091 = vmul.f32 %v1089, %v1089
    %v1092 = vmul.f32 %v1090, %v1090
    %v1093 = vsel %vm82, %v1091, 0.0
    %1094 = vadd.xlane.f32.xlu0 %v1093
    %v1095 = vpop.xlane.xlu0 %1094
    %v1096 = vsel %vm82, %v1092, 0.0
    %1097 = vadd.xlane.f32.xlu0 %v1096
    %v1098 = vpop.xlane.xlu0 %1097
    %v1099 = vmul.f32 %v1095, %v89
    %v1100 = vmul.f32 %v1098, %v89
    %v1101 = vadd.f32 %v1099, 1e-12
    %v1102 = vadd.f32 %v1100, 1e-12
    %v1103 = vrsqrt.pop %v1101
    %v1104 = vrsqrt.pop %v1102
    %v1105 = vmul.f32 %v1089, %v1103
    %v1106 = vmul.f32 %v1090, %v1104
    %v1108 = vlaneseq
    %v1109 = vshrl.u32 %v1108, 7
    %v1110 = vsub.s32 0, %v1109
    %v1111 = vrot.slane %v1079, %v1110
    %v1113 = vmul.f32 %v1105, %v1111
    %v1114 = vmul.f32 %v1106, %v1111
    %v1116 = vlaneseq
    %v1117 = vshrl.u32 %v1116, 7
    %v1118 = vsub.s32 0, %v1117
    %v1119 = vrot.slane %v1080, %v1118
    %v1121 = vadd.f32 %v1113, %v1119
    %v1122 = vadd.f32 %v1114, %v1119
    %v1123 = vld [vmem:[%s12] sm:$0xff]
    %v1124 = vld [vmem:[%s12 + $0x8] sm:$0xff]
    %v1125 = vld [vmem:[%s12 + $0x10] sm:$0xff]
    %v1126 = vld [vmem:[%s12 + $0x18] sm:$0xff]
    %v1127 = vld [vmem:[%s13] sm:$0x1]
    %v1129 = vlaneseq
    %v1130 = vshrl.u32 %v1129, 7
    %v1131 = vsub.s32 0, %v1130
    %v1132 = vrot.slane %v1127, %v1131
    %v1135 = vsel %vm82, %v1121, 0
    %v1138 = vsel %vm82, %v1122, 0
    %1140 = vmatprep.subr.mxu0 0.0
    %1141 = vmatpush1.msra.mxu0 %v1123
    %1142 = vmatprep.subr.mxu0 0.0
    %1143 = vmatpush1.msra.mxu0 %v1124
    %1144 = vmatprep.subr.mxu0 0.0
    %1145 = vmatpush1.msra.mxu0 %v1125
    %1146 = vmatprep.subr.mxu0 0.0
    %1147 = vmatpush1.msra.mxu0 %v1126
    %1148 = vmatprep.subr.mxu0 0.0
    %1149 = vmatpush1.msra.mxu0 0.0
    %1150 = vmatprep.subr.mxu0 0.0
    %1151 = vmatpush1.msra.mxu0 0.0
    %1152 = vmatprep.subr.mxu0 0.0
    %1153 = vmatpush1.msra.mxu0 0.0
    %1154 = vmatprep.subr.mxu0 0.0
    %1155 = vmatpush1.msra.mxu0 0.0
    %1156 = vmatprep.subr.mxu0 0.0
    %1157 = vmatpush1.msra.mxu0 0.0
    %1158 = vmatprep.subr.mxu0 0.0
    %1159 = vmatpush1.msra.mxu0 0.0
    %1160 = vmatprep.subr.mxu0 0.0
    %1161 = vmatpush1.msra.mxu0 0.0
    %1162 = vmatprep.subr.mxu0 0.0
    %1163 = vmatpush1.msra.mxu0 0.0
    %1164 = vmatprep.subr.mxu0 0.0
    %1165 = vmatpush1.msra.mxu0 0.0
    %1166 = vmatprep.subr.mxu0 0.0
    %1167 = vmatpush1.msra.mxu0 0.0
    %1168 = vmatprep.subr.mxu0 0.0
    %1169 = vmatpush1.msra.mxu0 0.0
    %1170 = vmatprep.subr.mxu0 0.0
    %1171 = vmatpush1.msra.mxu0 0.0
    %1172 = vmatprep.subr.mxu0 0.0
    %1173 = vmatpush1.msra.mxu0 0.0
    %1174 = vmatprep.subr.mxu0 0.0
    %1175 = vmatpush1.msra.mxu0 0.0
    %1176 = vmatprep.subr.mxu0 0.0
    %1177 = vmatpush1.msra.mxu0 0.0
    %1178 = vmatprep.subr.mxu0 0.0
    %1179 = vmatpush1.msra.mxu0 0.0
    %1180 = vmatprep.subr.mxu0 0.0
    %1181 = vmatpush1.msra.mxu0 0.0
    %1182 = vmatprep.subr.mxu0 0.0
    %1183 = vmatpush1.msra.mxu0 0.0
    %1184 = vmatprep.subr.mxu0 0.0
    %1185 = vmatpush1.msra.mxu0 0.0
    %1186 = vmatprep.subr.mxu0 0.0
    %1187 = vmatpush1.msra.mxu0 0.0
    %1188 = vmatprep.subr.mxu0 0.0
    %1189 = vmatpush1.msra.mxu0 0.0
    %1190 = vmatprep.subr.mxu0 0.0
    %1191 = vmatpush1.msra.mxu0 0.0
    %1192 = vmatprep.subr.mxu0 0.0
    %1193 = vmatpush1.msra.mxu0 0.0
    %1194 = vmatprep.subr.mxu0 0.0
    %1195 = vmatpush1.msra.mxu0 0.0
    %1196 = vmatprep.subr.mxu0 0.0
    %1197 = vmatpush1.msra.mxu0 0.0
    %1198 = vmatprep.subr.mxu0 0.0
    %1199 = vmatpush1.msra.mxu0 0.0
    %1200 = vmatprep.subr.mxu0 0.0
    %1201 = vmatpush1.msra.mxu0 0.0
    %1202 = vmatprep.subr.mxu0 0.0
    %1203 = vmatpush1.msra.mxu0 0.0
    %1204 = vmatprep.mubr.f32.mxu0 0.0
    %1205 = vmatmul.mubr.f32.gmra.mrb[0].mxu0 %v1135
    %v1206 = vpop.f32.mrb[0].mxu0
    %v1207 = vadd.f32 %v1132, %v1206
    %v1208 = vpop.f32.mrb[0].mxu0
    %1209 = vmatprep.mubr.f32.mxu0 0.0
    %1210 = vmatmul.mubr.f32.gmra.mrb[0].mxu0 %v1138
    %v1211 = vpop.f32.mrb[0].mxu0
    %v1212 = vadd.f32 %v1132, %v1211
    %v1213 = vpop.f32.mrb[0].mxu0
    %1214 = vdwg.mxu0
    %v1215 = vmul.f32 %v1207, 0.5
    %v1216 = vmul.f32 %v1212, 0.5
    %v1217 = vmul.f32 %v1207, 0.044715
    %v1218 = vmul.f32 %v1212, 0.044715
    %v1219 = vmul.f32 %v1217, %v1207
    %v1220 = vmul.f32 %v1218, %v1212
    %v1221 = vmul.f32 %v1219, %v1207
    %v1222 = vmul.f32 %v1220, %v1212
    %v1223 = vadd.f32 %v1207, %v1221
    %v1224 = vadd.f32 %v1212, %v1222
    %v1225 = vmul.f32 %v1223, 0.7978846
    %v1226 = vmul.f32 %v1224, 0.7978846
    %v1227 = vtanh.pop %v1225
    %v1228 = vtanh.pop %v1226
    %v1229 = vadd.f32 %v1227, 1.0
    %v1230 = vadd.f32 %v1228, 1.0
    %v1231 = vmul.f32 %v1215, %v1229
    %v1232 = vmul.f32 %v1216, %v1230
    %v1233 = vld [vmem:[%s14] sm:$0xff]
    %v1234 = vld [vmem:[%s14 + $0x8] sm:$0xff]
    %v1235 = vld [vmem:[%s14 + $0x10] sm:$0xff]
    %v1236 = vld [vmem:[%s14 + $0x18] sm:$0xff]
    %v1237 = vld [vmem:[%s14 + $0x20] sm:$0xff]
    %v1238 = vld [vmem:[%s14 + $0x28] sm:$0xff]
    %v1239 = vld [vmem:[%s14 + $0x30] sm:$0xff]
    %v1240 = vld [vmem:[%s14 + $0x38] sm:$0xff]
    %v1241 = vld [vmem:[%s15] sm:$0x1]
    %v1243 = vlaneseq
    %v1244 = vshrl.u32 %v1243, 7
    %v1245 = vsub.s32 0, %v1244
    %v1246 = vrot.slane %v1241, %v1245
    %vm1248 = vcmask 523264
    %v1250 = vsel %vm1248, %v1231, 0
    %v1253 = vsel %vm1248, %v1232, 0
    %1255 = vmatprep.subr.mxu0 0.0
    %1256 = vmatpush1.msra.mxu0 %v1233
    %1257 = vmatprep.subr.mxu0 0.0
    %1258 = vmatpush1.msra.mxu0 %v1234
    %1259 = vmatprep.subr.mxu0 0.0
    %1260 = vmatpush1.msra.mxu0 %v1235
    %1261 = vmatprep.subr.mxu0 0.0
    %1262 = vmatpush1.msra.mxu0 %v1236
    %1263 = vmatprep.subr.mxu0 0.0
    %1264 = vmatpush1.msra.mxu0 %v1237
    %1265 = vmatprep.subr.mxu0 0.0
    %1266 = vmatpush1.msra.mxu0 %v1238
    %1267 = vmatprep.subr.mxu0 0.0
    %1268 = vmatpush1.msra.mxu0 %v1239
    %1269 = vmatprep.subr.mxu0 0.0
    %1270 = vmatpush1.msra.mxu0 %v1240
    %1271 = vmatprep.subr.mxu0 0.0
    %1272 = vmatpush1.msra.mxu0 0.0
    %1273 = vmatprep.subr.mxu0 0.0
    %1274 = vmatpush1.msra.mxu0 0.0
    %1275 = vmatprep.subr.mxu0 0.0
    %1276 = vmatpush1.msra.mxu0 0.0
    %1277 = vmatprep.subr.mxu0 0.0
    %1278 = vmatpush1.msra.mxu0 0.0
    %1279 = vmatprep.subr.mxu0 0.0
    %1280 = vmatpush1.msra.mxu0 0.0
    %1281 = vmatprep.subr.mxu0 0.0
    %1282 = vmatpush1.msra.mxu0 0.0
    %1283 = vmatprep.subr.mxu0 0.0
    %1284 = vmatpush1.msra.mxu0 0.0
    %1285 = vmatprep.subr.mxu0 0.0
    %1286 = vmatpush1.msra.mxu0 0.0
    %1287 = vmatprep.subr.mxu0 0.0
    %1288 = vmatpush1.msra.mxu0 0.0
    %1289 = vmatprep.subr.mxu0 0.0
    %1290 = vmatpush1.msra.mxu0 0.0
    %1291 = vmatprep.subr.mxu0 0.0
    %1292 = vmatpush1.msra.mxu0 0.0
    %1293 = vmatprep.subr.mxu0 0.0
    %1294 = vmatpush1.msra.mxu0 0.0
    %1295 = vmatprep.subr.mxu0 0.0
    %1296 = vmatpush1.msra.mxu0 0.0
    %1297 = vmatprep.subr.mxu0 0.0
    %1298 = vmatpush1.msra.mxu0 0.0
    %1299 = vmatprep.subr.mxu0 0.0
    %1300 = vmatpush1.msra.mxu0 0.0
    %1301 = vmatprep.subr.mxu0 0.0
    %1302 = vmatpush1.msra.mxu0 0.0
    %1303 = vmatprep.subr.mxu0 0.0
    %1304 = vmatpush1.msra.mxu0 0.0
    %1305 = vmatprep.subr.mxu0 0.0
    %1306 = vmatpush1.msra.mxu0 0.0
    %1307 = vmatprep.subr.mxu0 0.0
    %1308 = vmatpush1.msra.mxu0 0.0
    %1309 = vmatprep.subr.mxu0 0.0
    %1310 = vmatpush1.msra.mxu0 0.0
    %1311 = vmatprep.subr.mxu0 0.0
    %1312 = vmatpush1.msra.mxu0 0.0
    %1313 = vmatprep.subr.mxu0 0.0
    %1314 = vmatpush1.msra.mxu0 0.0
    %1315 = vmatprep.subr.mxu0 0.0
    %1316 = vmatpush1.msra.mxu0 0.0
    %1317 = vmatprep.subr.mxu0 0.0
    %1318 = vmatpush1.msra.mxu0 0.0
    %1319 = vmatprep.mubr.f32.mxu0 0.0
    %1320 = vmatmul.mubr.f32.gmra.mrb[0].mxu0 %v1250
    %v1321 = vpop.f32.mrb[0].mxu0
    %v1322 = vadd.f32 %v1246, %v1321
    %v1323 = vpop.f32.mrb[0].mxu0
    %1324 = vmatprep.mubr.f32.mxu0 0.0
    %1325 = vmatmul.mubr.f32.gmra.mrb[0].mxu0 %v1253
    %v1326 = vpop.f32.mrb[0].mxu0
    %v1327 = vadd.f32 %v1246, %v1326
    %v1328 = vpop.f32.mrb[0].mxu0
    %1329 = vdwg.mxu0
    %v1330 = vadd.f32 %v1322, %v1121
    %v1331 = vadd.f32 %v1327, %v1122
    %v1332 = vld [vmem:[%s16] sm:$0x1]
    %v1333 = vld [vmem:[%s17] sm:$0x1]
    %v1334 = vsel %vm82, %v1330, 0.0
    %1335 = vadd.xlane.f32.xlu0 %v1334
    %v1336 = vpop.xlane.xlu0 %1335
    %v1337 = vsel %vm82, %v1331, 0.0
    %1338 = vadd.xlane.f32.xlu0 %v1337
    %v1339 = vpop.xlane.xlu0 %1338
    %v1340 = vmul.f32 %v1336, %v89
    %v1341 = vmul.f32 %v1339, %v89
    %v1342 = vsub.f32 %v1330, %v1340
    %v1343 = vsub.f32 %v1331, %v1341
    %v1344 = vmul.f32 %v1342, %v1342
    %v1345 = vmul.f32 %v1343, %v1343
    %v1346 = vsel %vm82, %v1344, 0.0
    %1347 = vadd.xlane.f32.xlu0 %v1346
    %v1348 = vpop.xlane.xlu0 %1347
    %v1349 = vsel %vm82, %v1345, 0.0
    %1350 = vadd.xlane.f32.xlu0 %v1349
    %v1351 = vpop.xlane.xlu0 %1350
    %v1352 = vmul.f32 %v1348, %v89
    %v1353 = vmul.f32 %v1351, %v89
    %v1354 = vadd.f32 %v1352, 1e-12
    %v1355 = vadd.f32 %v1353, 1e-12
    %v1356 = vrsqrt.pop %v1354
    %v1357 = vrsqrt.pop %v1355
    %v1358 = vmul.f32 %v1342, %v1356
    %v1359 = vmul.f32 %v1343, %v1357
    %v1361 = vlaneseq
    %v1362 = vshrl.u32 %v1361, 7
    %v1363 = vsub.s32 0, %v1362
    %v1364 = vrot.slane %v1332, %v1363
    %v1366 = vmul.f32 %v1358, %v1364
    %v1367 = vmul.f32 %v1359, %v1364
    %v1369 = vlaneseq
    %v1370 = vshrl.u32 %v1369, 7
    %v1371 = vsub.s32 0, %v1370
    %v1372 = vrot.slane %v1333, %v1371
    %v1374 = vadd.f32 %v1366, %v1372
    %v1375 = vadd.f32 %v1367, %v1372
    %s1376 = scalar_lea.vmem %s6, 32
    %v1377 = vld [vmem:[%s1376] sm:$0xff]
    %v1378 = vld [vmem:[%s1376 + $0x8] sm:$0xff]
    %v1379 = vld [vmem:[%s1376 + $0x10] sm:$0xff]
    %v1380 = vld [vmem:[%s1376 + $0x18] sm:$0xff]
    %s1381 = scalar_lea.vmem %s7, 1
    %v1382 = vld [vmem:[%s1381] sm:$0x1]
    %v1384 = vlaneseq
    %v1385 = vshrl.u32 %v1384, 7
    %v1386 = vsub.s32 0, %v1385
    %v1387 = vrot.slane %v1382, %v1386
    %v1390 = vsel %vm82, %v1374, 0
    %v1393 = vsel %vm82, %v1375, 0
    %1395 = vmatprep.subr.mxu0 0.0
    %1396 = vmatpush1.msra.mxu0 %v1377
    %1397 = vmatprep.subr.mxu0 0.0
    %1398 = vmatpush1.msra.mxu0 %v1378
    %1399 = vmatprep.subr.mxu0 0.0
    %1400 = vmatpush1.msra.mxu0 %v1379
    %1401 = vmatprep.subr.mxu0 0.0
    %1402 = vmatpush1.msra.mxu0 %v1380
    %1403 = vmatprep.subr.mxu0 0.0
    %1404 = vmatpush1.msra.mxu0 0.0
    %1405 = vmatprep.subr.mxu0 0.0
    %1406 = vmatpush1.msra.mxu0 0.0
    %1407 = vmatprep.subr.mxu0 0.0
    %1408 = vmatpush1.msra.mxu0 0.0
    %1409 = vmatprep.subr.mxu0 0.0
    %1410 = vmatpush1.msra.mxu0 0.0
    %1411 = vmatprep.subr.mxu0 0.0
    %1412 = vmatpush1.msra.mxu0 0.0
    %1413 = vmatprep.subr.mxu0 0.0
    %1414 = vmatpush1.msra.mxu0 0.0
    %1415 = vmatprep.subr.mxu0 0.0
    %1416 = vmatpush1.msra.mxu0 0.0
    %1417 = vmatprep.subr.mxu0 0.0
    %1418 = vmatpush1.msra.mxu0 0.0
    %1419 = vmatprep.subr.mxu0 0.0
    %1420 = vmatpush1.msra.mxu0 0.0
    %1421 = vmatprep.subr.mxu0 0.0
    %1422 = vmatpush1.msra.mxu0 0.0
    %1423 = vmatprep.subr.mxu0 0.0
    %1424 = vmatpush1.msra.mxu0 0.0
    %1425 = vmatprep.subr.mxu0 0.0
    %1426 = vmatpush1.msra.mxu0 0.0
    %1427 = vmatprep.subr.mxu0 0.0
    %1428 = vmatpush1.msra.mxu0 0.0
    %1429 = vmatprep.subr.mxu0 0.0
    %1430 = vmatpush1.msra.mxu0 0.0
    %1431 = vmatprep.subr.mxu0 0.0
    %1432 = vmatpush1.msra.mxu0 0.0
    %1433 = vmatprep.subr.mxu0 0.0
    %1434 = vmatpush1.msra.mxu0 0.0
    %1435 = vmatprep.subr.mxu0 0.0
    %1436 = vmatpush1.msra.mxu0 0.0
    %1437 = vmatprep.subr.mxu0 0.0
    %1438 = vmatpush1.msra.mxu0 0.0
    %1439 = vmatprep.subr.mxu0 0.0
    %1440 = vmatpush1.msra.mxu0 0.0
    %1441 = vmatprep.subr.mxu0 0.0
    %1442 = vmatpush1.msra.mxu0 0.0
    %1443 = vmatprep.subr.mxu0 0.0
    %1444 = vmatpush1.msra.mxu0 0.0
    %1445 = vmatprep.subr.mxu0 0.0
    %1446 = vmatpush1.msra.mxu0 0.0
    %1447 = vmatprep.subr.mxu0 0.0
    %1448 = vmatpush1.msra.mxu0 0.0
    %1449 = vmatprep.subr.mxu0 0.0
    %1450 = vmatpush1.msra.mxu0 0.0
    %1451 = vmatprep.subr.mxu0 0.0
    %1452 = vmatpush1.msra.mxu0 0.0
    %1453 = vmatprep.subr.mxu0 0.0
    %1454 = vmatpush1.msra.mxu0 0.0
    %1455 = vmatprep.subr.mxu0 0.0
    %1456 = vmatpush1.msra.mxu0 0.0
    %1457 = vmatprep.subr.mxu0 0.0
    %1458 = vmatpush1.msra.mxu0 0.0
    %1459 = vmatprep.mubr.f32.mxu0 0.0
    %1460 = vmatmul.mubr.f32.gmra.mrb[0].mxu0 %v1390
    %v1461 = vpop.f32.mrb[0].mxu0
    %v1462 = vadd.f32 %v1387, %v1461
    %v1463 = vpop.f32.mrb[0].mxu0
    %1464 = vmatprep.mubr.f32.mxu0 0.0
    %1465 = vmatmul.mubr.f32.gmra.mrb[0].mxu0 %v1393
    %v1466 = vpop.f32.mrb[0].mxu0
    %v1467 = vadd.f32 %v1387, %v1466
    %v1468 = vpop.f32.mrb[0].mxu0
    %1469 = vdwg.mxu0
    %s1470 = scalar_lea.vmem %s8, 32
    %v1471 = vld [vmem:[%s1470] sm:$0xff]
    %v1472 = vld [vmem:[%s1470 + $0x8] sm:$0xff]
    %v1473 = vld [vmem:[%s1470 + $0x10] sm:$0xff]
    %v1474 = vld [vmem:[%s1470 + $0x18] sm:$0xff]
    %s1475 = scalar_lea.vmem %s9, 1
    %v1476 = vld [vmem:[%s1475] sm:$0x1]
    %1478 = vrot.lane.b32.xlu0 %v1462, 96
    %v1479 = vpop.permute.xlu0 %1478
    %v1480 = vsel %vm228, %v1462, 0
    %v1482 = vsel %vm228, %v1479, 0
    %1484 = vmatprep.subr.mxu0 0.0
    %1485 = vmatpush1.xpose.msra.mxu0 %v1482
    %1486 = vmatprep.subr.mxu0 0.0
    %1487 = vmatpush1.xpose.msra.mxu0 0.0
    %1488 = vmatprep.subr.mxu0 0.0
    %1489 = vmatpush1.xpose.msra.mxu0 0.0
    %1490 = vmatprep.subr.mxu0 0.0
    %1491 = vmatpush1.xpose.msra.mxu0 0.0
    %1492 = vmatprep.subr.mxu0 0.0
    %1493 = vmatpush1.xpose.msra.mxu0 0.0
    %1494 = vmatprep.subr.mxu0 0.0
    %1495 = vmatpush1.xpose.msra.mxu0 0.0
    %1496 = vmatprep.subr.mxu0 0.0
    %1497 = vmatpush1.xpose.msra.mxu0 0.0
    %1498 = vmatprep.subr.mxu0 0.0
    %1499 = vmatpush1.xpose.msra.mxu0 0.0
    %1500 = vmatprep.subr.mxu0 0.0
    %1501 = vmatpush1.xpose.msra.mxu0 0.0
    %1502 = vmatprep.subr.mxu0 0.0
    %1503 = vmatpush1.xpose.msra.mxu0 0.0
    %1504 = vmatprep.subr.mxu0 0.0
    %1505 = vmatpush1.xpose.msra.mxu0 0.0
    %1506 = vmatprep.subr.mxu0 0.0
    %1507 = vmatpush1.xpose.msra.mxu0 0.0
    %1508 = vmatprep.subr.mxu0 0.0
    %1509 = vmatpush1.xpose.msra.mxu0 0.0
    %1510 = vmatprep.subr.mxu0 0.0
    %1511 = vmatpush1.xpose.msra.mxu0 0.0
    %1512 = vmatprep.subr.mxu0 0.0
    %1513 = vmatpush1.xpose.msra.mxu0 0.0
    %1514 = vmatprep.subr.mxu0 0.0
    %1515 = vmatpush1.xpose.msra.mxu0 0.0
    %1516 = vmatprep.subr.mxu0 0.0
    %1517 = vmatpush1.xpose.msra.mxu0 0.0
    %1518 = vmatprep.subr.mxu0 0.0
    %1519 = vmatpush1.xpose.msra.mxu0 0.0
    %1520 = vmatprep.subr.mxu0 0.0
    %1521 = vmatpush1.xpose.msra.mxu0 0.0
    %1522 = vmatprep.subr.mxu0 0.0
    %1523 = vmatpush1.xpose.msra.mxu0 0.0
    %1524 = vmatprep.subr.mxu0 0.0
    %1525 = vmatpush1.xpose.msra.mxu0 0.0
    %1526 = vmatprep.subr.mxu0 0.0
    %1527 = vmatpush1.xpose.msra.mxu0 0.0
    %1528 = vmatprep.subr.mxu0 0.0
    %1529 = vmatpush1.xpose.msra.mxu0 0.0
    %1530 = vmatprep.subr.mxu0 0.0
    %1531 = vmatpush1.xpose.msra.mxu0 0.0
    %1532 = vmatprep.subr.mxu0 0.0
    %1533 = vmatpush1.xpose.msra.mxu0 0.0
    %1534 = vmatprep.subr.mxu0 0.0
    %1535 = vmatpush1.xpose.msra.mxu0 0.0
    %1536 = vmatprep.subr.mxu0 0.0
    %1537 = vmatpush1.xpose.msra.mxu0 0.0
    %1538 = vmatprep.subr.mxu0 0.0
    %1539 = vmatpush1.xpose.msra.mxu0 0.0
    %1540 = vmatprep.subr.mxu0 0.0
    %1541 = vmatpush1.xpose.msra.mxu0 0.0
    %1542 = vmatprep.subr.mxu0 0.0
    %1543 = vmatpush1.xpose.msra.mxu0 0.0
    %1544 = vmatprep.subr.mxu0 0.0
    %1545 = vmatpush1.xpose.msra.mxu0 0.0
    %1546 = vmatprep.subr.mxu0 0.0
    %1547 = vmatpush1.xpose.msra.mxu0 0.0
    %1548 = vmatprep.mubr.f32.mxu0 0.0
    %1549 = vmatmul.mubr.f32.gmra.mrb[0].mxu0 %v1480
    %v1550 = vpop.f32.mrb[0].mxu0
    %v1551 = vadd.f32 0.0, %v1550
    %v1552 = vpop.f32.mrb[0].mxu0
    %1553 = vdwg.mxu0
    %1555 = vrot.lane.b32.xlu0 %v1467, 96
    %v1556 = vpop.permute.xlu0 %1555
    %v1557 = vsel %vm228, %v1467, 0
    %v1559 = vsel %vm228, %v1556, 0
    %1561 = vmatprep.subr.mxu0 0.0
    %1562 = vmatpush1.xpose.msra.mxu0 %v1559
    %1563 = vmatprep.subr.mxu0 0.0
    %1564 = vmatpush1.xpose.msra.mxu0 0.0
    %1565 = vmatprep.subr.mxu0 0.0
    %1566 = vmatpush1.xpose.msra.mxu0 0.0
    %1567 = vmatprep.subr.mxu0 0.0
    %1568 = vmatpush1.xpose.msra.mxu0 0.0
    %1569 = vmatprep.subr.mxu0 0.0
    %1570 = vmatpush1.xpose.msra.mxu0 0.0
    %1571 = vmatprep.subr.mxu0 0.0
    %1572 = vmatpush1.xpose.msra.mxu0 0.0
    %1573 = vmatprep.subr.mxu0 0.0
    %1574 = vmatpush1.xpose.msra.mxu0 0.0
    %1575 = vmatprep.subr.mxu0 0.0
    %1576 = vmatpush1.xpose.msra.mxu0 0.0
    %1577 = vmatprep.subr.mxu0 0.0
    %1578 = vmatpush1.xpose.msra.mxu0 0.0
    %1579 = vmatprep.subr.mxu0 0.0
    %1580 = vmatpush1.xpose.msra.mxu0 0.0
    %1581 = vmatprep.subr.mxu0 0.0
    %1582 = vmatpush1.xpose.msra.mxu0 0.0
    %1583 = vmatprep.subr.mxu0 0.0
    %1584 = vmatpush1.xpose.msra.mxu0 0.0
    %1585 = vmatprep.subr.mxu0 0.0
    %1586 = vmatpush1.xpose.msra.mxu0 0.0
    %1587 = vmatprep.subr.mxu0 0.0
    %1588 = vmatpush1.xpose.msra.mxu0 0.0
    %1589 = vmatprep.subr.mxu0 0.0
    %1590 = vmatpush1.xpose.msra.mxu0 0.0
    %1591 = vmatprep.subr.mxu0 0.0
    %1592 = vmatpush1.xpose.msra.mxu0 0.0
    %1593 = vmatprep.subr.mxu0 0.0
    %1594 = vmatpush1.xpose.msra.mxu0 0.0
    %1595 = vmatprep.subr.mxu0 0.0
    %1596 = vmatpush1.xpose.msra.mxu0 0.0
    %1597 = vmatprep.subr.mxu0 0.0
    %1598 = vmatpush1.xpose.msra.mxu0 0.0
    %1599 = vmatprep.subr.mxu0 0.0
    %1600 = vmatpush1.xpose.msra.mxu0 0.0
    %1601 = vmatprep.subr.mxu0 0.0
    %1602 = vmatpush1.xpose.msra.mxu0 0.0
    %1603 = vmatprep.subr.mxu0 0.0
    %1604 = vmatpush1.xpose.msra.mxu0 0.0
    %1605 = vmatprep.subr.mxu0 0.0
    %1606 = vmatpush1.xpose.msra.mxu0 0.0
    %1607 = vmatprep.subr.mxu0 0.0
    %1608 = vmatpush1.xpose.msra.mxu0 0.0
    %1609 = vmatprep.subr.mxu0 0.0
    %1610 = vmatpush1.xpose.msra.mxu0 0.0
    %1611 = vmatprep.subr.mxu0 0.0
    %1612 = vmatpush1.xpose.msra.mxu0 0.0
    %1613 = vmatprep.subr.mxu0 0.0
    %1614 = vmatpush1.xpose.msra.mxu0 0.0
    %1615 = vmatprep.subr.mxu0 0.0
    %1616 = vmatpush1.xpose.msra.mxu0 0.0
    %1617 = vmatprep.subr.mxu0 0.0
    %1618 = vmatpush1.xpose.msra.mxu0 0.0
    %1619 = vmatprep.subr.mxu0 0.0
    %1620 = vmatpush1.xpose.msra.mxu0 0.0
    %1621 = vmatprep.subr.mxu0 0.0
    %1622 = vmatpush1.xpose.msra.mxu0 0.0
    %1623 = vmatprep.subr.mxu0 0.0
    %1624 = vmatpush1.xpose.msra.mxu0 0.0
    %1625 = vmatprep.mubr.f32.mxu0 0.0
    %1626 = vmatmul.mubr.f32.gmra.mrb[0].mxu0 %v1557
    %v1627 = vpop.f32.mrb[0].mxu0
    %v1628 = vadd.f32 0.0, %v1627
    %v1629 = vpop.f32.mrb[0].mxu0
    %1630 = vdwg.mxu0
    %v1631 = vmul.f32 %v1551, 0.25
    %v1632 = vmul.f32 %v1628, 0.25
    %v1633 = vadd.f32 %v1631, %v387
    %v1634 = vadd.f32 %v1632, %v391
    %v1635 = vsel %vm396, %v1633, -inf
    %1636 = vmax.xlane.f32.xlu0 %v1635
    %v1637 = vpop.xlane.xlu0 %1636
    %v1638 = vsel %vm396, %v1634, -inf
    %1639 = vmax.xlane.f32.xlu0 %v1638
    %v1640 = vpop.xlane.xlu0 %1639
    %v1641 = vsub.f32 %v1633, %v1637
    %v1642 = vsub.f32 %v1634, %v1640
    %v1643 = vmul.f32 %v1641, 1.442695
    %v1644 = vpow.pop %v1643
    %v1645 = vmul.f32 %v1642, 1.442695
    %v1646 = vpow.pop %v1645
    %v1647 = vsel %vm396, %v1644, 0.0
    %1648 = vadd.xlane.f32.xlu0 %v1647
    %v1649 = vpop.xlane.xlu0 %1648
    %v1650 = vsel %vm396, %v1646, 0.0
    %1651 = vadd.xlane.f32.xlu0 %v1650
    %v1652 = vpop.xlane.xlu0 %1651
    %v1653 = vrcp.pop %v1649
    %v1654 = vrcp.pop %v1652
    %v1655 = vmul.f32 %v1644, %v1653
    %v1656 = vmul.f32 %v1646, %v1654
    %1657 = vrot.lane.b32.xlu0 %v1462, 64
    %v1658 = vpop.permute.xlu0 %1657
    %v1661 = vsel %vm396, %v1655, 0
    %1663 = vmatprep.subr.mxu0 0.0
    %1664 = vmatpush1.msra.mxu0 %v1658
    %1665 = vmatprep.subr.mxu0 0.0
    %1666 = vmatpush1.msra.mxu0 0.0
    %1667 = vmatprep.subr.mxu0 0.0
    %1668 = vmatpush1.msra.mxu0 0.0
    %1669 = vmatprep.subr.mxu0 0.0
    %1670 = vmatpush1.msra.mxu0 0.0
    %1671 = vmatprep.subr.mxu0 0.0
    %1672 = vmatpush1.msra.mxu0 0.0
    %1673 = vmatprep.subr.mxu0 0.0
    %1674 = vmatpush1.msra.mxu0 0.0
    %1675 = vmatprep.subr.mxu0 0.0
    %1676 = vmatpush1.msra.mxu0 0.0
    %1677 = vmatprep.subr.mxu0 0.0
    %1678 = vmatpush1.msra.mxu0 0.0
    %1679 = vmatprep.subr.mxu0 0.0
    %1680 = vmatpush1.msra.mxu0 0.0
    %1681 = vmatprep.subr.mxu0 0.0
    %1682 = vmatpush1.msra.mxu0 0.0
    %1683 = vmatprep.subr.mxu0 0.0
    %1684 = vmatpush1.msra.mxu0 0.0
    %1685 = vmatprep.subr.mxu0 0.0
    %1686 = vmatpush1.msra.mxu0 0.0
    %1687 = vmatprep.subr.mxu0 0.0
    %1688 = vmatpush1.msra.mxu0 0.0
    %1689 = vmatprep.subr.mxu0 0.0
    %1690 = vmatpush1.msra.mxu0 0.0
    %1691 = vmatprep.subr.mxu0 0.0
    %1692 = vmatpush1.msra.mxu0 0.0
    %1693 = vmatprep.subr.mxu0 0.0
    %1694 = vmatpush1.msra.mxu0 0.0
    %1695 = vmatprep.subr.mxu0 0.0
    %1696 = vmatpush1.msra.mxu0 0.0
    %1697 = vmatprep.subr.mxu0 0.0
    %1698 = vmatpush1.msra.mxu0 0.0
    %1699 = vmatprep.subr.mxu0 0.0
    %1700 = vmatpush1.msra.mxu0 0.0
    %1701 = vmatprep.subr.mxu0 0.0
    %1702 = vmatpush1.msra.mxu0 0.0
    %1703 = vmatprep.subr.mxu0 0.0
    %1704 = vmatpush1.msra.mxu0 0.0
    %1705 = vmatprep.subr.mxu0 0.0
    %1706 = vmatpush1.msra.mxu0 0.0
    %1707 = vmatprep.subr.mxu0 0.0
    %1708 = vmatpush1.msra.mxu0 0.0
    %1709 = vmatprep.subr.mxu0 0.0
    %1710 = vmatpush1.msra.mxu0 0.0
    %1711 = vmatprep.subr.mxu0 0.0
    %1712 = vmatpush1.msra.mxu0 0.0
    %1713 = vmatprep.subr.mxu0 0.0
    %1714 = vmatpush1.msra.mxu0 0.0
    %1715 = vmatprep.subr.mxu0 0.0
    %1716 = vmatpush1.msra.mxu0 0.0
    %1717 = vmatprep.subr.mxu0 0.0
    %1718 = vmatpush1.msra.mxu0 0.0
    %1719 = vmatprep.subr.mxu0 0.0
    %1720 = vmatpush1.msra.mxu0 0.0
    %1721 = vmatprep.subr.mxu0 0.0
    %1722 = vmatpush1.msra.mxu0 0.0
    %1723 = vmatprep.subr.mxu0 0.0
    %1724 = vmatpush1.msra.mxu0 0.0
    %1725 = vmatprep.subr.mxu0 0.0
    %1726 = vmatpush1.msra.mxu0 0.0
    %1727 = vmatprep.mubr.f32.mxu0 0.0
    %1728 = vmatmul.mubr.f32.gmra.mrb[0].mxu0 %v1661
    %v1729 = vpop.f32.mrb[0].mxu0
    %v1730 = vadd.f32 0.0, %v1729
    %v1731 = vpop.f32.mrb[0].mxu0
    %1732 = vdwg.mxu0
    %1733 = vrot.lane.b32.xlu0 %v1467, 64
    %v1734 = vpop.permute.xlu0 %1733
    %v1737 = vsel %vm396, %v1656, 0
    %1739 = vmatprep.subr.mxu0 0.0
    %1740 = vmatpush1.msra.mxu0 %v1734
    %1741 = vmatprep.subr.mxu0 0.0
    %1742 = vmatpush1.msra.mxu0 0.0
    %1743 = vmatprep.subr.mxu0 0.0
    %1744 = vmatpush1.msra.mxu0 0.0
    %1745 = vmatprep.subr.mxu0 0.0
    %1746 = vmatpush1.msra.mxu0 0.0
    %1747 = vmatprep.subr.mxu0 0.0
    %1748 = vmatpush1.msra.mxu0 0.0
    %1749 = vmatprep.subr.mxu0 0.0
    %1750 = vmatpush1.msra.mxu0 0.0
    %1751 = vmatprep.subr.mxu0 0.0
    %1752 = vmatpush1.msra.mxu0 0.0
    %1753 = vmatprep.subr.mxu0 0.0
    %1754 = vmatpush1.msra.mxu0 0.0
    %1755 = vmatprep.subr.mxu0 0.0
    %1756 = vmatpush1.msra.mxu0 0.0
    %1757 = vmatprep.subr.mxu0 0.0
    %1758 = vmatpush1.msra.mxu0 0.0
    %1759 = vmatprep.subr.mxu0 0.0
    %1760 = vmatpush1.msra.mxu0 0.0
    %1761 = vmatprep.subr.mxu0 0.0
    %1762 = vmatpush1.msra.mxu0 0.0
    %1763 = vmatprep.subr.mxu0 0.0
    %1764 = vmatpush1.msra.mxu0 0.0
    %1765 = vmatprep.subr.mxu0 0.0
    %1766 = vmatpush1.msra.mxu0 0.0
    %1767 = vmatprep.subr.mxu0 0.0
    %1768 = vmatpush1.msra.mxu0 0.0
    %1769 = vmatprep.subr.mxu0 0.0
    %1770 = vmatpush1.msra.mxu0 0.0
    %1771 = vmatprep.subr.mxu0 0.0
    %1772 = vmatpush1.msra.mxu0 0.0
    %1773 = vmatprep.subr.mxu0 0.0
    %1774 = vmatpush1.msra.mxu0 0.0
    %1775 = vmatprep.subr.mxu0 0.0
    %1776 = vmatpush1.msra.mxu0 0.0
    %1777 = vmatprep.subr.mxu0 0.0
    %1778 = vmatpush1.msra.mxu0 0.0
    %1779 = vmatprep.subr.mxu0 0.0
    %1780 = vmatpush1.msra.mxu0 0.0
    %1781 = vmatprep.subr.mxu0 0.0
    %1782 = vmatpush1.msra.mxu0 0.0
    %1783 = vmatprep.subr.mxu0 0.0
    %1784 = vmatpush1.msra.mxu0 0.0
    %1785 = vmatprep.subr.mxu0 0.0
    %1786 = vmatpush1.msra.mxu0 0.0
    %1787 = vmatprep.subr.mxu0 0.0
    %1788 = vmatpush1.msra.mxu0 0.0
    %1789 = vmatprep.subr.mxu0 0.0
    %1790 = vmatpush1.msra.mxu0 0.0
    %1791 = vmatprep.subr.mxu0 0.0
    %1792 = vmatpush1.msra.mxu0 0.0
    %1793 = vmatprep.subr.mxu0 0.0
    %1794 = vmatpush1.msra.mxu0 0.0
    %1795 = vmatprep.subr.mxu0 0.0
    %1796 = vmatpush1.msra.mxu0 0.0
    %1797 = vmatprep.subr.mxu0 0.0
    %1798 = vmatpush1.msra.mxu0 0.0
    %1799 = vmatprep.subr.mxu0 0.0
    %1800 = vmatpush1.msra.mxu0 0.0
    %1801 = vmatprep.subr.mxu0 0.0
    %1802 = vmatpush1.msra.mxu0 0.0
    %1803 = vmatprep.mubr.f32.mxu0 0.0
    %1804 = vmatmul.mubr.f32.gmra.mrb[0].mxu0 %v1737
    %v1805 = vpop.f32.mrb[0].mxu0
    %v1806 = vadd.f32 0.0, %v1805
    %v1807 = vpop.f32.mrb[0].mxu0
    %1808 = vdwg.mxu0
    %v1810 = vsel %vm228, %v1730, 0
    %v1813 = vsel %vm228, %v1806, 0
    %1815 = vmatprep.subr.mxu0 0.0
    %1816 = vmatpush1.msra.mxu0 %v1471
    %1817 = vmatprep.subr.mxu0 0.0
    %1818 = vmatpush1.msra.mxu0 %v1472
    %1819 = vmatprep.subr.mxu0 0.0
    %1820 = vmatpush1.msra.mxu0 0.0
    %1821 = vmatprep.subr.mxu0 0.0
    %1822 = vmatpush1.msra.mxu0 0.0
    %1823 = vmatprep.subr.mxu0 0.0
    %1824 = vmatpush1.msra.mxu0 0.0
    %1825 = vmatprep.subr.mxu0 0.0
    %1826 = vmatpush1.msra.mxu0 0.0
    %1827 = vmatprep.subr.mxu0 0.0
    %1828 = vmatpush1.msra.mxu0 0.0
    %1829 = vmatprep.subr.mxu0 0.0
    %1830 = vmatpush1.msra.mxu0 0.0
    %1831 = vmatprep.subr.mxu0 0.0
    %1832 = vmatpush1.msra.mxu0 0.0
    %1833 = vmatprep.subr.mxu0 0.0
    %1834 = vmatpush1.msra.mxu0 0.0
    %1835 = vmatprep.subr.mxu0 0.0
    %1836 = vmatpush1.msra.mxu0 0.0
    %1837 = vmatprep.subr.mxu0 0.0
    %1838 = vmatpush1.msra.mxu0 0.0
    %1839 = vmatprep.subr.mxu0 0.0
    %1840 = vmatpush1.msra.mxu0 0.0
    %1841 = vmatprep.subr.mxu0 0.0
    %1842 = vmatpush1.msra.mxu0 0.0
    %1843 = vmatprep.subr.mxu0 0.0
    %1844 = vmatpush1.msra.mxu0 0.0
    %1845 = vmatprep.subr.mxu0 0.0
    %1846 = vmatpush1.msra.mxu0 0.0
    %1847 = vmatprep.subr.mxu0 0.0
    %1848 = vmatpush1.msra.mxu0 0.0
    %1849 = vmatprep.subr.mxu0 0.0
    %1850 = vmatpush1.msra.mxu0 0.0
    %1851 = vmatprep.subr.mxu0 0.0
    %1852 = vmatpush1.msra.mxu0 0.0
    %1853 = vmatprep.subr.mxu0 0.0
    %1854 = vmatpush1.msra.mxu0 0.0
    %1855 = vmatprep.subr.mxu0 0.0
    %1856 = vmatpush1.msra.mxu0 0.0
    %1857 = vmatprep.subr.mxu0 0.0
    %1858 = vmatpush1.msra.mxu0 0.0
    %1859 = vmatprep.subr.mxu0 0.0
    %1860 = vmatpush1.msra.mxu0 0.0
    %1861 = vmatprep.subr.mxu0 0.0
    %1862 = vmatpush1.msra.mxu0 0.0
    %1863 = vmatprep.subr.mxu0 0.0
    %1864 = vmatpush1.msra.mxu0 0.0
    %1865 = vmatprep.subr.mxu0 0.0
    %1866 = vmatpush1.msra.mxu0 0.0
    %1867 = vmatprep.subr.mxu0 0.0
    %1868 = vmatpush1.msra.mxu0 0.0
    %1869 = vmatprep.subr.mxu0 0.0
    %1870 = vmatpush1.msra.mxu0 0.0
    %1871 = vmatprep.subr.mxu0 0.0
    %1872 = vmatpush1.msra.mxu0 0.0
    %1873 = vmatprep.subr.mxu0 0.0
    %1874 = vmatpush1.msra.mxu0 0.0
    %1875 = vmatprep.subr.mxu0 0.0
    %1876 = vmatpush1.msra.mxu0 0.0
    %1877 = vmatprep.subr.mxu0 0.0
    %1878 = vmatpush1.msra.mxu0 0.0
    %1879 = vmatprep.mubr.f32.mxu0 0.0
    %1880 = vmatmul.mubr.f32.gmra.mrb[0].mxu0 %v1810
    %v1881 = vpop.f32.mrb[0].mxu0
    %v1882 = vadd.f32 0.0, %v1881
    %v1883 = vpop.f32.mrb[0].mxu0
    %1884 = vmatprep.mubr.f32.mxu0 0.0
    %1885 = vmatmul.mubr.f32.gmra.mrb[0].mxu0 %v1813
    %v1886 = vpop.f32.mrb[0].mxu0
    %v1887 = vadd.f32 0.0, %v1886
    %v1888 = vpop.f32.mrb[0].mxu0
    %1889 = vdwg.mxu0
    %v1891 = vlaneseq
    %v1892 = vshrl.u32 %v1891, 7
    %v1893 = vsub.s32 0, %v1892
    %v1894 = vrot.slane %v1476, %v1893
    %v1896 = vadd.f32 %v1894, %v1882
    %v1897 = vadd.f32 %v1894, %v1887
    %1898 = vrot.lane.b32.xlu0 %v1462, 112
    %v1899 = vpop.permute.xlu0 %1898
    %1900 = vrot.lane.b32.xlu0 %v1462, 80
    %v1901 = vpop.permute.xlu0 %1900
    %v1902 = vsel %vm228, %v1899, 0
    %v1904 = vsel %vm228, %v1901, 0
    %1906 = vmatprep.subr.mxu0 0.0
    %1907 = vmatpush1.xpose.msra.mxu0 %v1904
    %1908 = vmatprep.subr.mxu0 0.0
    %1909 = vmatpush1.xpose.msra.mxu0 0.0
    %1910 = vmatprep.subr.mxu0 0.0
    %1911 = vmatpush1.xpose.msra.mxu0 0.0
    %1912 = vmatprep.subr.mxu0 0.0
    %1913 = vmatpush1.xpose.msra.mxu0 0.0
    %1914 = vmatprep.subr.mxu0 0.0
    %1915 = vmatpush1.xpose.msra.mxu0 0.0
    %1916 = vmatprep.subr.mxu0 0.0
    %1917 = vmatpush1.xpose.msra.mxu0 0.0
    %1918 = vmatprep.subr.mxu0 0.0
    %1919 = vmatpush1.xpose.msra.mxu0 0.0
    %1920 = vmatprep.subr.mxu0 0.0
    %1921 = vmatpush1.xpose.msra.mxu0 0.0
    %1922 = vmatprep.subr.mxu0 0.0
    %1923 = vmatpush1.xpose.msra.mxu0 0.0
    %1924 = vmatprep.subr.mxu0 0.0
    %1925 = vmatpush1.xpose.msra.mxu0 0.0
    %1926 = vmatprep.subr.mxu0 0.0
    %1927 = vmatpush1.xpose.msra.mxu0 0.0
    %1928 = vmatprep.subr.mxu0 0.0
    %1929 = vmatpush1.xpose.msra.mxu0 0.0
    %1930 = vmatprep.subr.mxu0 0.0
    %1931 = vmatpush1.xpose.msra.mxu0 0.0
    %1932 = vmatprep.subr.mxu0 0.0
    %1933 = vmatpush1.xpose.msra.mxu0 0.0
    %1934 = vmatprep.subr.mxu0 0.0
    %1935 = vmatpush1.xpose.msra.mxu0 0.0
    %1936 = vmatprep.subr.mxu0 0.0
    %1937 = vmatpush1.xpose.msra.mxu0 0.0
    %1938 = vmatprep.subr.mxu0 0.0
    %1939 = vmatpush1.xpose.msra.mxu0 0.0
    %1940 = vmatprep.subr.mxu0 0.0
    %1941 = vmatpush1.xpose.msra.mxu0 0.0
    %1942 = vmatprep.subr.mxu0 0.0
    %1943 = vmatpush1.xpose.msra.mxu0 0.0
    %1944 = vmatprep.subr.mxu0 0.0
    %1945 = vmatpush1.xpose.msra.mxu0 0.0
    %1946 = vmatprep.subr.mxu0 0.0
    %1947 = vmatpush1.xpose.msra.mxu0 0.0
    %1948 = vmatprep.subr.mxu0 0.0
    %1949 = vmatpush1.xpose.msra.mxu0 0.0
    %1950 = vmatprep.subr.mxu0 0.0
    %1951 = vmatpush1.xpose.msra.mxu0 0.0
    %1952 = vmatprep.subr.mxu0 0.0
    %1953 = vmatpush1.xpose.msra.mxu0 0.0
    %1954 = vmatprep.subr.mxu0 0.0
    %1955 = vmatpush1.xpose.msra.mxu0 0.0
    %1956 = vmatprep.subr.mxu0 0.0
    %1957 = vmatpush1.xpose.msra.mxu0 0.0
    %1958 = vmatprep.subr.mxu0 0.0
    %1959 = vmatpush1.xpose.msra.mxu0 0.0
    %1960 = vmatprep.subr.mxu0 0.0
    %1961 = vmatpush1.xpose.msra.mxu0 0.0
    %1962 = vmatprep.subr.mxu0 0.0
    %1963 = vmatpush1.xpose.msra.mxu0 0.0
    %1964 = vmatprep.subr.mxu0 0.0
    %1965 = vmatpush1.xpose.msra.mxu0 0.0
    %1966 = vmatprep.subr.mxu0 0.0
    %1967 = vmatpush1.xpose.msra.mxu0 0.0
    %1968 = vmatprep.subr.mxu0 0.0
    %1969 = vmatpush1.xpose.msra.mxu0 0.0
    %1970 = vmatprep.mubr.f32.mxu0 0.0
    %1971 = vmatmul.mubr.f32.gmra.mrb[0].mxu0 %v1902
    %v1972 = vpop.f32.mrb[0].mxu0
    %v1973 = vadd.f32 0.0, %v1972
    %v1974 = vpop.f32.mrb[0].mxu0
    %1975 = vdwg.mxu0
    %1976 = vrot.lane.b32.xlu0 %v1467, 112
    %v1977 = vpop.permute.xlu0 %1976
    %1978 = vrot.lane.b32.xlu0 %v1467, 80
    %v1979 = vpop.permute.xlu0 %1978
    %v1980 = vsel %vm228, %v1977, 0
    %v1982 = vsel %vm228, %v1979, 0
    %1984 = vmatprep.subr.mxu0 0.0
    %1985 = vmatpush1.xpose.msra.mxu0 %v1982
    %1986 = vmatprep.subr.mxu0 0.0
    %1987 = vmatpush1.xpose.msra.mxu0 0.0
    %1988 = vmatprep.subr.mxu0 0.0
    %1989 = vmatpush1.xpose.msra.mxu0 0.0
    %1990 = vmatprep.subr.mxu0 0.0
    %1991 = vmatpush1.xpose.msra.mxu0 0.0
    %1992 = vmatprep.subr.mxu0 0.0
    %1993 = vmatpush1.xpose.msra.mxu0 0.0
    %1994 = vmatprep.subr.mxu0 0.0
    %1995 = vmatpush1.xpose.msra.mxu0 0.0
    %1996 = vmatprep.subr.mxu0 0.0
    %1997 = vmatpush1.xpose.msra.mxu0 0.0
    %1998 = vmatprep.subr.mxu0 0.0
    %1999 = vmatpush1.xpose.msra.mxu0 0.0
    %2000 = vmatprep.subr.mxu0 0.0
    %2001 = vmatpush1.xpose.msra.mxu0 0.0
    %2002 = vmatprep.subr.mxu0 0.0
    %2003 = vmatpush1.xpose.msra.mxu0 0.0
    %2004 = vmatprep.subr.mxu0 0.0
    %2005 = vmatpush1.xpose.msra.mxu0 0.0
    %2006 = vmatprep.subr.mxu0 0.0
    %2007 = vmatpush1.xpose.msra.mxu0 0.0
    %2008 = vmatprep.subr.mxu0 0.0
    %2009 = vmatpush1.xpose.msra.mxu0 0.0
    %2010 = vmatprep.subr.mxu0 0.0
    %2011 = vmatpush1.xpose.msra.mxu0 0.0
    %2012 = vmatprep.subr.mxu0 0.0
    %2013 = vmatpush1.xpose.msra.mxu0 0.0
    %2014 = vmatprep.subr.mxu0 0.0
    %2015 = vmatpush1.xpose.msra.mxu0 0.0
    %2016 = vmatprep.subr.mxu0 0.0
    %2017 = vmatpush1.xpose.msra.mxu0 0.0
    %2018 = vmatprep.subr.mxu0 0.0
    %2019 = vmatpush1.xpose.msra.mxu0 0.0
    %2020 = vmatprep.subr.mxu0 0.0
    %2021 = vmatpush1.xpose.msra.mxu0 0.0
    %2022 = vmatprep.subr.mxu0 0.0
    %2023 = vmatpush1.xpose.msra.mxu0 0.0
    %2024 = vmatprep.subr.mxu0 0.0
    %2025 = vmatpush1.xpose.msra.mxu0 0.0
    %2026 = vmatprep.subr.mxu0 0.0
    %2027 = vmatpush1.xpose.msra.mxu0 0.0
    %2028 = vmatprep.subr.mxu0 0.0
    %2029 = vmatpush1.xpose.msra.mxu0 0.0
    %2030 = vmatprep.subr.mxu0 0.0
    %2031 = vmatpush1.xpose.msra.mxu0 0.0
    %2032 = vmatprep.subr.mxu0 0.0
    %2033 = vmatpush1.xpose.msra.mxu0 0.0
    %2034 = vmatprep.subr.mxu0 0.0
    %2035 = vmatpush1.xpose.msra.mxu0 0.0
    %2036 = vmatprep.subr.mxu0 0.0
    %2037 = vmatpush1.xpose.msra.mxu0 0.0
    %2038 = vmatprep.subr.mxu0 0.0
    %2039 = vmatpush1.xpose.msra.mxu0 0.0
    %2040 = vmatprep.subr.mxu0 0.0
    %2041 = vmatpush1.xpose.msra.mxu0 0.0
    %2042 = vmatprep.subr.mxu0 0.0
    %2043 = vmatpush1.xpose.msra.mxu0 0.0
    %2044 = vmatprep.subr.mxu0 0.0
    %2045 = vmatpush1.xpose.msra.mxu0 0.0
    %2046 = vmatprep.subr.mxu0 0.0
    %2047 = vmatpush1.xpose.msra.mxu0 0.0
    %2048 = vmatprep.mubr.f32.mxu0 0.0
    %2049 = vmatmul.mubr.f32.gmra.mrb[0].mxu0 %v1980
    %v2050 = vpop.f32.mrb[0].mxu0
    %v2051 = vadd.f32 0.0, %v2050
    %v2052 = vpop.f32.mrb[0].mxu0
    %2053 = vdwg.mxu0
    %v2054 = vmul.f32 %v1973, 0.25
    %v2055 = vmul.f32 %v2051, 0.25
    %v2056 = vadd.f32 %v2054, %v387
    %v2057 = vadd.f32 %v2055, %v391
    %v2058 = vsel %vm396, %v2056, -inf
    %2059 = vmax.xlane.f32.xlu0 %v2058
    %v2060 = vpop.xlane.xlu0 %2059
    %v2061 = vsel %vm396, %v2057, -inf
    %2062 = vmax.xlane.f32.xlu0 %v2061
    %v2063 = vpop.xlane.xlu0 %2062
    %v2064 = vsub.f32 %v2056, %v2060
    %v2065 = vsub.f32 %v2057, %v2063
    %v2066 = vmul.f32 %v2064, 1.442695
    %v2067 = vpow.pop %v2066
    %v2068 = vmul.f32 %v2065, 1.442695
    %v2069 = vpow.pop %v2068
    %v2070 = vsel %vm396, %v2067, 0.0
    %2071 = vadd.xlane.f32.xlu0 %v2070
    %v2072 = vpop.xlane.xlu0 %2071
    %v2073 = vsel %vm396, %v2069, 0.0
    %2074 = vadd.xlane.f32.xlu0 %v2073
    %v2075 = vpop.xlane.xlu0 %2074
    %v2076 = vrcp.pop %v2072
    %v2077 = vrcp.pop %v2075
    %v2078 = vmul.f32 %v2067, %v2076
    %v2079 = vmul.f32 %v2069, %v2077
    %2080 = vrot.lane.b32.xlu0 %v1462, 48
    %v2081 = vpop.permute.xlu0 %2080
    %v2084 = vsel %vm396, %v2078, 0
    %2086 = vmatprep.subr.mxu0 0.0
    %2087 = vmatpush1.msra.mxu0 %v2081
    %2088 = vmatprep.subr.mxu0 0.0
    %2089 = vmatpush1.msra.mxu0 0.0
    %2090 = vmatprep.subr.mxu0 0.0
    %2091 = vmatpush1.msra.mxu0 0.0
    %2092 = vmatprep.subr.mxu0 0.0
    %2093 = vmatpush1.msra.mxu0 0.0
    %2094 = vmatprep.subr.mxu0 0.0
    %2095 = vmatpush1.msra.mxu0 0.0
    %2096 = vmatprep.subr.mxu0 0.0
    %2097 = vmatpush1.msra.mxu0 0.0
    %2098 = vmatprep.subr.mxu0 0.0
    %2099 = vmatpush1.msra.mxu0 0.0
    %2100 = vmatprep.subr.mxu0 0.0
    %2101 = vmatpush1.msra.mxu0 0.0
    %2102 = vmatprep.subr.mxu0 0.0
    %2103 = vmatpush1.msra.mxu0 0.0
    %2104 = vmatprep.subr.mxu0 0.0
    %2105 = vmatpush1.msra.mxu0 0.0
    %2106 = vmatprep.subr.mxu0 0.0
    %2107 = vmatpush1.msra.mxu0 0.0
    %2108 = vmatprep.subr.mxu0 0.0
    %2109 = vmatpush1.msra.mxu0 0.0
    %2110 = vmatprep.subr.mxu0 0.0
    %2111 = vmatpush1.msra.mxu0 0.0
    %2112 = vmatprep.subr.mxu0 0.0
    %2113 = vmatpush1.msra.mxu0 0.0
    %2114 = vmatprep.subr.mxu0 0.0
    %2115 = vmatpush1.msra.mxu0 0.0
    %2116 = vmatprep.subr.mxu0 0.0
    %2117 = vmatpush1.msra.mxu0 0.0
    %2118 = vmatprep.subr.mxu0 0.0
    %2119 = vmatpush1.msra.mxu0 0.0
    %2120 = vmatprep.subr.mxu0 0.0
    %2121 = vmatpush1.msra.mxu0 0.0
    %2122 = vmatprep.subr.mxu0 0.0
    %2123 = vmatpush1.msra.mxu0 0.0
    %2124 = vmatprep.subr.mxu0 0.0
    %2125 = vmatpush1.msra.mxu0 0.0
    %2126 = vmatprep.subr.mxu0 0.0
    %2127 = vmatpush1.msra.mxu0 0.0
    %2128 = vmatprep.subr.mxu0 0.0
    %2129 = vmatpush1.msra.mxu0 0.0
    %2130 = vmatprep.subr.mxu0 0.0
    %2131 = vmatpush1.msra.mxu0 0.0
    %2132 = vmatprep.subr.mxu0 0.0
    %2133 = vmatpush1.msra.mxu0 0.0
    %2134 = vmatprep.subr.mxu0 0.0
    %2135 = vmatpush1.msra.mxu0 0.0
    %2136 = vmatprep.subr.mxu0 0.0
    %2137 = vmatpush1.msra.mxu0 0.0
    %2138 = vmatprep.subr.mxu0 0.0
    %2139 = vmatpush1.msra.mxu0 0.0
    %2140 = vmatprep.subr.mxu0 0.0
    %2141 = vmatpush1.msra.mxu0 0.0
    %2142 = vmatprep.subr.mxu0 0.0
    %2143 = vmatpush1.msra.mxu0 0.0
    %2144 = vmatprep.subr.mxu0 0.0
    %2145 = vmatpush1.msra.mxu0 0.0
    %2146 = vmatprep.subr.mxu0 0.0
    %2147 = vmatpush1.msra.mxu0 0.0
    %2148 = vmatprep.subr.mxu0 0.0
    %2149 = vmatpush1.msra.mxu0 0.0
    %2150 = vmatprep.mubr.f32.mxu0 0.0
    %2151 = vmatmul.mubr.f32.gmra.mrb[0].mxu0 %v2084
    %v2152 = vpop.f32.mrb[0].mxu0
    %v2153 = vadd.f32 0.0, %v2152
    %v2154 = vpop.f32.mrb[0].mxu0
    %2155 = vdwg.mxu0
    %2156 = vrot.lane.b32.xlu0 %v1467, 48
    %v2157 = vpop.permute.xlu0 %2156
    %v2160 = vsel %vm396, %v2079, 0
    %2162 = vmatprep.subr.mxu0 0.0
    %2163 = vmatpush1.msra.mxu0 %v2157
    %2164 = vmatprep.subr.mxu0 0.0
    %2165 = vmatpush1.msra.mxu0 0.0
    %2166 = vmatprep.subr.mxu0 0.0
    %2167 = vmatpush1.msra.mxu0 0.0
    %2168 = vmatprep.subr.mxu0 0.0
    %2169 = vmatpush1.msra.mxu0 0.0
    %2170 = vmatprep.subr.mxu0 0.0
    %2171 = vmatpush1.msra.mxu0 0.0
    %2172 = vmatprep.subr.mxu0 0.0
    %2173 = vmatpush1.msra.mxu0 0.0
    %2174 = vmatprep.subr.mxu0 0.0
    %2175 = vmatpush1.msra.mxu0 0.0
    %2176 = vmatprep.subr.mxu0 0.0
    %2177 = vmatpush1.msra.mxu0 0.0
    %2178 = vmatprep.subr.mxu0 0.0
    %2179 = vmatpush1.msra.mxu0 0.0
    %2180 = vmatprep.subr.mxu0 0.0
    %2181 = vmatpush1.msra.mxu0 0.0
    %2182 = vmatprep.subr.mxu0 0.0
    %2183 = vmatpush1.msra.mxu0 0.0
    %2184 = vmatprep.subr.mxu0 0.0
    %2185 = vmatpush1.msra.mxu0 0.0
    %2186 = vmatprep.subr.mxu0 0.0
    %2187 = vmatpush1.msra.mxu0 0.0
    %2188 = vmatprep.subr.mxu0 0.0
    %2189 = vmatpush1.msra.mxu0 0.0
    %2190 = vmatprep.subr.mxu0 0.0
    %2191 = vmatpush1.msra.mxu0 0.0
    %2192 = vmatprep.subr.mxu0 0.0
    %2193 = vmatpush1.msra.mxu0 0.0
    %2194 = vmatprep.subr.mxu0 0.0
    %2195 = vmatpush1.msra.mxu0 0.0
    %2196 = vmatprep.subr.mxu0 0.0
    %2197 = vmatpush1.msra.mxu0 0.0
    %2198 = vmatprep.subr.mxu0 0.0
    %2199 = vmatpush1.msra.mxu0 0.0
    %2200 = vmatprep.subr.mxu0 0.0
    %2201 = vmatpush1.msra.mxu0 0.0
    %2202 = vmatprep.subr.mxu0 0.0
    %2203 = vmatpush1.msra.mxu0 0.0
    %2204 = vmatprep.subr.mxu0 0.0
    %2205 = vmatpush1.msra.mxu0 0.0
    %2206 = vmatprep.subr.mxu0 0.0
    %2207 = vmatpush1.msra.mxu0 0.0
    %2208 = vmatprep.subr.mxu0 0.0
    %2209 = vmatpush1.msra.mxu0 0.0
    %2210 = vmatprep.subr.mxu0 0.0
    %2211 = vmatpush1.msra.mxu0 0.0
    %2212 = vmatprep.subr.mxu0 0.0
    %2213 = vmatpush1.msra.mxu0 0.0
    %2214 = vmatprep.subr.mxu0 0.0
    %2215 = vmatpush1.msra.mxu0 0.0
    %2216 = vmatprep.subr.mxu0 0.0
    %2217 = vmatpush1.msra.mxu0 0.0
    %2218 = vmatprep.subr.mxu0 0.0
    %2219 = vmatpush1.msra.mxu0 0.0
    %2220 = vmatprep.subr.mxu0 0.0
    %2221 = vmatpush1.msra.mxu0 0.0
    %2222 = vmatprep.subr.mxu0 0.0
    %2223 = vmatpush1.msra.mxu0 0.0
    %2224 = vmatprep.subr.mxu0 0.0
    %2225 = vmatpush1.msra.mxu0 0.0
    %2226 = vmatprep.mubr.f32.mxu0 0.0
    %2227 = vmatmul.mubr.f32.gmra.mrb[0].mxu0 %v2160
    %v2228 = vpop.f32.mrb[0].mxu0
    %v2229 = vadd.f32 0.0, %v2228
    %v2230 = vpop.f32.mrb[0].mxu0
    %2231 = vdwg.mxu0
    %v2233 = vsel %vm228, %v2153, 0
    %v2236 = vsel %vm228, %v2229, 0
    %2238 = vmatprep.subr.mxu0 0.0
    %2239 = vmatpush1.msra.mxu0 %v1473
    %2240 = vmatprep.subr.mxu0 0.0
    %2241 = vmatpush1.msra.mxu0 %v1474
    %2242 = vmatprep.subr.mxu0 0.0
    %2243 = vmatpush1.msra.mxu0 0.0
    %2244 = vmatprep.subr.mxu0 0.0
    %2245 = vmatpush1.msra.mxu0 0.0
    %2246 = vmatprep.subr.mxu0 0.0
    %2247 = vmatpush1.msra.mxu0 0.0
    %2248 = vmatprep.subr.mxu0 0.0
    %2249 = vmatpush1.msra.mxu0 0.0
    %2250 = vmatprep.subr.mxu0 0.0
    %2251 = vmatpush1.msra.mxu0 0.0
    %2252 = vmatprep.subr.mxu0 0.0
    %2253 = vmatpush1.msra.mxu0 0.0
    %2254 = vmatprep.subr.mxu0 0.0
    %2255 = vmatpush1.msra.mxu0 0.0
    %2256 = vmatprep.subr.mxu0 0.0
    %2257 = vmatpush1.msra.mxu0 0.0
    %2258 = vmatprep.subr.mxu0 0.0
    %2259 = vmatpush1.msra.mxu0 0.0
    %2260 = vmatprep.subr.mxu0 0.0
    %2261 = vmatpush1.msra.mxu0 0.0
    %2262 = vmatprep.subr.mxu0 0.0
    %2263 = vmatpush1.msra.mxu0 0.0
    %2264 = vmatprep.subr.mxu0 0.0
    %2265 = vmatpush1.msra.mxu0 0.0
    %2266 = vmatprep.subr.mxu0 0.0
    %2267 = vmatpush1.msra.mxu0 0.0
    %2268 = vmatprep.subr.mxu0 0.0
    %2269 = vmatpush1.msra.mxu0 0.0
    %2270 = vmatprep.subr.mxu0 0.0
    %2271 = vmatpush1.msra.mxu0 0.0
    %2272 = vmatprep.subr.mxu0 0.0
    %2273 = vmatpush1.msra.mxu0 0.0
    %2274 = vmatprep.subr.mxu0 0.0
    %2275 = vmatpush1.msra.mxu0 0.0
    %2276 = vmatprep.subr.mxu0 0.0
    %2277 = vmatpush1.msra.mxu0 0.0
    %2278 = vmatprep.subr.mxu0 0.0
    %2279 = vmatpush1.msra.mxu0 0.0
    %2280 = vmatprep.subr.mxu0 0.0
    %2281 = vmatpush1.msra.mxu0 0.0
    %2282 = vmatprep.subr.mxu0 0.0
    %2283 = vmatpush1.msra.mxu0 0.0
    %2284 = vmatprep.subr.mxu0 0.0
    %2285 = vmatpush1.msra.mxu0 0.0
    %2286 = vmatprep.subr.mxu0 0.0
    %2287 = vmatpush1.msra.mxu0 0.0
    %2288 = vmatprep.subr.mxu0 0.0
    %2289 = vmatpush1.msra.mxu0 0.0
    %2290 = vmatprep.subr.mxu0 0.0
    %2291 = vmatpush1.msra.mxu0 0.0
    %2292 = vmatprep.subr.mxu0 0.0
    %2293 = vmatpush1.msra.mxu0 0.0
    %2294 = vmatprep.subr.mxu0 0.0
    %2295 = vmatpush1.msra.mxu0 0.0
    %2296 = vmatprep.subr.mxu0 0.0
    %2297 = vmatpush1.msra.mxu0 0.0
    %2298 = vmatprep.subr.mxu0 0.0
    %2299 = vmatpush1.msra.mxu0 0.0
    %2300 = vmatprep.subr.mxu0 0.0
    %2301 = vmatpush1.msra.mxu0 0.0
    %2302 = vmatprep.mubr.f32.mxu0 0.0
    %2303 = vmatmul.mubr.f32.gmra.mrb[0].mxu0 %v2233
    %v2304 = vpop.f32.mrb[0].mxu0
    %v2305 = vadd.f32 0.0, %v2304
    %v2306 = vpop.f32.mrb[0].mxu0
    %2307 = vmatprep.mubr.f32.mxu0 0.0
    %2308 = vmatmul.mubr.f32.gmra.mrb[0].mxu0 %v2236
    %v2309 = vpop.f32.mrb[0].mxu0
    %v2310 = vadd.f32 0.0, %v2309
    %v2311 = vpop.f32.mrb[0].mxu0
    %2312 = vdwg.mxu0
    %v2313 = vadd.f32 %v1896, %v2305
    %v2314 = vadd.f32 %v1897, %v2310
    %v2315 = vadd.f32 %v2313, %v1374
    %v2316 = vadd.f32 %v2314, %v1375
    %s2317 = scalar_lea.vmem %s10, 1
    %v2318 = vld [vmem:[%s2317] sm:$0x1]
    %s2319 = scalar_lea.vmem %s11, 1
    %v2320 = vld [vmem:[%s2319] sm:$0x1]
    %v2321 = vsel %vm82, %v2315, 0.0
    %2322 = vadd.xlane.f32.xlu0 %v2321
    %v2323 = vpop.xlane.xlu0 %2322
    %v2324 = vsel %vm82, %v2316, 0.0
    %2325 = vadd.xlane.f32.xlu0 %v2324
    %v2326 = vpop.xlane.xlu0 %2325
    %v2327 = vmul.f32 %v2323, %v89
    %v2328 = vmul.f32 %v2326, %v89
    %v2329 = vsub.f32 %v2315, %v2327
    %v2330 = vsub.f32 %v2316, %v2328
    %v2331 = vmul.f32 %v2329, %v2329
    %v2332 = vmul.f32 %v2330, %v2330
    %v2333 = vsel %vm82, %v2331, 0.0
    %2334 = vadd.xlane.f32.xlu0 %v2333
    %v2335 = vpop.xlane.xlu0 %2334
    %v2336 = vsel %vm82, %v2332, 0.0
    %2337 = vadd.xlane.f32.xlu0 %v2336
    %v2338 = vpop.xlane.xlu0 %2337
    %v2339 = vmul.f32 %v2335, %v89
    %v2340 = vmul.f32 %v2338, %v89
    %v2341 = vadd.f32 %v2339, 1e-12
    %v2342 = vadd.f32 %v2340, 1e-12
    %v2343 = vrsqrt.pop %v2341
    %v2344 = vrsqrt.pop %v2342
    %v2345 = vmul.f32 %v2329, %v2343
    %v2346 = vmul.f32 %v2330, %v2344
    %v2348 = vlaneseq
    %v2349 = vshrl.u32 %v2348, 7
    %v2350 = vsub.s32 0, %v2349
    %v2351 = vrot.slane %v2318, %v2350
    %v2353 = vmul.f32 %v2345, %v2351
    %v2354 = vmul.f32 %v2346, %v2351
    %v2356 = vlaneseq
    %v2357 = vshrl.u32 %v2356, 7
    %v2358 = vsub.s32 0, %v2357
    %v2359 = vrot.slane %v2320, %v2358
    %v2361 = vadd.f32 %v2353, %v2359
    %v2362 = vadd.f32 %v2354, %v2359
    %s2363 = scalar_lea.vmem %s12, 32
    %v2364 = vld [vmem:[%s2363] sm:$0xff]
    %v2365 = vld [vmem:[%s2363 + $0x8] sm:$0xff]
    %v2366 = vld [vmem:[%s2363 + $0x10] sm:$0xff]
    %v2367 = vld [vmem:[%s2363 + $0x18] sm:$0xff]
    %s2368 = scalar_lea.vmem %s13, 1
    %v2369 = vld [vmem:[%s2368] sm:$0x1]
    %v2371 = vlaneseq
    %v2372 = vshrl.u32 %v2371, 7
    %v2373 = vsub.s32 0, %v2372
    %v2374 = vrot.slane %v2369, %v2373
    %v2377 = vsel %vm82, %v2361, 0
    %v2380 = vsel %vm82, %v2362, 0
    %2382 = vmatprep.subr.mxu0 0.0
    %2383 = vmatpush1.msra.mxu0 %v2364
    %2384 = vmatprep.subr.mxu0 0.0
    %2385 = vmatpush1.msra.mxu0 %v2365
    %2386 = vmatprep.subr.mxu0 0.0
    %2387 = vmatpush1.msra.mxu0 %v2366
    %2388 = vmatprep.subr.mxu0 0.0
    %2389 = vmatpush1.msra.mxu0 %v2367
    %2390 = vmatprep.subr.mxu0 0.0
    %2391 = vmatpush1.msra.mxu0 0.0
    %2392 = vmatprep.subr.mxu0 0.0
    %2393 = vmatpush1.msra.mxu0 0.0
    %2394 = vmatprep.subr.mxu0 0.0
    %2395 = vmatpush1.msra.mxu0 0.0
    %2396 = vmatprep.subr.mxu0 0.0
    %2397 = vmatpush1.msra.mxu0 0.0
    %2398 = vmatprep.subr.mxu0 0.0
    %2399 = vmatpush1.msra.mxu0 0.0
    %2400 = vmatprep.subr.mxu0 0.0
    %2401 = vmatpush1.msra.mxu0 0.0
    %2402 = vmatprep.subr.mxu0 0.0
    %2403 = vmatpush1.msra.mxu0 0.0
    %2404 = vmatprep.subr.mxu0 0.0
    %2405 = vmatpush1.msra.mxu0 0.0
    %2406 = vmatprep.subr.mxu0 0.0
    %2407 = vmatpush1.msra.mxu0 0.0
    %2408 = vmatprep.subr.mxu0 0.0
    %2409 = vmatpush1.msra.mxu0 0.0
    %2410 = vmatprep.subr.mxu0 0.0
    %2411 = vmatpush1.msra.mxu0 0.0
    %2412 = vmatprep.subr.mxu0 0.0
    %2413 = vmatpush1.msra.mxu0 0.0
    %2414 = vmatprep.subr.mxu0 0.0
    %2415 = vmatpush1.msra.mxu0 0.0
    %2416 = vmatprep.subr.mxu0 0.0
    %2417 = vmatpush1.msra.mxu0 0.0
    %2418 = vmatprep.subr.mxu0 0.0
    %2419 = vmatpush1.msra.mxu0 0.0
    %2420 = vmatprep.subr.mxu0 0.0
    %2421 = vmatpush1.msra.mxu0 0.0
    %2422 = vmatprep.subr.mxu0 0.0
    %2423 = vmatpush1.msra.mxu0 0.0
    %2424 = vmatprep.subr.mxu0 0.0
    %2425 = vmatpush1.msra.mxu0 0.0
    %2426 = vmatprep.subr.mxu0 0.0
    %2427 = vmatpush1.msra.mxu0 0.0
    %2428 = vmatprep.subr.mxu0 0.0
    %2429 = vmatpush1.msra.mxu0 0.0
    %2430 = vmatprep.subr.mxu0 0.0
    %2431 = vmatpush1.msra.mxu0 0.0
    %2432 = vmatprep.subr.mxu0 0.0
    %2433 = vmatpush1.msra.mxu0 0.0
    %2434 = vmatprep.subr.mxu0 0.0
    %2435 = vmatpush1.msra.mxu0 0.0
    %2436 = vmatprep.subr.mxu0 0.0
    %2437 = vmatpush1.msra.mxu0 0.0
    %2438 = vmatprep.subr.mxu0 0.0
    %2439 = vmatpush1.msra.mxu0 0.0
    %2440 = vmatprep.subr.mxu0 0.0
    %2441 = vmatpush1.msra.mxu0 0.0
    %2442 = vmatprep.subr.mxu0 0.0
    %2443 = vmatpush1.msra.mxu0 0.0
    %2444 = vmatprep.subr.mxu0 0.0
    %2445 = vmatpush1.msra.mxu0 0.0
    %2446 = vmatprep.mubr.f32.mxu0 0.0
    %2447 = vmatmul.mubr.f32.gmra.mrb[0].mxu0 %v2377
    %v2448 = vpop.f32.mrb[0].mxu0
    %v2449 = vadd.f32 %v2374, %v2448
    %v2450 = vpop.f32.mrb[0].mxu0
    %2451 = vmatprep.mubr.f32.mxu0 0.0
    %2452 = vmatmul.mubr.f32.gmra.mrb[0].mxu0 %v2380
    %v2453 = vpop.f32.mrb[0].mxu0
    %v2454 = vadd.f32 %v2374, %v2453
    %v2455 = vpop.f32.mrb[0].mxu0
    %2456 = vdwg.mxu0
    %v2457 = vmul.f32 %v2449, 0.5
    %v2458 = vmul.f32 %v2454, 0.5
    %v2459 = vmul.f32 %v2449, 0.044715
    %v2460 = vmul.f32 %v2454, 0.044715
    %v2461 = vmul.f32 %v2459, %v2449
    %v2462 = vmul.f32 %v2460, %v2454
    %v2463 = vmul.f32 %v2461, %v2449
    %v2464 = vmul.f32 %v2462, %v2454
    %v2465 = vadd.f32 %v2449, %v2463
    %v2466 = vadd.f32 %v2454, %v2464
    %v2467 = vmul.f32 %v2465, 0.7978846
    %v2468 = vmul.f32 %v2466, 0.7978846
    %v2469 = vtanh.pop %v2467
    %v2470 = vtanh.pop %v2468
    %v2471 = vadd.f32 %v2469, 1.0
    %v2472 = vadd.f32 %v2470, 1.0
    %v2473 = vmul.f32 %v2457, %v2471
    %v2474 = vmul.f32 %v2458, %v2472
    %s2475 = scalar_lea.vmem %s14, 64
    %v2476 = vld [vmem:[%s2475] sm:$0xff]
    %v2477 = vld [vmem:[%s2475 + $0x8] sm:$0xff]
    %v2478 = vld [vmem:[%s2475 + $0x10] sm:$0xff]
    %v2479 = vld [vmem:[%s2475 + $0x18] sm:$0xff]
    %v2480 = vld [vmem:[%s2475 + $0x20] sm:$0xff]
    %v2481 = vld [vmem:[%s2475 + $0x28] sm:$0xff]
    %v2482 = vld [vmem:[%s2475 + $0x30] sm:$0xff]
    %v2483 = vld [vmem:[%s2475 + $0x38] sm:$0xff]
    %s2484 = scalar_lea.vmem %s15, 1
    %v2485 = vld [vmem:[%s2484] sm:$0x1]
    %v2487 = vlaneseq
    %v2488 = vshrl.u32 %v2487, 7
    %v2489 = vsub.s32 0, %v2488
    %v2490 = vrot.slane %v2485, %v2489
    %v2493 = vsel %vm1248, %v2473, 0
    %v2496 = vsel %vm1248, %v2474, 0
    %2498 = vmatprep.subr.mxu0 0.0
    %2499 = vmatpush1.msra.mxu0 %v2476
    %2500 = vmatprep.subr.mxu0 0.0
    %2501 = vmatpush1.msra.mxu0 %v2477
    %2502 = vmatprep.subr.mxu0 0.0
    %2503 = vmatpush1.msra.mxu0 %v2478
    %2504 = vmatprep.subr.mxu0 0.0
    %2505 = vmatpush1.msra.mxu0 %v2479
    %2506 = vmatprep.subr.mxu0 0.0
    %2507 = vmatpush1.msra.mxu0 %v2480
    %2508 = vmatprep.subr.mxu0 0.0
    %2509 = vmatpush1.msra.mxu0 %v2481
    %2510 = vmatprep.subr.mxu0 0.0
    %2511 = vmatpush1.msra.mxu0 %v2482
    %2512 = vmatprep.subr.mxu0 0.0
    %2513 = vmatpush1.msra.mxu0 %v2483
    %2514 = vmatprep.subr.mxu0 0.0
    %2515 = vmatpush1.msra.mxu0 0.0
    %2516 = vmatprep.subr.mxu0 0.0
    %2517 = vmatpush1.msra.mxu0 0.0
    %2518 = vmatprep.subr.mxu0 0.0
    %2519 = vmatpush1.msra.mxu0 0.0
    %2520 = vmatprep.subr.mxu0 0.0
    %2521 = vmatpush1.msra.mxu0 0.0
    %2522 = vmatprep.subr.mxu0 0.0
    %2523 = vmatpush1.msra.mxu0 0.0
    %2524 = vmatprep.subr.mxu0 0.0
    %2525 = vmatpush1.msra.mxu0 0.0
    %2526 = vmatprep.subr.mxu0 0.0
    %2527 = vmatpush1.msra.mxu0 0.0
    %2528 = vmatprep.subr.mxu0 0.0
    %2529 = vmatpush1.msra.mxu0 0.0
    %2530 = vmatprep.subr.mxu0 0.0
    %2531 = vmatpush1.msra.mxu0 0.0
    %2532 = vmatprep.subr.mxu0 0.0
    %2533 = vmatpush1.msra.mxu0 0.0
    %2534 = vmatprep.subr.mxu0 0.0
    %2535 = vmatpush1.msra.mxu0 0.0
    %2536 = vmatprep.subr.mxu0 0.0
    %2537 = vmatpush1.msra.mxu0 0.0
    %2538 = vmatprep.subr.mxu0 0.0
    %2539 = vmatpush1.msra.mxu0 0.0
    %2540 = vmatprep.subr.mxu0 0.0
    %2541 = vmatpush1.msra.mxu0 0.0
    %2542 = vmatprep.subr.mxu0 0.0
    %2543 = vmatpush1.msra.mxu0 0.0
    %2544 = vmatprep.subr.mxu0 0.0
    %2545 = vmatpush1.msra.mxu0 0.0
    %2546 = vmatprep.subr.mxu0 0.0
    %2547 = vmatpush1.msra.mxu0 0.0
    %2548 = vmatprep.subr.mxu0 0.0
    %2549 = vmatpush1.msra.mxu0 0.0
    %2550 = vmatprep.subr.mxu0 0.0
    %2551 = vmatpush1.msra.mxu0 0.0
    %2552 = vmatprep.subr.mxu0 0.0
    %2553 = vmatpush1.msra.mxu0 0.0
    %2554 = vmatprep.subr.mxu0 0.0
    %2555 = vmatpush1.msra.mxu0 0.0
    %2556 = vmatprep.subr.mxu0 0.0
    %2557 = vmatpush1.msra.mxu0 0.0
    %2558 = vmatprep.subr.mxu0 0.0
    %2559 = vmatpush1.msra.mxu0 0.0
    %2560 = vmatprep.subr.mxu0 0.0
    %2561 = vmatpush1.msra.mxu0 0.0
    %2562 = vmatprep.mubr.f32.mxu0 0.0
    %2563 = vmatmul.mubr.f32.gmra.mrb[0].mxu0 %v2493
    %v2564 = vpop.f32.mrb[0].mxu0
    %v2565 = vadd.f32 %v2490, %v2564
    %v2566 = vpop.f32.mrb[0].mxu0
    %2567 = vmatprep.mubr.f32.mxu0 0.0
    %2568 = vmatmul.mubr.f32.gmra.mrb[0].mxu0 %v2496
    %v2569 = vpop.f32.mrb[0].mxu0
    %v2570 = vadd.f32 %v2490, %v2569
    %v2571 = vpop.f32.mrb[0].mxu0
    %2572 = vdwg.mxu0
    %v2573 = vadd.f32 %v2565, %v2361
    %v2574 = vadd.f32 %v2570, %v2362
    %s2575 = scalar_lea.vmem %s16, 1
    %v2576 = vld [vmem:[%s2575] sm:$0x1]
    %s2577 = scalar_lea.vmem %s17, 1
    %v2578 = vld [vmem:[%s2577] sm:$0x1]
    %v2579 = vsel %vm82, %v2573, 0.0
    %2580 = vadd.xlane.f32.xlu0 %v2579
    %v2581 = vpop.xlane.xlu0 %2580
    %v2582 = vsel %vm82, %v2574, 0.0
    %2583 = vadd.xlane.f32.xlu0 %v2582
    %v2584 = vpop.xlane.xlu0 %2583
    %v2585 = vmul.f32 %v2581, %v89
    %v2586 = vmul.f32 %v2584, %v89
    %v2587 = vsub.f32 %v2573, %v2585
    %v2588 = vsub.f32 %v2574, %v2586
    %v2589 = vmul.f32 %v2587, %v2587
    %v2590 = vmul.f32 %v2588, %v2588
    %v2591 = vsel %vm82, %v2589, 0.0
    %2592 = vadd.xlane.f32.xlu0 %v2591
    %v2593 = vpop.xlane.xlu0 %2592
    %v2594 = vsel %vm82, %v2590, 0.0
    %2595 = vadd.xlane.f32.xlu0 %v2594
    %v2596 = vpop.xlane.xlu0 %2595
    %v2597 = vmul.f32 %v2593, %v89
    %v2598 = vmul.f32 %v2596, %v89
    %v2599 = vadd.f32 %v2597, 1e-12
    %v2600 = vadd.f32 %v2598, 1e-12
    %v2601 = vrsqrt.pop %v2599
    %v2602 = vrsqrt.pop %v2600
    %v2603 = vmul.f32 %v2587, %v2601
    %v2604 = vmul.f32 %v2588, %v2602
    %v2606 = vlaneseq
    %v2607 = vshrl.u32 %v2606, 7
    %v2608 = vsub.s32 0, %v2607
    %v2609 = vrot.slane %v2576, %v2608
    %v2611 = vmul.f32 %v2603, %v2609
    %v2612 = vmul.f32 %v2604, %v2609
    %v2614 = vlaneseq
    %v2615 = vshrl.u32 %v2614, 7
    %v2616 = vsub.s32 0, %v2615
    %v2617 = vrot.slane %v2578, %v2616
    %v2619 = vadd.f32 %v2611, %v2617
    %v2620 = vadd.f32 %v2612, %v2617
    %v2621 = vld [vmem:[%s18] sm:$0xff]
    %v2622 = vld [vmem:[%s18 + $0x8] sm:$0xff]
    %v2623 = vld [vmem:[%s18 + $0x10] sm:$0xff]
    %v2624 = vld [vmem:[%s18 + $0x18] sm:$0xff]
    %v2625 = vld [vmem:[%s19] sm:$0x1]
    %v2627 = vlaneseq
    %v2628 = vshrl.u32 %v2627, 7
    %v2629 = vsub.s32 0, %v2628
    %v2630 = vrot.slane %v2625, %v2629
    %v2634 = vrot.slane %v2620, 7
    %vm2635 = vcmask 1041409
    %v2636 = vsel %vm2635, %v2634, %v2619
    %v2637 = vsel %vm82, %v2636, 0
    %2639 = vmatprep.subr.mxu0 0.0
    %2640 = vmatpush1.msra.mxu0 %v2621
    %2641 = vmatprep.subr.mxu0 0.0
    %2642 = vmatpush1.msra.mxu0 %v2622
    %2643 = vmatprep.subr.mxu0 0.0
    %2644 = vmatpush1.msra.mxu0 %v2623
    %2645 = vmatprep.subr.mxu0 0.0
    %2646 = vmatpush1.msra.mxu0 %v2624
    %2647 = vmatprep.subr.mxu0 0.0
    %2648 = vmatpush1.msra.mxu0 0.0
    %2649 = vmatprep.subr.mxu0 0.0
    %2650 = vmatpush1.msra.mxu0 0.0
    %2651 = vmatprep.subr.mxu0 0.0
    %2652 = vmatpush1.msra.mxu0 0.0
    %2653 = vmatprep.subr.mxu0 0.0
    %2654 = vmatpush1.msra.mxu0 0.0
    %2655 = vmatprep.subr.mxu0 0.0
    %2656 = vmatpush1.msra.mxu0 0.0
    %2657 = vmatprep.subr.mxu0 0.0
    %2658 = vmatpush1.msra.mxu0 0.0
    %2659 = vmatprep.subr.mxu0 0.0
    %2660 = vmatpush1.msra.mxu0 0.0
    %2661 = vmatprep.subr.mxu0 0.0
    %2662 = vmatpush1.msra.mxu0 0.0
    %2663 = vmatprep.subr.mxu0 0.0
    %2664 = vmatpush1.msra.mxu0 0.0
    %2665 = vmatprep.subr.mxu0 0.0
    %2666 = vmatpush1.msra.mxu0 0.0
    %2667 = vmatprep.subr.mxu0 0.0
    %2668 = vmatpush1.msra.mxu0 0.0
    %2669 = vmatprep.subr.mxu0 0.0
    %2670 = vmatpush1.msra.mxu0 0.0
    %2671 = vmatprep.subr.mxu0 0.0
    %2672 = vmatpush1.msra.mxu0 0.0
    %2673 = vmatprep.subr.mxu0 0.0
    %2674 = vmatpush1.msra.mxu0 0.0
    %2675 = vmatprep.subr.mxu0 0.0
    %2676 = vmatpush1.msra.mxu0 0.0
    %2677 = vmatprep.subr.mxu0 0.0
    %2678 = vmatpush1.msra.mxu0 0.0
    %2679 = vmatprep.subr.mxu0 0.0
    %2680 = vmatpush1.msra.mxu0 0.0
    %2681 = vmatprep.subr.mxu0 0.0
    %2682 = vmatpush1.msra.mxu0 0.0
    %2683 = vmatprep.subr.mxu0 0.0
    %2684 = vmatpush1.msra.mxu0 0.0
    %2685 = vmatprep.subr.mxu0 0.0
    %2686 = vmatpush1.msra.mxu0 0.0
    %2687 = vmatprep.subr.mxu0 0.0
    %2688 = vmatpush1.msra.mxu0 0.0
    %2689 = vmatprep.subr.mxu0 0.0
    %2690 = vmatpush1.msra.mxu0 0.0
    %2691 = vmatprep.subr.mxu0 0.0
    %2692 = vmatpush1.msra.mxu0 0.0
    %2693 = vmatprep.subr.mxu0 0.0
    %2694 = vmatpush1.msra.mxu0 0.0
    %2695 = vmatprep.subr.mxu0 0.0
    %2696 = vmatpush1.msra.mxu0 0.0
    %2697 = vmatprep.subr.mxu0 0.0
    %2698 = vmatpush1.msra.mxu0 0.0
    %2699 = vmatprep.subr.mxu0 0.0
    %2700 = vmatpush1.msra.mxu0 0.0
    %2701 = vmatprep.subr.mxu0 0.0
    %2702 = vmatpush1.msra.mxu0 0.0
    %2703 = vmatprep.mubr.f32.mxu0 0.0
    %2704 = vmatmul.mubr.f32.gmra.mrb[0].mxu0 %v2637
    %v2705 = vpop.f32.mrb[0].mxu0
    %v2706 = vadd.f32 %v2630, %v2705
    %v2707 = vpop.f32.mrb[0].mxu0
    %2708 = vdwg.mxu0
    %v2709 = vtanh.pop %v2706
    %vm2710 = vcmask 254976
    %2711 = vst.msk [vmem:[#allocation2] sm:$0x3] %vm2710, %v2709
    // Predicated region
    $region82: #{address_encoder_forward.1} parent=1 // pred_check
      _
    $region83: #{address_encoder_forward.1} parent=1 // pred_check_branch
      %2713 = sbr.rel (0) target = $region85
    $region84: #{address_encoder_forward.1} parent=1 // pred_region
      %s2715 = ssub.s32 32, 32
      %2716 = vsyncadd [#allocation3], %s2715
      %s2718 = sshll.u32 [#allocation2], 4
      %s2719 = int_to_ptr.vmem [resolvable:$true] %s2718
      %2721 = dma.vmem_to_hbm [thread:$0]  %s2719, 32, %s20, [#allocation3]
    $region85: #{address_encoder_forward.1} parent=1 // pred_fallthru
      _
    // Predicated region
    $region86: #{address_encoder_forward.1} parent=1 // pred_check
      _
    $region87: #{address_encoder_forward.1} parent=1 // pred_check_branch
      %2723 = sbr.rel (0) target = $region89
    $region88: #{address_encoder_forward.1} parent=1 // pred_region
      %2724 = dma.done [#allocation3], 32
    $region89: #{address_encoder_forward.1} parent=1 // pred_fallthru
      _
    %2725 = vsyncpa [#allocation3], 1

</llo_original>
